<compile_context>
chip_gen: v5e
topology: v5e:2x2
jax: 0.10.0
libtpu: 0.0.40
codegen_flags: <defaults>
</compile_context>

<pallas_src>
import numpy as np
import jax
import jax.numpy as jnp
from jax.experimental import pallas as pl
from jax.experimental.pallas import tpu as pltpu


# ---------------------------------------------------------------------------
# emb / frequency construction (mirrors SpatialEncoding.__init__)
# ---------------------------------------------------------------------------

def make_spatial_encoding_freqs(in_dim: int, out_dim: int, sigma: float = 6.0) -> np.ndarray:
    assert out_dim % (2 * in_dim) == 0, "dimension must be dividable"
    n = out_dim // 2 // in_dim
    return 2.0 ** np.linspace(0, sigma, n)                              # (n,)


def make_spatial_encoding_emb(in_dim: int, out_dim: int, sigma: float = 6.0) -> jnp.ndarray:
    """Deterministic reproduction of SpatialEncoding.__init__ (for the reference)."""
    m = make_spatial_encoding_freqs(in_dim, out_dim, sigma)
    m = np.stack([m] + [np.zeros_like(m)] * (in_dim - 1), axis=-1)      # (n, in_dim)
    m = np.concatenate([np.roll(m, i, axis=-1) for i in range(in_dim)], axis=0)
    return jnp.asarray(m, dtype=jnp.float32)                            # (out_dim//2, in_dim)


# ---------------------------------------------------------------------------
# Fused sin/cos: shared range reduction + two short polynomials (VPU only).
# ---------------------------------------------------------------------------

_TWO_OVER_PI = 0.6366197723675814
_PIO2_1 = 1.5703125                       # pi/2 split (Cody-Waite, 3 terms);
_PIO2_2 = 4.837512969970703125e-4         # each product k*PIO2_i is exact for
_PIO2_3 = 7.54978995489188216e-8          # the |y| range this module produces.
_SIN_C1 = -1.6666654611e-1
_SIN_C2 = 8.3321608736e-3
_SIN_C3 = -1.9515295891e-4
_COS_C1 = 4.166664568298827e-2
_COS_C2 = -1.388731625493765e-3
_COS_C3 = 2.443315711809948e-5


def _sincos(y):
    """Returns (sin(y), cos(y)) with one shared quadrant reduction."""
    kf = jnp.floor(y * _TWO_OVER_PI + 0.5)            # nearest multiple of pi/2
    r = y - kf * _PIO2_1
    r = r - kf * _PIO2_2
    r = r - kf * _PIO2_3                              # |r| <= pi/4
    z = r * r
    sin_r = r + r * z * (_SIN_C1 + z * (_SIN_C2 + z * _SIN_C3))
    cos_r = 1.0 + z * (-0.5 + z * (_COS_C1 + z * (_COS_C2 + z * _COS_C3)))
    ki = kf.astype(jnp.int32)
    swap = (ki & 1) == 1                              # odd quadrant -> swap
    sin_sign = jnp.where((ki & 2) == 0, 1.0, -1.0)    # k mod 4 in {2,3} -> -sin
    cos_sign = jnp.where(((ki + 1) & 2) == 0, 1.0, -1.0)  # k mod 4 in {1,2} -> -cos
    s = jnp.where(swap, cos_r, sin_r) * sin_sign
    c = jnp.where(swap, sin_r, cos_r) * cos_sign
    return s, c


# ---------------------------------------------------------------------------
# Kernel
# ---------------------------------------------------------------------------

def _make_kernel(in_dim: int, n: int, freqs, cat_input: bool, tc: int):
    half = in_dim * n
    row_off = in_dim if cat_input else 0
    freqs = [float(f) for f in freqs]

    def kernel(x_ref, o_ref, xrep_ref):
        # x_ref:    (in_dim, TN)            channel-first x block (f32)
        # o_ref:    (C, TN)                 C = [x? | sin(y) | cos(y)] rows
        # xrep_ref: (half, tc) f32 scratch  (x rows repeated n times, sublane-dense)
        tn_blk = x_ref.shape[1]

        # Per-sublane frequency pattern: y row j = freqs[j % n] * x[j // n].
        # Built once per grid step from splat constants + iota + where (cheap,
        # hoisted out of the chunk loop).
        sub = jax.lax.broadcasted_iota(jnp.int32, (half, tc), 0)
        fmat = jnp.full((half, tc), freqs[0], dtype=jnp.float32)
        for j in range(1, half):
            if j % n == 0:
                continue  # freqs[0] already set by the initial splat
            fmat = jnp.where(sub == j, freqs[j % n], fmat)

        # Chunk over lanes so sincos temporaries stay within the vreg file.
        for c0 in range(0, tn_blk, tc):
            w = min(tc, tn_blk - c0)
            xs = x_ref[:, c0:c0 + w]                            # (in_dim, w)
            if cat_input:
                o_ref[0:in_dim, c0:c0 + w] = xs.astype(o_ref.dtype)
            # Assemble X_rep (each coordinate row repeated n times along the
            # sublane axis) so the sincos below runs on a fully dense
            # (half, w) block.
            for i in range(in_dim):
                xrep_ref[i * n:(i + 1) * n, 0:w] = jnp.broadcast_to(
                    xs[i:i + 1, :], (n, w))
            y = xrep_ref[:, 0:w] * fmat[:, 0:w]                 # (half, w) f32
            s, c = _sincos(y)
            o_ref[row_off:row_off + half, c0:c0 + w] = s.astype(o_ref.dtype)
            o_ref[row_off + half:row_off + 2 * half, c0:c0 + w] = c.astype(o_ref.dtype)

    return kernel


# ---------------------------------------------------------------------------
# Wrapper
# ---------------------------------------------------------------------------

def spatial_encoding(x: jnp.ndarray, out_dim: int, sigma: float = 6.0,
                     cat_input: bool = True, *, tn: int = 4096, tc: int = 512,
                     out_dtype=None, channels_last: bool = True) -> jnp.ndarray:
    """Pallas implementation of SpatialEncoding.forward (fixed structured emb).

    x: (..., in_dim);  returns (..., in_dim + out_dim) if cat_input else
    (..., out_dim) when channels_last=True (module semantics); with
    channels_last=False the channel-first (C, ...) kernel output is returned
    directly (saves the final transpose pass for consumers that accept it).

    tn: lanes (rows of x) per grid step (multiple of 128; sweep 2048-16384).
    tc: inner chunk width; keeps sincos temporaries inside the 64-vreg file.
    """
    in_dim = x.shape[-1]
    assert out_dim % (2 * in_dim) == 0, "dimension must be dividable"
    half = out_dim // 2
    n = half // in_dim
    freqs = make_spatial_encoding_freqs(in_dim, out_dim, sigma)
    out_dtype = x.dtype if out_dtype is None else out_dtype

    lead = x.shape[:-1]
    n_rows = int(np.prod(lead)) if lead else 1

    # Channel-first layout so the row index maps to vreg lanes (lane-dense
    # transcendental compute).  The x transpose only moves in_dim*4 B/row.
    xt = x.reshape(n_rows, in_dim).T.astype(jnp.float32)        # (in_dim, N)

    assert tn % 128 == 0 and tc % 128 == 0 and tn % tc == 0
    if n_rows >= tn:
        tn_eff = tn                              # lane dim multiple of 128;
        grid = (pl.cdiv(n_rows, tn_eff),)        # ragged final block is clipped.
    else:
        tn_eff = n_rows                          # single block == full array dims
        grid = (1,)
    tc_eff = min(tc, tn_eff)

    out_cols = (in_dim if cat_input else 0) + 2 * half
    kernel = _make_kernel(in_dim, n, freqs, cat_input, tc_eff)

    cost = pl.CostEstimate(
        flops=(2 * in_dim + 20) * half * n_rows,
        transcendentals=2 * half * n_rows,
        bytes_accessed=(xt.size * 4
                        + out_cols * n_rows * jnp.dtype(out_dtype).itemsize),
    )

    out_cf = pl.pallas_call(
        kernel,
        out_shape=jax.ShapeDtypeStruct((out_cols, n_rows), out_dtype),
        grid_spec=pltpu.PrefetchScalarGridSpec(
            num_scalar_prefetch=0,
            grid=grid,
            in_specs=[pl.BlockSpec((in_dim, tn_eff), lambda i: (0, i))],
            out_specs=pl.BlockSpec((out_cols, tn_eff), lambda i: (0, i)),
            scratch_shapes=[pltpu.VMEM((half, tc_eff), jnp.float32)],
        ),
        compiler_params=pltpu.CompilerParams(
            # Grid steps are independent -> shard across TensorCores (v7x).
            dimension_semantics=("parallel",),
        ),
        cost_estimate=cost,
    )(xt)

    if not channels_last:
        return out_cf.reshape(out_cols, *lead)
    out = out_cf.T.reshape(*lead, out_cols)
    return out


def spatial_encoding_ref(x, emb, cat_input=True):
    """Pure-JAX reference mirroring the torch forward."""
    y = jnp.matmul(x, emb.T, precision=jax.lax.Precision.HIGHEST)
    if cat_input:
        return jnp.concatenate([x, jnp.sin(y), jnp.cos(y)], axis=-1)
    return jnp.concatenate([jnp.sin(y), jnp.cos(y)], axis=-1)


if __name__ == "__main__":
    in_dim, out_dim, sigma = 4, 32, 6
    emb = make_spatial_encoding_emb(in_dim, out_dim, sigma)

    key = jax.random.PRNGKey(0)
    k1, k2, k3 = jax.random.split(key, 3)

    # (2, 64, 64, 4) coordinate grid -> 8192 rows -> 2 grid steps at tn=4096.
    x = jax.random.uniform(k1, (2, 64, 64, in_dim), dtype=jnp.float32)
    out = jax.block_until_ready(spatial_encoding(x, out_dim, sigma, cat_input=True))
    assert out.shape == (2, 64, 64, in_dim + out_dim), out.shape
    ref = spatial_encoding_ref(x, emb, cat_input=True)
    np.testing.assert_allclose(np.asarray(out), np.asarray(ref), rtol=1e-5, atol=1e-5)

    # Ragged final grid block (N=2100, tn=1024 -> 3 steps, last one partial),
    # cat_input=False path.
    x2 = jax.random.uniform(k2, (3, 700, in_dim), dtype=jnp.float32)
    out2 = jax.block_until_ready(
        spatial_encoding(x2, out_dim, sigma, cat_input=False, tn=1024, tc=512))
    assert out2.shape == (3, 700, out_dim), out2.shape
    ref2 = spatial_encoding_ref(x2, emb, cat_input=False)
    np.testing.assert_allclose(np.asarray(out2), np.asarray(ref2), rtol=1e-5, atol=1e-5)

    # Tiny input (N=75 < 128): single full-extent block, ragged chunk width.
    x3 = jax.random.uniform(k3, (3, 25, in_dim), dtype=jnp.float32)
    out3 = jax.block_until_ready(spatial_encoding(x3, out_dim, sigma, cat_input=True))
    assert out3.shape == (3, 25, in_dim + out_dim), out3.shape
    ref3 = spatial_encoding_ref(x3, emb, cat_input=True)
    np.testing.assert_allclose(np.asarray(out3), np.asarray(ref3), rtol=1e-5, atol=1e-5)

    print("KERNEL_OK")
</pallas_src>

<mosaic_0001>
module attributes {stable_mosaic.version = 11 : i64} {
  func.func @kernel(%arg0: i32, %arg1: memref<4x4096xf32, #tpu.memory_space<vmem>>, %arg2: memref<36x4096xf32, #tpu.memory_space<vmem>>, %arg3: memref<16x512xf32, #tpu.memory_space<vmem>>) attributes {dimension_semantics = [#tpu.dimension_semantics<parallel>], iteration_bounds = array<i64: 2>, scalar_prefetch = 0 : i64, scratch_operands = 1 : i64, tpu.core_type = #tpu.core_type<tc>, window_params = [{transform_indices = @transform_0, window_bounds = array<i64: 4, 4096>}, {transform_indices = @transform_1, window_bounds = array<i64: 36, 4096>}]} {
    %0 = tpu.iota {dimensions = array<i32: 0>} : vector<16x512xi32>
    %cst = arith.constant 1.000000e+00 : f32
    %1 = vector.broadcast %cst : f32 to vector<16x512xf32>
    %c1_i32 = arith.constant 1 : i32
    %2 = vector.broadcast %c1_i32 : i32 to vector<16x512xi32>
    %3 = arith.cmpi eq, %0, %2 : vector<16x512xi32>
    %cst_0 = arith.constant 4.000000e+00 : f32
    %4 = vector.broadcast %cst_0 : f32 to vector<16x512xf32>
    %5 = arith.select %3, %4, %1 : vector<16x512xi1>, vector<16x512xf32>
    %c2_i32 = arith.constant 2 : i32
    %6 = vector.broadcast %c2_i32 : i32 to vector<16x512xi32>
    %7 = arith.cmpi eq, %0, %6 : vector<16x512xi32>
    %cst_1 = arith.constant 1.600000e+01 : f32
    %8 = vector.broadcast %cst_1 : f32 to vector<16x512xf32>
    %9 = arith.select %7, %8, %5 : vector<16x512xi1>, vector<16x512xf32>
    %c3_i32 = arith.constant 3 : i32
    %10 = vector.broadcast %c3_i32 : i32 to vector<16x512xi32>
    %11 = arith.cmpi eq, %0, %10 : vector<16x512xi32>
    %cst_2 = arith.constant 6.400000e+01 : f32
    %12 = vector.broadcast %cst_2 : f32 to vector<16x512xf32>
    %13 = arith.select %11, %12, %9 : vector<16x512xi1>, vector<16x512xf32>
    %c5_i32 = arith.constant 5 : i32
    %14 = vector.broadcast %c5_i32 : i32 to vector<16x512xi32>
    %15 = arith.cmpi eq, %0, %14 : vector<16x512xi32>
    %cst_3 = arith.constant 4.000000e+00 : f32
    %16 = vector.broadcast %cst_3 : f32 to vector<16x512xf32>
    %17 = arith.select %15, %16, %13 : vector<16x512xi1>, vector<16x512xf32>
    %c6_i32 = arith.constant 6 : i32
    %18 = vector.broadcast %c6_i32 : i32 to vector<16x512xi32>
    %19 = arith.cmpi eq, %0, %18 : vector<16x512xi32>
    %cst_4 = arith.constant 1.600000e+01 : f32
    %20 = vector.broadcast %cst_4 : f32 to vector<16x512xf32>
    %21 = arith.select %19, %20, %17 : vector<16x512xi1>, vector<16x512xf32>
    %c7_i32 = arith.constant 7 : i32
    %22 = vector.broadcast %c7_i32 : i32 to vector<16x512xi32>
    %23 = arith.cmpi eq, %0, %22 : vector<16x512xi32>
    %cst_5 = arith.constant 6.400000e+01 : f32
    %24 = vector.broadcast %cst_5 : f32 to vector<16x512xf32>
    %25 = arith.select %23, %24, %21 : vector<16x512xi1>, vector<16x512xf32>
    %c9_i32 = arith.constant 9 : i32
    %26 = vector.broadcast %c9_i32 : i32 to vector<16x512xi32>
    %27 = arith.cmpi eq, %0, %26 : vector<16x512xi32>
    %cst_6 = arith.constant 4.000000e+00 : f32
    %28 = vector.broadcast %cst_6 : f32 to vector<16x512xf32>
    %29 = arith.select %27, %28, %25 : vector<16x512xi1>, vector<16x512xf32>
    %c10_i32 = arith.constant 10 : i32
    %30 = vector.broadcast %c10_i32 : i32 to vector<16x512xi32>
    %31 = arith.cmpi eq, %0, %30 : vector<16x512xi32>
    %cst_7 = arith.constant 1.600000e+01 : f32
    %32 = vector.broadcast %cst_7 : f32 to vector<16x512xf32>
    %33 = arith.select %31, %32, %29 : vector<16x512xi1>, vector<16x512xf32>
    %c11_i32 = arith.constant 11 : i32
    %34 = vector.broadcast %c11_i32 : i32 to vector<16x512xi32>
    %35 = arith.cmpi eq, %0, %34 : vector<16x512xi32>
    %cst_8 = arith.constant 6.400000e+01 : f32
    %36 = vector.broadcast %cst_8 : f32 to vector<16x512xf32>
    %37 = arith.select %35, %36, %33 : vector<16x512xi1>, vector<16x512xf32>
    %c13_i32 = arith.constant 13 : i32
    %38 = vector.broadcast %c13_i32 : i32 to vector<16x512xi32>
    %39 = arith.cmpi eq, %0, %38 : vector<16x512xi32>
    %cst_9 = arith.constant 4.000000e+00 : f32
    %40 = vector.broadcast %cst_9 : f32 to vector<16x512xf32>
    %41 = arith.select %39, %40, %37 : vector<16x512xi1>, vector<16x512xf32>
    %c14_i32 = arith.constant 14 : i32
    %42 = vector.broadcast %c14_i32 : i32 to vector<16x512xi32>
    %43 = arith.cmpi eq, %0, %42 : vector<16x512xi32>
    %cst_10 = arith.constant 1.600000e+01 : f32
    %44 = vector.broadcast %cst_10 : f32 to vector<16x512xf32>
    %45 = arith.select %43, %44, %41 : vector<16x512xi1>, vector<16x512xf32>
    %c15_i32 = arith.constant 15 : i32
    %46 = vector.broadcast %c15_i32 : i32 to vector<16x512xi32>
    %47 = arith.cmpi eq, %0, %46 : vector<16x512xi32>
    %cst_11 = arith.constant 6.400000e+01 : f32
    %48 = vector.broadcast %cst_11 : f32 to vector<16x512xf32>
    %49 = arith.select %47, %48, %45 : vector<16x512xi1>, vector<16x512xf32>
    %c0 = arith.constant 0 : index
    %c0_12 = arith.constant 0 : index
    %50 = vector.load %arg1[%c0, %c0_12] : memref<4x4096xf32, #tpu.memory_space<vmem>>, vector<4x512xf32>
    %c0_13 = arith.constant 0 : index
    %c0_14 = arith.constant 0 : index
    %51 = vector.load %arg2[%c0_13, %c0_14] : memref<36x4096xf32, #tpu.memory_space<vmem>>, vector<4x512xf32>
    tpu.vector_store %arg2[%c0_13, %c0_14], %50 {strides = array<i32>} : memref<36x4096xf32, #tpu.memory_space<vmem>>, vector<4x512xf32>,
    %52 = vector.extract_strided_slice %50 {offsets = [0, 0], sizes = [1, 512], strides = [1, 1]} : vector<4x512xf32> to vector<1x512xf32>
    %53 = vector.shape_cast %52 : vector<1x512xf32> to vector<1x512xf32>
    %54 = vector.broadcast %53 : vector<1x512xf32> to vector<4x512xf32>
    %c0_15 = arith.constant 0 : index
    %c0_16 = arith.constant 0 : index
    %55 = vector.load %arg3[%c0_15, %c0_16] : memref<16x512xf32, #tpu.memory_space<vmem>>, vector<4x512xf32>
    tpu.vector_store %arg3[%c0_15, %c0_16], %54 {strides = array<i32>} : memref<16x512xf32, #tpu.memory_space<vmem>>, vector<4x512xf32>,
    %56 = vector.extract_strided_slice %50 {offsets = [1, 0], sizes = [1, 512], strides = [1, 1]} : vector<4x512xf32> to vector<1x512xf32>
    %57 = vector.shape_cast %56 : vector<1x512xf32> to vector<1x512xf32>
    %58 = vector.broadcast %57 : vector<1x512xf32> to vector<4x512xf32>
    %c4 = arith.constant 4 : index
    %c0_17 = arith.constant 0 : index
    %59 = vector.load %arg3[%c4, %c0_17] : memref<16x512xf32, #tpu.memory_space<vmem>>, vector<4x512xf32>
    tpu.vector_store %arg3[%c4, %c0_17], %58 {strides = array<i32>} : memref<16x512xf32, #tpu.memory_space<vmem>>, vector<4x512xf32>,
    %60 = vector.extract_strided_slice %50 {offsets = [2, 0], sizes = [1, 512], strides = [1, 1]} : vector<4x512xf32> to vector<1x512xf32>
    %61 = vector.shape_cast %60 : vector<1x512xf32> to vector<1x512xf32>
    %62 = vector.broadcast %61 : vector<1x512xf32> to vector<4x512xf32>
    %c8 = arith.constant 8 : index
    %c0_18 = arith.constant 0 : index
    %63 = vector.load %arg3[%c8, %c0_18] : memref<16x512xf32, #tpu.memory_space<vmem>>, vector<4x512xf32>
    tpu.vector_store %arg3[%c8, %c0_18], %62 {strides = array<i32>} : memref<16x512xf32, #tpu.memory_space<vmem>>, vector<4x512xf32>,
    %64 = vector.extract_strided_slice %50 {offsets = [3, 0], sizes = [1, 512], strides = [1, 1]} : vector<4x512xf32> to vector<1x512xf32>
    %65 = vector.shape_cast %64 : vector<1x512xf32> to vector<1x512xf32>
    %66 = vector.broadcast %65 : vector<1x512xf32> to vector<4x512xf32>
    %c12 = arith.constant 12 : index
    %c0_19 = arith.constant 0 : index
    %67 = vector.load %arg3[%c12, %c0_19] : memref<16x512xf32, #tpu.memory_space<vmem>>, vector<4x512xf32>
    tpu.vector_store %arg3[%c12, %c0_19], %66 {strides = array<i32>} : memref<16x512xf32, #tpu.memory_space<vmem>>, vector<4x512xf32>,
    %c0_20 = arith.constant 0 : index
    %c0_21 = arith.constant 0 : index
    %68 = vector.load %arg3[%c0_20, %c0_21] : memref<16x512xf32, #tpu.memory_space<vmem>>, vector<16x512xf32>
    %69 = arith.mulf %68, %49 : vector<16x512xf32>
    %cst_22 = arith.constant 0.636619746 : f32
    %70 = vector.broadcast %cst_22 : f32 to vector<16x512xf32>
    %71 = arith.mulf %69, %70 : vector<16x512xf32>
    %cst_23 = arith.constant 5.000000e-01 : f32
    %72 = vector.broadcast %cst_23 : f32 to vector<16x512xf32>
    %73 = arith.addf %71, %72 : vector<16x512xf32>
    %74 = math.floor %73 : vector<16x512xf32>
    %cst_24 = arith.constant 1.5703125 : f32
    %75 = vector.broadcast %cst_24 : f32 to vector<16x512xf32>
    %76 = arith.mulf %74, %75 : vector<16x512xf32>
    %77 = arith.subf %69, %76 : vector<16x512xf32>
    %cst_25 = arith.constant 4.83751297E-4 : f32
    %78 = vector.broadcast %cst_25 : f32 to vector<16x512xf32>
    %79 = arith.mulf %74, %78 : vector<16x512xf32>
    %80 = arith.subf %77, %79 : vector<16x512xf32>
    %cst_26 = arith.constant 7.549790e-08 : f32
    %81 = vector.broadcast %cst_26 : f32 to vector<16x512xf32>
    %82 = arith.mulf %74, %81 : vector<16x512xf32>
    %83 = arith.subf %80, %82 : vector<16x512xf32>
    %84 = arith.mulf %83, %83 : vector<16x512xf32>
    %85 = arith.mulf %83, %84 : vector<16x512xf32>
    %cst_27 = arith.constant -1.95152956E-4 : f32
    %86 = vector.broadcast %cst_27 : f32 to vector<16x512xf32>
    %87 = arith.mulf %84, %86 : vector<16x512xf32>
    %cst_28 = arith.constant 0.00833216123 : f32
    %88 = vector.broadcast %cst_28 : f32 to vector<16x512xf32>
    %89 = arith.addf %88, %87 : vector<16x512xf32>
    %90 = arith.mulf %84, %89 : vector<16x512xf32>
    %cst_29 = arith.constant -0.166666552 : f32
    %91 = vector.broadcast %cst_29 : f32 to vector<16x512xf32>
    %92 = arith.addf %91, %90 : vector<16x512xf32>
    %93 = arith.mulf %85, %92 : vector<16x512xf32>
    %94 = arith.addf %83, %93 : vector<16x512xf32>
    %cst_30 = arith.constant 2.44331568E-5 : f32
    %95 = vector.broadcast %cst_30 : f32 to vector<16x512xf32>
    %96 = arith.mulf %84, %95 : vector<16x512xf32>
    %cst_31 = arith.constant -0.00138873165 : f32
    %97 = vector.broadcast %cst_31 : f32 to vector<16x512xf32>
    %98 = arith.addf %97, %96 : vector<16x512xf32>
    %99 = arith.mulf %84, %98 : vector<16x512xf32>
    %cst_32 = arith.constant 0.0416666456 : f32
    %100 = vector.broadcast %cst_32 : f32 to vector<16x512xf32>
    %101 = arith.addf %100, %99 : vector<16x512xf32>
    %102 = arith.mulf %84, %101 : vector<16x512xf32>
    %cst_33 = arith.constant -5.000000e-01 : f32
    %103 = vector.broadcast %cst_33 : f32 to vector<16x512xf32>
    %104 = arith.addf %103, %102 : vector<16x512xf32>
    %105 = arith.mulf %84, %104 : vector<16x512xf32>
    %cst_34 = arith.constant 1.000000e+00 : f32
    %106 = vector.broadcast %cst_34 : f32 to vector<16x512xf32>
    %107 = arith.addf %106, %105 : vector<16x512xf32>
    %108 = arith.fptosi %74 : vector<16x512xf32> to vector<16x512xi32>
    %c1_i32_35 = arith.constant 1 : i32
    %109 = vector.broadcast %c1_i32_35 : i32 to vector<16x512xi32>
    %110 = arith.andi %108, %109 : vector<16x512xi32>
    %c1_i32_36 = arith.constant 1 : i32
    %111 = vector.broadcast %c1_i32_36 : i32 to vector<16x512xi32>
    %112 = arith.cmpi eq, %110, %111 : vector<16x512xi32>
    %c2_i32_37 = arith.constant 2 : i32
    %113 = vector.broadcast %c2_i32_37 : i32 to vector<16x512xi32>
    %114 = arith.andi %108, %113 : vector<16x512xi32>
    %c0_i32 = arith.constant 0 : i32
    %115 = vector.broadcast %c0_i32 : i32 to vector<16x512xi32>
    %116 = arith.cmpi eq, %114, %115 : vector<16x512xi32>
    %cst_38 = arith.constant 1.000000e+00 : f32
    %cst_39 = arith.constant -1.000000e+00 : f32
    %117 = vector.broadcast %cst_38 : f32 to vector<16x512xf32>
    %118 = vector.broadcast %cst_39 : f32 to vector<16x512xf32>
    %119 = arith.select %116, %117, %118 : vector<16x512xi1>, vector<16x512xf32>
    %c1_i32_40 = arith.constant 1 : i32
    %120 = vector.broadcast %c1_i32_40 : i32 to vector<16x512xi32>
    %121 = arith.addi %108, %120 : vector<16x512xi32>
    %c2_i32_41 = arith.constant 2 : i32
    %122 = vector.broadcast %c2_i32_41 : i32 to vector<16x512xi32>
    %123 = arith.andi %121, %122 : vector<16x512xi32>
    %c0_i32_42 = arith.constant 0 : i32
    %124 = vector.broadcast %c0_i32_42 : i32 to vector<16x512xi32>
    %125 = arith.cmpi eq, %123, %124 : vector<16x512xi32>
    %cst_43 = arith.constant 1.000000e+00 : f32
    %cst_44 = arith.constant -1.000000e+00 : f32
    %126 = vector.broadcast %cst_43 : f32 to vector<16x512xf32>
    %127 = vector.broadcast %cst_44 : f32 to vector<16x512xf32>
    %128 = arith.select %125, %126, %127 : vector<16x512xi1>, vector<16x512xf32>
    %129 = arith.select %112, %107, %94 : vector<16x512xi1>, vector<16x512xf32>
    %130 = arith.mulf %129, %119 : vector<16x512xf32>
    %131 = arith.select %112, %94, %107 : vector<16x512xi1>, vector<16x512xf32>
    %132 = arith.mulf %131, %128 : vector<16x512xf32>
    %c4_45 = arith.constant 4 : index
    %c0_46 = arith.constant 0 : index
    %133 = vector.load %arg2[%c4_45, %c0_46] : memref<36x4096xf32, #tpu.memory_space<vmem>>, vector<16x512xf32>
    tpu.vector_store %arg2[%c4_45, %c0_46], %130 {strides = array<i32>} : memref<36x4096xf32, #tpu.memory_space<vmem>>, vector<16x512xf32>,
    %c20 = arith.constant 20 : index
    %c0_47 = arith.constant 0 : index
    %134 = vector.load %arg2[%c20, %c0_47] : memref<36x4096xf32, #tpu.memory_space<vmem>>, vector<16x512xf32>
    tpu.vector_store %arg2[%c20, %c0_47], %132 {strides = array<i32>} : memref<36x4096xf32, #tpu.memory_space<vmem>>, vector<16x512xf32>,
    %c0_48 = arith.constant 0 : index
    %c512 = arith.constant 512 : index
    %135 = vector.load %arg1[%c0_48, %c512] : memref<4x4096xf32, #tpu.memory_space<vmem>>, vector<4x512xf32>
    %c0_49 = arith.constant 0 : index
    %c512_50 = arith.constant 512 : index
    %136 = vector.load %arg2[%c0_49, %c512_50] : memref<36x4096xf32, #tpu.memory_space<vmem>>, vector<4x512xf32>
    tpu.vector_store %arg2[%c0_49, %c512_50], %135 {strides = array<i32>} : memref<36x4096xf32, #tpu.memory_space<vmem>>, vector<4x512xf32>,
    %137 = vector.extract_strided_slice %135 {offsets = [0, 0], sizes = [1, 512], strides = [1, 1]} : vector<4x512xf32> to vector<1x512xf32>
    %138 = vector.shape_cast %137 : vector<1x512xf32> to vector<1x512xf32>
    %139 = vector.broadcast %138 : vector<1x512xf32> to vector<4x512xf32>
    %c0_51 = arith.constant 0 : index
    %c0_52 = arith.constant 0 : index
    %140 = vector.load %arg3[%c0_51, %c0_52] : memref<16x512xf32, #tpu.memory_space<vmem>>, vector<4x512xf32>
    tpu.vector_store %arg3[%c0_51, %c0_52], %139 {strides = array<i32>} : memref<16x512xf32, #tpu.memory_space<vmem>>, vector<4x512xf32>,
    %141 = vector.extract_strided_slice %135 {offsets = [1, 0], sizes = [1, 512], strides = [1, 1]} : vector<4x512xf32> to vector<1x512xf32>
    %142 = vector.shape_cast %141 : vector<1x512xf32> to vector<1x512xf32>
    %143 = vector.broadcast %142 : vector<1x512xf32> to vector<4x512xf32>
    %c4_53 = arith.constant 4 : index
    %c0_54 = arith.constant 0 : index
    %144 = vector.load %arg3[%c4_53, %c0_54] : memref<16x512xf32, #tpu.memory_space<vmem>>, vector<4x512xf32>
    tpu.vector_store %arg3[%c4_53, %c0_54], %143 {strides = array<i32>} : memref<16x512xf32, #tpu.memory_space<vmem>>, vector<4x512xf32>,
    %145 = vector.extract_strided_slice %135 {offsets = [2, 0], sizes = [1, 512], strides = [1, 1]} : vector<4x512xf32> to vector<1x512xf32>
    %146 = vector.shape_cast %145 : vector<1x512xf32> to vector<1x512xf32>
    %147 = vector.broadcast %146 : vector<1x512xf32> to vector<4x512xf32>
    %c8_55 = arith.constant 8 : index
    %c0_56 = arith.constant 0 : index
    %148 = vector.load %arg3[%c8_55, %c0_56] : memref<16x512xf32, #tpu.memory_space<vmem>>, vector<4x512xf32>
    tpu.vector_store %arg3[%c8_55, %c0_56], %147 {strides = array<i32>} : memref<16x512xf32, #tpu.memory_space<vmem>>, vector<4x512xf32>,
    %149 = vector.extract_strided_slice %135 {offsets = [3, 0], sizes = [1, 512], strides = [1, 1]} : vector<4x512xf32> to vector<1x512xf32>
    %150 = vector.shape_cast %149 : vector<1x512xf32> to vector<1x512xf32>
    %151 = vector.broadcast %150 : vector<1x512xf32> to vector<4x512xf32>
    %c12_57 = arith.constant 12 : index
    %c0_58 = arith.constant 0 : index
    %152 = vector.load %arg3[%c12_57, %c0_58] : memref<16x512xf32, #tpu.memory_space<vmem>>, vector<4x512xf32>
    tpu.vector_store %arg3[%c12_57, %c0_58], %151 {strides = array<i32>} : memref<16x512xf32, #tpu.memory_space<vmem>>, vector<4x512xf32>,
    %c0_59 = arith.constant 0 : index
    %c0_60 = arith.constant 0 : index
    %153 = vector.load %arg3[%c0_59, %c0_60] : memref<16x512xf32, #tpu.memory_space<vmem>>, vector<16x512xf32>
    %154 = arith.mulf %153, %49 : vector<16x512xf32>
    %cst_61 = arith.constant 0.636619746 : f32
    %155 = vector.broadcast %cst_61 : f32 to vector<16x512xf32>
    %156 = arith.mulf %154, %155 : vector<16x512xf32>
    %cst_62 = arith.constant 5.000000e-01 : f32
    %157 = vector.broadcast %cst_62 : f32 to vector<16x512xf32>
    %158 = arith.addf %156, %157 : vector<16x512xf32>
    %159 = math.floor %158 : vector<16x512xf32>
    %cst_63 = arith.constant 1.5703125 : f32
    %160 = vector.broadcast %cst_63 : f32 to vector<16x512xf32>
    %161 = arith.mulf %159, %160 : vector<16x512xf32>
    %162 = arith.subf %154, %161 : vector<16x512xf32>
    %cst_64 = arith.constant 4.83751297E-4 : f32
    %163 = vector.broadcast %cst_64 : f32 to vector<16x512xf32>
    %164 = arith.mulf %159, %163 : vector<16x512xf32>
    %165 = arith.subf %162, %164 : vector<16x512xf32>
    %cst_65 = arith.constant 7.549790e-08 : f32
    %166 = vector.broadcast %cst_65 : f32 to vector<16x512xf32>
    %167 = arith.mulf %159, %166 : vector<16x512xf32>
    %168 = arith.subf %165, %167 : vector<16x512xf32>
    %169 = arith.mulf %168, %168 : vector<16x512xf32>
    %170 = arith.mulf %168, %169 : vector<16x512xf32>
    %cst_66 = arith.constant -1.95152956E-4 : f32
    %171 = vector.broadcast %cst_66 : f32 to vector<16x512xf32>
    %172 = arith.mulf %169, %171 : vector<16x512xf32>
    %cst_67 = arith.constant 0.00833216123 : f32
    %173 = vector.broadcast %cst_67 : f32 to vector<16x512xf32>
    %174 = arith.addf %173, %172 : vector<16x512xf32>
    %175 = arith.mulf %169, %174 : vector<16x512xf32>
    %cst_68 = arith.constant -0.166666552 : f32
    %176 = vector.broadcast %cst_68 : f32 to vector<16x512xf32>
    %177 = arith.addf %176, %175 : vector<16x512xf32>
    %178 = arith.mulf %170, %177 : vector<16x512xf32>
    %179 = arith.addf %168, %178 : vector<16x512xf32>
    %cst_69 = arith.constant 2.44331568E-5 : f32
    %180 = vector.broadcast %cst_69 : f32 to vector<16x512xf32>
    %181 = arith.mulf %169, %180 : vector<16x512xf32>
    %cst_70 = arith.constant -0.00138873165 : f32
    %182 = vector.broadcast %cst_70 : f32 to vector<16x512xf32>
    %183 = arith.addf %182, %181 : vector<16x512xf32>
    %184 = arith.mulf %169, %183 : vector<16x512xf32>
    %cst_71 = arith.constant 0.0416666456 : f32
    %185 = vector.broadcast %cst_71 : f32 to vector<16x512xf32>
    %186 = arith.addf %185, %184 : vector<16x512xf32>
    %187 = arith.mulf %169, %186 : vector<16x512xf32>
    %cst_72 = arith.constant -5.000000e-01 : f32
    %188 = vector.broadcast %cst_72 : f32 to vector<16x512xf32>
    %189 = arith.addf %188, %187 : vector<16x512xf32>
    %190 = arith.mulf %169, %189 : vector<16x512xf32>
    %cst_73 = arith.constant 1.000000e+00 : f32
    %191 = vector.broadcast %cst_73 : f32 to vector<16x512xf32>
    %192 = arith.addf %191, %190 : vector<16x512xf32>
    %193 = arith.fptosi %159 : vector<16x512xf32> to vector<16x512xi32>
    %c1_i32_74 = arith.constant 1 : i32
    %194 = vector.broadcast %c1_i32_74 : i32 to vector<16x512xi32>
    %195 = arith.andi %193, %194 : vector<16x512xi32>
    %c1_i32_75 = arith.constant 1 : i32
    %196 = vector.broadcast %c1_i32_75 : i32 to vector<16x512xi32>
    %197 = arith.cmpi eq, %195, %196 : vector<16x512xi32>
    %c2_i32_76 = arith.constant 2 : i32
    %198 = vector.broadcast %c2_i32_76 : i32 to vector<16x512xi32>
    %199 = arith.andi %193, %198 : vector<16x512xi32>
    %c0_i32_77 = arith.constant 0 : i32
    %200 = vector.broadcast %c0_i32_77 : i32 to vector<16x512xi32>
    %201 = arith.cmpi eq, %199, %200 : vector<16x512xi32>
    %cst_78 = arith.constant 1.000000e+00 : f32
    %cst_79 = arith.constant -1.000000e+00 : f32
    %202 = vector.broadcast %cst_78 : f32 to vector<16x512xf32>
    %203 = vector.broadcast %cst_79 : f32 to vector<16x512xf32>
    %204 = arith.select %201, %202, %203 : vector<16x512xi1>, vector<16x512xf32>
    %c1_i32_80 = arith.constant 1 : i32
    %205 = vector.broadcast %c1_i32_80 : i32 to vector<16x512xi32>
    %206 = arith.addi %193, %205 : vector<16x512xi32>
    %c2_i32_81 = arith.constant 2 : i32
    %207 = vector.broadcast %c2_i32_81 : i32 to vector<16x512xi32>
    %208 = arith.andi %206, %207 : vector<16x512xi32>
    %c0_i32_82 = arith.constant 0 : i32
    %209 = vector.broadcast %c0_i32_82 : i32 to vector<16x512xi32>
    %210 = arith.cmpi eq, %208, %209 : vector<16x512xi32>
    %cst_83 = arith.constant 1.000000e+00 : f32
    %cst_84 = arith.constant -1.000000e+00 : f32
    %211 = vector.broadcast %cst_83 : f32 to vector<16x512xf32>
    %212 = vector.broadcast %cst_84 : f32 to vector<16x512xf32>
    %213 = arith.select %210, %211, %212 : vector<16x512xi1>, vector<16x512xf32>
    %214 = arith.select %197, %192, %179 : vector<16x512xi1>, vector<16x512xf32>
    %215 = arith.mulf %214, %204 : vector<16x512xf32>
    %216 = arith.select %197, %179, %192 : vector<16x512xi1>, vector<16x512xf32>
    %217 = arith.mulf %216, %213 : vector<16x512xf32>
    %c4_85 = arith.constant 4 : index
    %c512_86 = arith.constant 512 : index
    %218 = vector.load %arg2[%c4_85, %c512_86] : memref<36x4096xf32, #tpu.memory_space<vmem>>, vector<16x512xf32>
    tpu.vector_store %arg2[%c4_85, %c512_86], %215 {strides = array<i32>} : memref<36x4096xf32, #tpu.memory_space<vmem>>, vector<16x512xf32>,
    %c20_87 = arith.constant 20 : index
    %c512_88 = arith.constant 512 : index
    %219 = vector.load %arg2[%c20_87, %c512_88] : memref<36x4096xf32, #tpu.memory_space<vmem>>, vector<16x512xf32>
    tpu.vector_store %arg2[%c20_87, %c512_88], %217 {strides = array<i32>} : memref<36x4096xf32, #tpu.memory_space<vmem>>, vector<16x512xf32>,
    %c0_89 = arith.constant 0 : index
    %c1024 = arith.constant 1024 : index
    %220 = vector.load %arg1[%c0_89, %c1024] : memref<4x4096xf32, #tpu.memory_space<vmem>>, vector<4x512xf32>
    %c0_90 = arith.constant 0 : index
    %c1024_91 = arith.constant 1024 : index
    %221 = vector.load %arg2[%c0_90, %c1024_91] : memref<36x4096xf32, #tpu.memory_space<vmem>>, vector<4x512xf32>
    tpu.vector_store %arg2[%c0_90, %c1024_91], %220 {strides = array<i32>} : memref<36x4096xf32, #tpu.memory_space<vmem>>, vector<4x512xf32>,
    %222 = vector.extract_strided_slice %220 {offsets = [0, 0], sizes = [1, 512], strides = [1, 1]} : vector<4x512xf32> to vector<1x512xf32>
    %223 = vector.shape_cast %222 : vector<1x512xf32> to vector<1x512xf32>
    %224 = vector.broadcast %223 : vector<1x512xf32> to vector<4x512xf32>
    %c0_92 = arith.constant 0 : index
    %c0_93 = arith.constant 0 : index
    %225 = vector.load %arg3[%c0_92, %c0_93] : memref<16x512xf32, #tpu.memory_space<vmem>>, vector<4x512xf32>
    tpu.vector_store %arg3[%c0_92, %c0_93], %224 {strides = array<i32>} : memref<16x512xf32, #tpu.memory_space<vmem>>, vector<4x512xf32>,
    %226 = vector.extract_strided_slice %220 {offsets = [1, 0], sizes = [1, 512], strides = [1, 1]} : vector<4x512xf32> to vector<1x512xf32>
    %227 = vector.shape_cast %226 : vector<1x512xf32> to vector<1x512xf32>
    %228 = vector.broadcast %227 : vector<1x512xf32> to vector<4x512xf32>
    %c4_94 = arith.constant 4 : index
    %c0_95 = arith.constant 0 : index
    %229 = vector.load %arg3[%c4_94, %c0_95] : memref<16x512xf32, #tpu.memory_space<vmem>>, vector<4x512xf32>
    tpu.vector_store %arg3[%c4_94, %c0_95], %228 {strides = array<i32>} : memref<16x512xf32, #tpu.memory_space<vmem>>, vector<4x512xf32>,
    %230 = vector.extract_strided_slice %220 {offsets = [2, 0], sizes = [1, 512], strides = [1, 1]} : vector<4x512xf32> to vector<1x512xf32>
    %231 = vector.shape_cast %230 : vector<1x512xf32> to vector<1x512xf32>
    %232 = vector.broadcast %231 : vector<1x512xf32> to vector<4x512xf32>
    %c8_96 = arith.constant 8 : index
    %c0_97 = arith.constant 0 : index
    %233 = vector.load %arg3[%c8_96, %c0_97] : memref<16x512xf32, #tpu.memory_space<vmem>>, vector<4x512xf32>
    tpu.vector_store %arg3[%c8_96, %c0_97], %232 {strides = array<i32>} : memref<16x512xf32, #tpu.memory_space<vmem>>, vector<4x512xf32>,
    %234 = vector.extract_strided_slice %220 {offsets = [3, 0], sizes = [1, 512], strides = [1, 1]} : vector<4x512xf32> to vector<1x512xf32>
    %235 = vector.shape_cast %234 : vector<1x512xf32> to vector<1x512xf32>
    %236 = vector.broadcast %235 : vector<1x512xf32> to vector<4x512xf32>
    %c12_98 = arith.constant 12 : index
    %c0_99 = arith.constant 0 : index
    %237 = vector.load %arg3[%c12_98, %c0_99] : memref<16x512xf32, #tpu.memory_space<vmem>>, vector<4x512xf32>
    tpu.vector_store %arg3[%c12_98, %c0_99], %236 {strides = array<i32>} : memref<16x512xf32, #tpu.memory_space<vmem>>, vector<4x512xf32>,
    %c0_100 = arith.constant 0 : index
    %c0_101 = arith.constant 0 : index
    %238 = vector.load %arg3[%c0_100, %c0_101] : memref<16x512xf32, #tpu.memory_space<vmem>>, vector<16x512xf32>
    %239 = arith.mulf %238, %49 : vector<16x512xf32>
    %cst_102 = arith.constant 0.636619746 : f32
    %240 = vector.broadcast %cst_102 : f32 to vector<16x512xf32>
    %241 = arith.mulf %239, %240 : vector<16x512xf32>
    %cst_103 = arith.constant 5.000000e-01 : f32
    %242 = vector.broadcast %cst_103 : f32 to vector<16x512xf32>
    %243 = arith.addf %241, %242 : vector<16x512xf32>
    %244 = math.floor %243 : vector<16x512xf32>
    %cst_104 = arith.constant 1.5703125 : f32
    %245 = vector.broadcast %cst_104 : f32 to vector<16x512xf32>
    %246 = arith.mulf %244, %245 : vector<16x512xf32>
    %247 = arith.subf %239, %246 : vector<16x512xf32>
    %cst_105 = arith.constant 4.83751297E-4 : f32
    %248 = vector.broadcast %cst_105 : f32 to vector<16x512xf32>
    %249 = arith.mulf %244, %248 : vector<16x512xf32>
    %250 = arith.subf %247, %249 : vector<16x512xf32>
    %cst_106 = arith.constant 7.549790e-08 : f32
    %251 = vector.broadcast %cst_106 : f32 to vector<16x512xf32>
    %252 = arith.mulf %244, %251 : vector<16x512xf32>
    %253 = arith.subf %250, %252 : vector<16x512xf32>
    %254 = arith.mulf %253, %253 : vector<16x512xf32>
    %255 = arith.mulf %253, %254 : vector<16x512xf32>
    %cst_107 = arith.constant -1.95152956E-4 : f32
    %256 = vector.broadcast %cst_107 : f32 to vector<16x512xf32>
    %257 = arith.mulf %254, %256 : vector<16x512xf32>
    %cst_108 = arith.constant 0.00833216123 : f32
    %258 = vector.broadcast %cst_108 : f32 to vector<16x512xf32>
    %259 = arith.addf %258, %257 : vector<16x512xf32>
    %260 = arith.mulf %254, %259 : vector<16x512xf32>
    %cst_109 = arith.constant -0.166666552 : f32
    %261 = vector.broadcast %cst_109 : f32 to vector<16x512xf32>
    %262 = arith.addf %261, %260 : vector<16x512xf32>
    %263 = arith.mulf %255, %262 : vector<16x512xf32>
    %264 = arith.addf %253, %263 : vector<16x512xf32>
    %cst_110 = arith.constant 2.44331568E-5 : f32
    %265 = vector.broadcast %cst_110 : f32 to vector<16x512xf32>
    %266 = arith.mulf %254, %265 : vector<16x512xf32>
    %cst_111 = arith.constant -0.00138873165 : f32
    %267 = vector.broadcast %cst_111 : f32 to vector<16x512xf32>
    %268 = arith.addf %267, %266 : vector<16x512xf32>
    %269 = arith.mulf %254, %268 : vector<16x512xf32>
    %cst_112 = arith.constant 0.0416666456 : f32
    %270 = vector.broadcast %cst_112 : f32 to vector<16x512xf32>
    %271 = arith.addf %270, %269 : vector<16x512xf32>
    %272 = arith.mulf %254, %271 : vector<16x512xf32>
    %cst_113 = arith.constant -5.000000e-01 : f32
    %273 = vector.broadcast %cst_113 : f32 to vector<16x512xf32>
    %274 = arith.addf %273, %272 : vector<16x512xf32>
    %275 = arith.mulf %254, %274 : vector<16x512xf32>
    %cst_114 = arith.constant 1.000000e+00 : f32
    %276 = vector.broadcast %cst_114 : f32 to vector<16x512xf32>
    %277 = arith.addf %276, %275 : vector<16x512xf32>
    %278 = arith.fptosi %244 : vector<16x512xf32> to vector<16x512xi32>
    %c1_i32_115 = arith.constant 1 : i32
    %279 = vector.broadcast %c1_i32_115 : i32 to vector<16x512xi32>
    %280 = arith.andi %278, %279 : vector<16x512xi32>
    %c1_i32_116 = arith.constant 1 : i32
    %281 = vector.broadcast %c1_i32_116 : i32 to vector<16x512xi32>
    %282 = arith.cmpi eq, %280, %281 : vector<16x512xi32>
    %c2_i32_117 = arith.constant 2 : i32
    %283 = vector.broadcast %c2_i32_117 : i32 to vector<16x512xi32>
    %284 = arith.andi %278, %283 : vector<16x512xi32>
    %c0_i32_118 = arith.constant 0 : i32
    %285 = vector.broadcast %c0_i32_118 : i32 to vector<16x512xi32>
    %286 = arith.cmpi eq, %284, %285 : vector<16x512xi32>
    %cst_119 = arith.constant 1.000000e+00 : f32
    %cst_120 = arith.constant -1.000000e+00 : f32
    %287 = vector.broadcast %cst_119 : f32 to vector<16x512xf32>
    %288 = vector.broadcast %cst_120 : f32 to vector<16x512xf32>
    %289 = arith.select %286, %287, %288 : vector<16x512xi1>, vector<16x512xf32>
    %c1_i32_121 = arith.constant 1 : i32
    %290 = vector.broadcast %c1_i32_121 : i32 to vector<16x512xi32>
    %291 = arith.addi %278, %290 : vector<16x512xi32>
    %c2_i32_122 = arith.constant 2 : i32
    %292 = vector.broadcast %c2_i32_122 : i32 to vector<16x512xi32>
    %293 = arith.andi %291, %292 : vector<16x512xi32>
    %c0_i32_123 = arith.constant 0 : i32
    %294 = vector.broadcast %c0_i32_123 : i32 to vector<16x512xi32>
    %295 = arith.cmpi eq, %293, %294 : vector<16x512xi32>
    %cst_124 = arith.constant 1.000000e+00 : f32
    %cst_125 = arith.constant -1.000000e+00 : f32
    %296 = vector.broadcast %cst_124 : f32 to vector<16x512xf32>
    %297 = vector.broadcast %cst_125 : f32 to vector<16x512xf32>
    %298 = arith.select %295, %296, %297 : vector<16x512xi1>, vector<16x512xf32>
    %299 = arith.select %282, %277, %264 : vector<16x512xi1>, vector<16x512xf32>
    %300 = arith.mulf %299, %289 : vector<16x512xf32>
    %301 = arith.select %282, %264, %277 : vector<16x512xi1>, vector<16x512xf32>
    %302 = arith.mulf %301, %298 : vector<16x512xf32>
    %c4_126 = arith.constant 4 : index
    %c1024_127 = arith.constant 1024 : index
    %303 = vector.load %arg2[%c4_126, %c1024_127] : memref<36x4096xf32, #tpu.memory_space<vmem>>, vector<16x512xf32>
    tpu.vector_store %arg2[%c4_126, %c1024_127], %300 {strides = array<i32>} : memref<36x4096xf32, #tpu.memory_space<vmem>>, vector<16x512xf32>,
    %c20_128 = arith.constant 20 : index
    %c1024_129 = arith.constant 1024 : index
    %304 = vector.load %arg2[%c20_128, %c1024_129] : memref<36x4096xf32, #tpu.memory_space<vmem>>, vector<16x512xf32>
    tpu.vector_store %arg2[%c20_128, %c1024_129], %302 {strides = array<i32>} : memref<36x4096xf32, #tpu.memory_space<vmem>>, vector<16x512xf32>,
    %c0_130 = arith.constant 0 : index
    %c1536 = arith.constant 1536 : index
    %305 = vector.load %arg1[%c0_130, %c1536] : memref<4x4096xf32, #tpu.memory_space<vmem>>, vector<4x512xf32>
    %c0_131 = arith.constant 0 : index
    %c1536_132 = arith.constant 1536 : index
    %306 = vector.load %arg2[%c0_131, %c1536_132] : memref<36x4096xf32, #tpu.memory_space<vmem>>, vector<4x512xf32>
    tpu.vector_store %arg2[%c0_131, %c1536_132], %305 {strides = array<i32>} : memref<36x4096xf32, #tpu.memory_space<vmem>>, vector<4x512xf32>,
    %307 = vector.extract_strided_slice %305 {offsets = [0, 0], sizes = [1, 512], strides = [1, 1]} : vector<4x512xf32> to vector<1x512xf32>
    %308 = vector.shape_cast %307 : vector<1x512xf32> to vector<1x512xf32>
    %309 = vector.broadcast %308 : vector<1x512xf32> to vector<4x512xf32>
    %c0_133 = arith.constant 0 : index
    %c0_134 = arith.constant 0 : index
    %310 = vector.load %arg3[%c0_133, %c0_134] : memref<16x512xf32, #tpu.memory_space<vmem>>, vector<4x512xf32>
    tpu.vector_store %arg3[%c0_133, %c0_134], %309 {strides = array<i32>} : memref<16x512xf32, #tpu.memory_space<vmem>>, vector<4x512xf32>,
    %311 = vector.extract_strided_slice %305 {offsets = [1, 0], sizes = [1, 512], strides = [1, 1]} : vector<4x512xf32> to vector<1x512xf32>
    %312 = vector.shape_cast %311 : vector<1x512xf32> to vector<1x512xf32>
    %313 = vector.broadcast %312 : vector<1x512xf32> to vector<4x512xf32>
    %c4_135 = arith.constant 4 : index
    %c0_136 = arith.constant 0 : index
    %314 = vector.load %arg3[%c4_135, %c0_136] : memref<16x512xf32, #tpu.memory_space<vmem>>, vector<4x512xf32>
    tpu.vector_store %arg3[%c4_135, %c0_136], %313 {strides = array<i32>} : memref<16x512xf32, #tpu.memory_space<vmem>>, vector<4x512xf32>,
    %315 = vector.extract_strided_slice %305 {offsets = [2, 0], sizes = [1, 512], strides = [1, 1]} : vector<4x512xf32> to vector<1x512xf32>
    %316 = vector.shape_cast %315 : vector<1x512xf32> to vector<1x512xf32>
    %317 = vector.broadcast %316 : vector<1x512xf32> to vector<4x512xf32>
    %c8_137 = arith.constant 8 : index
    %c0_138 = arith.constant 0 : index
    %318 = vector.load %arg3[%c8_137, %c0_138] : memref<16x512xf32, #tpu.memory_space<vmem>>, vector<4x512xf32>
    tpu.vector_store %arg3[%c8_137, %c0_138], %317 {strides = array<i32>} : memref<16x512xf32, #tpu.memory_space<vmem>>, vector<4x512xf32>,
    %319 = vector.extract_strided_slice %305 {offsets = [3, 0], sizes = [1, 512], strides = [1, 1]} : vector<4x512xf32> to vector<1x512xf32>
    %320 = vector.shape_cast %319 : vector<1x512xf32> to vector<1x512xf32>
    %321 = vector.broadcast %320 : vector<1x512xf32> to vector<4x512xf32>
    %c12_139 = arith.constant 12 : index
    %c0_140 = arith.constant 0 : index
    %322 = vector.load %arg3[%c12_139, %c0_140] : memref<16x512xf32, #tpu.memory_space<vmem>>, vector<4x512xf32>
    tpu.vector_store %arg3[%c12_139, %c0_140], %321 {strides = array<i32>} : memref<16x512xf32, #tpu.memory_space<vmem>>, vector<4x512xf32>,
    %c0_141 = arith.constant 0 : index
    %c0_142 = arith.constant 0 : index
    %323 = vector.load %arg3[%c0_141, %c0_142] : memref<16x512xf32, #tpu.memory_space<vmem>>, vector<16x512xf32>
    %324 = arith.mulf %323, %49 : vector<16x512xf32>
    %cst_143 = arith.constant 0.636619746 : f32
    %325 = vector.broadcast %cst_143 : f32 to vector<16x512xf32>
    %326 = arith.mulf %324, %325 : vector<16x512xf32>
    %cst_144 = arith.constant 5.000000e-01 : f32
    %327 = vector.broadcast %cst_144 : f32 to vector<16x512xf32>
    %328 = arith.addf %326, %327 : vector<16x512xf32>
    %329 = math.floor %328 : vector<16x512xf32>
    %cst_145 = arith.constant 1.5703125 : f32
    %330 = vector.broadcast %cst_145 : f32 to vector<16x512xf32>
    %331 = arith.mulf %329, %330 : vector<16x512xf32>
    %332 = arith.subf %324, %331 : vector<16x512xf32>
    %cst_146 = arith.constant 4.83751297E-4 : f32
    %333 = vector.broadcast %cst_146 : f32 to vector<16x512xf32>
    %334 = arith.mulf %329, %333 : vector<16x512xf32>
    %335 = arith.subf %332, %334 : vector<16x512xf32>
    %cst_147 = arith.constant 7.549790e-08 : f32
    %336 = vector.broadcast %cst_147 : f32 to vector<16x512xf32>
    %337 = arith.mulf %329, %336 : vector<16x512xf32>
    %338 = arith.subf %335, %337 : vector<16x512xf32>
    %339 = arith.mulf %338, %338 : vector<16x512xf32>
    %340 = arith.mulf %338, %339 : vector<16x512xf32>
    %cst_148 = arith.constant -1.95152956E-4 : f32
    %341 = vector.broadcast %cst_148 : f32 to vector<16x512xf32>
    %342 = arith.mulf %339, %341 : vector<16x512xf32>
    %cst_149 = arith.constant 0.00833216123 : f32
    %343 = vector.broadcast %cst_149 : f32 to vector<16x512xf32>
    %344 = arith.addf %343, %342 : vector<16x512xf32>
    %345 = arith.mulf %339, %344 : vector<16x512xf32>
    %cst_150 = arith.constant -0.166666552 : f32
    %346 = vector.broadcast %cst_150 : f32 to vector<16x512xf32>
    %347 = arith.addf %346, %345 : vector<16x512xf32>
    %348 = arith.mulf %340, %347 : vector<16x512xf32>
    %349 = arith.addf %338, %348 : vector<16x512xf32>
    %cst_151 = arith.constant 2.44331568E-5 : f32
    %350 = vector.broadcast %cst_151 : f32 to vector<16x512xf32>
    %351 = arith.mulf %339, %350 : vector<16x512xf32>
    %cst_152 = arith.constant -0.00138873165 : f32
    %352 = vector.broadcast %cst_152 : f32 to vector<16x512xf32>
    %353 = arith.addf %352, %351 : vector<16x512xf32>
    %354 = arith.mulf %339, %353 : vector<16x512xf32>
    %cst_153 = arith.constant 0.0416666456 : f32
    %355 = vector.broadcast %cst_153 : f32 to vector<16x512xf32>
    %356 = arith.addf %355, %354 : vector<16x512xf32>
    %357 = arith.mulf %339, %356 : vector<16x512xf32>
    %cst_154 = arith.constant -5.000000e-01 : f32
    %358 = vector.broadcast %cst_154 : f32 to vector<16x512xf32>
    %359 = arith.addf %358, %357 : vector<16x512xf32>
    %360 = arith.mulf %339, %359 : vector<16x512xf32>
    %cst_155 = arith.constant 1.000000e+00 : f32
    %361 = vector.broadcast %cst_155 : f32 to vector<16x512xf32>
    %362 = arith.addf %361, %360 : vector<16x512xf32>
    %363 = arith.fptosi %329 : vector<16x512xf32> to vector<16x512xi32>
    %c1_i32_156 = arith.constant 1 : i32
    %364 = vector.broadcast %c1_i32_156 : i32 to vector<16x512xi32>
    %365 = arith.andi %363, %364 : vector<16x512xi32>
    %c1_i32_157 = arith.constant 1 : i32
    %366 = vector.broadcast %c1_i32_157 : i32 to vector<16x512xi32>
    %367 = arith.cmpi eq, %365, %366 : vector<16x512xi32>
    %c2_i32_158 = arith.constant 2 : i32
    %368 = vector.broadcast %c2_i32_158 : i32 to vector<16x512xi32>
    %369 = arith.andi %363, %368 : vector<16x512xi32>
    %c0_i32_159 = arith.constant 0 : i32
    %370 = vector.broadcast %c0_i32_159 : i32 to vector<16x512xi32>
    %371 = arith.cmpi eq, %369, %370 : vector<16x512xi32>
    %cst_160 = arith.constant 1.000000e+00 : f32
    %cst_161 = arith.constant -1.000000e+00 : f32
    %372 = vector.broadcast %cst_160 : f32 to vector<16x512xf32>
    %373 = vector.broadcast %cst_161 : f32 to vector<16x512xf32>
    %374 = arith.select %371, %372, %373 : vector<16x512xi1>, vector<16x512xf32>
    %c1_i32_162 = arith.constant 1 : i32
    %375 = vector.broadcast %c1_i32_162 : i32 to vector<16x512xi32>
    %376 = arith.addi %363, %375 : vector<16x512xi32>
    %c2_i32_163 = arith.constant 2 : i32
    %377 = vector.broadcast %c2_i32_163 : i32 to vector<16x512xi32>
    %378 = arith.andi %376, %377 : vector<16x512xi32>
    %c0_i32_164 = arith.constant 0 : i32
    %379 = vector.broadcast %c0_i32_164 : i32 to vector<16x512xi32>
    %380 = arith.cmpi eq, %378, %379 : vector<16x512xi32>
    %cst_165 = arith.constant 1.000000e+00 : f32
    %cst_166 = arith.constant -1.000000e+00 : f32
    %381 = vector.broadcast %cst_165 : f32 to vector<16x512xf32>
    %382 = vector.broadcast %cst_166 : f32 to vector<16x512xf32>
    %383 = arith.select %380, %381, %382 : vector<16x512xi1>, vector<16x512xf32>
    %384 = arith.select %367, %362, %349 : vector<16x512xi1>, vector<16x512xf32>
    %385 = arith.mulf %384, %374 : vector<16x512xf32>
    %386 = arith.select %367, %349, %362 : vector<16x512xi1>, vector<16x512xf32>
    %387 = arith.mulf %386, %383 : vector<16x512xf32>
    %c4_167 = arith.constant 4 : index
    %c1536_168 = arith.constant 1536 : index
    %388 = vector.load %arg2[%c4_167, %c1536_168] : memref<36x4096xf32, #tpu.memory_space<vmem>>, vector<16x512xf32>
    tpu.vector_store %arg2[%c4_167, %c1536_168], %385 {strides = array<i32>} : memref<36x4096xf32, #tpu.memory_space<vmem>>, vector<16x512xf32>,
    %c20_169 = arith.constant 20 : index
    %c1536_170 = arith.constant 1536 : index
    %389 = vector.load %arg2[%c20_169, %c1536_170] : memref<36x4096xf32, #tpu.memory_space<vmem>>, vector<16x512xf32>
    tpu.vector_store %arg2[%c20_169, %c1536_170], %387 {strides = array<i32>} : memref<36x4096xf32, #tpu.memory_space<vmem>>, vector<16x512xf32>,
    %c0_171 = arith.constant 0 : index
    %c2048 = arith.constant 2048 : index
    %390 = vector.load %arg1[%c0_171, %c2048] : memref<4x4096xf32, #tpu.memory_space<vmem>>, vector<4x512xf32>
    %c0_172 = arith.constant 0 : index
    %c2048_173 = arith.constant 2048 : index
    %391 = vector.load %arg2[%c0_172, %c2048_173] : memref<36x4096xf32, #tpu.memory_space<vmem>>, vector<4x512xf32>
    tpu.vector_store %arg2[%c0_172, %c2048_173], %390 {strides = array<i32>} : memref<36x4096xf32, #tpu.memory_space<vmem>>, vector<4x512xf32>,
    %392 = vector.extract_strided_slice %390 {offsets = [0, 0], sizes = [1, 512], strides = [1, 1]} : vector<4x512xf32> to vector<1x512xf32>
    %393 = vector.shape_cast %392 : vector<1x512xf32> to vector<1x512xf32>
    %394 = vector.broadcast %393 : vector<1x512xf32> to vector<4x512xf32>
    %c0_174 = arith.constant 0 : index
    %c0_175 = arith.constant 0 : index
    %395 = vector.load %arg3[%c0_174, %c0_175] : memref<16x512xf32, #tpu.memory_space<vmem>>, vector<4x512xf32>
    tpu.vector_store %arg3[%c0_174, %c0_175], %394 {strides = array<i32>} : memref<16x512xf32, #tpu.memory_space<vmem>>, vector<4x512xf32>,
    %396 = vector.extract_strided_slice %390 {offsets = [1, 0], sizes = [1, 512], strides = [1, 1]} : vector<4x512xf32> to vector<1x512xf32>
    %397 = vector.shape_cast %396 : vector<1x512xf32> to vector<1x512xf32>
    %398 = vector.broadcast %397 : vector<1x512xf32> to vector<4x512xf32>
    %c4_176 = arith.constant 4 : index
    %c0_177 = arith.constant 0 : index
    %399 = vector.load %arg3[%c4_176, %c0_177] : memref<16x512xf32, #tpu.memory_space<vmem>>, vector<4x512xf32>
    tpu.vector_store %arg3[%c4_176, %c0_177], %398 {strides = array<i32>} : memref<16x512xf32, #tpu.memory_space<vmem>>, vector<4x512xf32>,
    %400 = vector.extract_strided_slice %390 {offsets = [2, 0], sizes = [1, 512], strides = [1, 1]} : vector<4x512xf32> to vector<1x512xf32>
    %401 = vector.shape_cast %400 : vector<1x512xf32> to vector<1x512xf32>
    %402 = vector.broadcast %401 : vector<1x512xf32> to vector<4x512xf32>
    %c8_178 = arith.constant 8 : index
    %c0_179 = arith.constant 0 : index
    %403 = vector.load %arg3[%c8_178, %c0_179] : memref<16x512xf32, #tpu.memory_space<vmem>>, vector<4x512xf32>
    tpu.vector_store %arg3[%c8_178, %c0_179], %402 {strides = array<i32>} : memref<16x512xf32, #tpu.memory_space<vmem>>, vector<4x512xf32>,
    %404 = vector.extract_strided_slice %390 {offsets = [3, 0], sizes = [1, 512], strides = [1, 1]} : vector<4x512xf32> to vector<1x512xf32>
    %405 = vector.shape_cast %404 : vector<1x512xf32> to vector<1x512xf32>
    %406 = vector.broadcast %405 : vector<1x512xf32> to vector<4x512xf32>
    %c12_180 = arith.constant 12 : index
    %c0_181 = arith.constant 0 : index
    %407 = vector.load %arg3[%c12_180, %c0_181] : memref<16x512xf32, #tpu.memory_space<vmem>>, vector<4x512xf32>
    tpu.vector_store %arg3[%c12_180, %c0_181], %406 {strides = array<i32>} : memref<16x512xf32, #tpu.memory_space<vmem>>, vector<4x512xf32>,
    %c0_182 = arith.constant 0 : index
    %c0_183 = arith.constant 0 : index
    %408 = vector.load %arg3[%c0_182, %c0_183] : memref<16x512xf32, #tpu.memory_space<vmem>>, vector<16x512xf32>
    %409 = arith.mulf %408, %49 : vector<16x512xf32>
    %cst_184 = arith.constant 0.636619746 : f32
    %410 = vector.broadcast %cst_184 : f32 to vector<16x512xf32>
    %411 = arith.mulf %409, %410 : vector<16x512xf32>
    %cst_185 = arith.constant 5.000000e-01 : f32
    %412 = vector.broadcast %cst_185 : f32 to vector<16x512xf32>
    %413 = arith.addf %411, %412 : vector<16x512xf32>
    %414 = math.floor %413 : vector<16x512xf32>
    %cst_186 = arith.constant 1.5703125 : f32
    %415 = vector.broadcast %cst_186 : f32 to vector<16x512xf32>
    %416 = arith.mulf %414, %415 : vector<16x512xf32>
    %417 = arith.subf %409, %416 : vector<16x512xf32>
    %cst_187 = arith.constant 4.83751297E-4 : f32
    %418 = vector.broadcast %cst_187 : f32 to vector<16x512xf32>
    %419 = arith.mulf %414, %418 : vector<16x512xf32>
    %420 = arith.subf %417, %419 : vector<16x512xf32>
    %cst_188 = arith.constant 7.549790e-08 : f32
    %421 = vector.broadcast %cst_188 : f32 to vector<16x512xf32>
    %422 = arith.mulf %414, %421 : vector<16x512xf32>
    %423 = arith.subf %420, %422 : vector<16x512xf32>
    %424 = arith.mulf %423, %423 : vector<16x512xf32>
    %425 = arith.mulf %423, %424 : vector<16x512xf32>
    %cst_189 = arith.constant -1.95152956E-4 : f32
    %426 = vector.broadcast %cst_189 : f32 to vector<16x512xf32>
    %427 = arith.mulf %424, %426 : vector<16x512xf32>
    %cst_190 = arith.constant 0.00833216123 : f32
    %428 = vector.broadcast %cst_190 : f32 to vector<16x512xf32>
    %429 = arith.addf %428, %427 : vector<16x512xf32>
    %430 = arith.mulf %424, %429 : vector<16x512xf32>
    %cst_191 = arith.constant -0.166666552 : f32
    %431 = vector.broadcast %cst_191 : f32 to vector<16x512xf32>
    %432 = arith.addf %431, %430 : vector<16x512xf32>
    %433 = arith.mulf %425, %432 : vector<16x512xf32>
    %434 = arith.addf %423, %433 : vector<16x512xf32>
    %cst_192 = arith.constant 2.44331568E-5 : f32
    %435 = vector.broadcast %cst_192 : f32 to vector<16x512xf32>
    %436 = arith.mulf %424, %435 : vector<16x512xf32>
    %cst_193 = arith.constant -0.00138873165 : f32
    %437 = vector.broadcast %cst_193 : f32 to vector<16x512xf32>
    %438 = arith.addf %437, %436 : vector<16x512xf32>
    %439 = arith.mulf %424, %438 : vector<16x512xf32>
    %cst_194 = arith.constant 0.0416666456 : f32
    %440 = vector.broadcast %cst_194 : f32 to vector<16x512xf32>
    %441 = arith.addf %440, %439 : vector<16x512xf32>
    %442 = arith.mulf %424, %441 : vector<16x512xf32>
    %cst_195 = arith.constant -5.000000e-01 : f32
    %443 = vector.broadcast %cst_195 : f32 to vector<16x512xf32>
    %444 = arith.addf %443, %442 : vector<16x512xf32>
    %445 = arith.mulf %424, %444 : vector<16x512xf32>
    %cst_196 = arith.constant 1.000000e+00 : f32
    %446 = vector.broadcast %cst_196 : f32 to vector<16x512xf32>
    %447 = arith.addf %446, %445 : vector<16x512xf32>
    %448 = arith.fptosi %414 : vector<16x512xf32> to vector<16x512xi32>
    %c1_i32_197 = arith.constant 1 : i32
    %449 = vector.broadcast %c1_i32_197 : i32 to vector<16x512xi32>
    %450 = arith.andi %448, %449 : vector<16x512xi32>
    %c1_i32_198 = arith.constant 1 : i32
    %451 = vector.broadcast %c1_i32_198 : i32 to vector<16x512xi32>
    %452 = arith.cmpi eq, %450, %451 : vector<16x512xi32>
    %c2_i32_199 = arith.constant 2 : i32
    %453 = vector.broadcast %c2_i32_199 : i32 to vector<16x512xi32>
    %454 = arith.andi %448, %453 : vector<16x512xi32>
    %c0_i32_200 = arith.constant 0 : i32
    %455 = vector.broadcast %c0_i32_200 : i32 to vector<16x512xi32>
    %456 = arith.cmpi eq, %454, %455 : vector<16x512xi32>
    %cst_201 = arith.constant 1.000000e+00 : f32
    %cst_202 = arith.constant -1.000000e+00 : f32
    %457 = vector.broadcast %cst_201 : f32 to vector<16x512xf32>
    %458 = vector.broadcast %cst_202 : f32 to vector<16x512xf32>
    %459 = arith.select %456, %457, %458 : vector<16x512xi1>, vector<16x512xf32>
    %c1_i32_203 = arith.constant 1 : i32
    %460 = vector.broadcast %c1_i32_203 : i32 to vector<16x512xi32>
    %461 = arith.addi %448, %460 : vector<16x512xi32>
    %c2_i32_204 = arith.constant 2 : i32
    %462 = vector.broadcast %c2_i32_204 : i32 to vector<16x512xi32>
    %463 = arith.andi %461, %462 : vector<16x512xi32>
    %c0_i32_205 = arith.constant 0 : i32
    %464 = vector.broadcast %c0_i32_205 : i32 to vector<16x512xi32>
    %465 = arith.cmpi eq, %463, %464 : vector<16x512xi32>
    %cst_206 = arith.constant 1.000000e+00 : f32
    %cst_207 = arith.constant -1.000000e+00 : f32
    %466 = vector.broadcast %cst_206 : f32 to vector<16x512xf32>
    %467 = vector.broadcast %cst_207 : f32 to vector<16x512xf32>
    %468 = arith.select %465, %466, %467 : vector<16x512xi1>, vector<16x512xf32>
    %469 = arith.select %452, %447, %434 : vector<16x512xi1>, vector<16x512xf32>
    %470 = arith.mulf %469, %459 : vector<16x512xf32>
    %471 = arith.select %452, %434, %447 : vector<16x512xi1>, vector<16x512xf32>
    %472 = arith.mulf %471, %468 : vector<16x512xf32>
    %c4_208 = arith.constant 4 : index
    %c2048_209 = arith.constant 2048 : index
    %473 = vector.load %arg2[%c4_208, %c2048_209] : memref<36x4096xf32, #tpu.memory_space<vmem>>, vector<16x512xf32>
    tpu.vector_store %arg2[%c4_208, %c2048_209], %470 {strides = array<i32>} : memref<36x4096xf32, #tpu.memory_space<vmem>>, vector<16x512xf32>,
    %c20_210 = arith.constant 20 : index
    %c2048_211 = arith.constant 2048 : index
    %474 = vector.load %arg2[%c20_210, %c2048_211] : memref<36x4096xf32, #tpu.memory_space<vmem>>, vector<16x512xf32>
    tpu.vector_store %arg2[%c20_210, %c2048_211], %472 {strides = array<i32>} : memref<36x4096xf32, #tpu.memory_space<vmem>>, vector<16x512xf32>,
    %c0_212 = arith.constant 0 : index
    %c2560 = arith.constant 2560 : index
    %475 = vector.load %arg1[%c0_212, %c2560] : memref<4x4096xf32, #tpu.memory_space<vmem>>, vector<4x512xf32>
    %c0_213 = arith.constant 0 : index
    %c2560_214 = arith.constant 2560 : index
    %476 = vector.load %arg2[%c0_213, %c2560_214] : memref<36x4096xf32, #tpu.memory_space<vmem>>, vector<4x512xf32>
    tpu.vector_store %arg2[%c0_213, %c2560_214], %475 {strides = array<i32>} : memref<36x4096xf32, #tpu.memory_space<vmem>>, vector<4x512xf32>,
    %477 = vector.extract_strided_slice %475 {offsets = [0, 0], sizes = [1, 512], strides = [1, 1]} : vector<4x512xf32> to vector<1x512xf32>
    %478 = vector.shape_cast %477 : vector<1x512xf32> to vector<1x512xf32>
    %479 = vector.broadcast %478 : vector<1x512xf32> to vector<4x512xf32>
    %c0_215 = arith.constant 0 : index
    %c0_216 = arith.constant 0 : index
    %480 = vector.load %arg3[%c0_215, %c0_216] : memref<16x512xf32, #tpu.memory_space<vmem>>, vector<4x512xf32>
    tpu.vector_store %arg3[%c0_215, %c0_216], %479 {strides = array<i32>} : memref<16x512xf32, #tpu.memory_space<vmem>>, vector<4x512xf32>,
    %481 = vector.extract_strided_slice %475 {offsets = [1, 0], sizes = [1, 512], strides = [1, 1]} : vector<4x512xf32> to vector<1x512xf32>
    %482 = vector.shape_cast %481 : vector<1x512xf32> to vector<1x512xf32>
    %483 = vector.broadcast %482 : vector<1x512xf32> to vector<4x512xf32>
    %c4_217 = arith.constant 4 : index
    %c0_218 = arith.constant 0 : index
    %484 = vector.load %arg3[%c4_217, %c0_218] : memref<16x512xf32, #tpu.memory_space<vmem>>, vector<4x512xf32>
    tpu.vector_store %arg3[%c4_217, %c0_218], %483 {strides = array<i32>} : memref<16x512xf32, #tpu.memory_space<vmem>>, vector<4x512xf32>,
    %485 = vector.extract_strided_slice %475 {offsets = [2, 0], sizes = [1, 512], strides = [1, 1]} : vector<4x512xf32> to vector<1x512xf32>
    %486 = vector.shape_cast %485 : vector<1x512xf32> to vector<1x512xf32>
    %487 = vector.broadcast %486 : vector<1x512xf32> to vector<4x512xf32>
    %c8_219 = arith.constant 8 : index
    %c0_220 = arith.constant 0 : index
    %488 = vector.load %arg3[%c8_219, %c0_220] : memref<16x512xf32, #tpu.memory_space<vmem>>, vector<4x512xf32>
    tpu.vector_store %arg3[%c8_219, %c0_220], %487 {strides = array<i32>} : memref<16x512xf32, #tpu.memory_space<vmem>>, vector<4x512xf32>,
    %489 = vector.extract_strided_slice %475 {offsets = [3, 0], sizes = [1, 512], strides = [1, 1]} : vector<4x512xf32> to vector<1x512xf32>
    %490 = vector.shape_cast %489 : vector<1x512xf32> to vector<1x512xf32>
    %491 = vector.broadcast %490 : vector<1x512xf32> to vector<4x512xf32>
    %c12_221 = arith.constant 12 : index
    %c0_222 = arith.constant 0 : index
    %492 = vector.load %arg3[%c12_221, %c0_222] : memref<16x512xf32, #tpu.memory_space<vmem>>, vector<4x512xf32>
    tpu.vector_store %arg3[%c12_221, %c0_222], %491 {strides = array<i32>} : memref<16x512xf32, #tpu.memory_space<vmem>>, vector<4x512xf32>,
    %c0_223 = arith.constant 0 : index
    %c0_224 = arith.constant 0 : index
    %493 = vector.load %arg3[%c0_223, %c0_224] : memref<16x512xf32, #tpu.memory_space<vmem>>, vector<16x512xf32>
    %494 = arith.mulf %493, %49 : vector<16x512xf32>
    %cst_225 = arith.constant 0.636619746 : f32
    %495 = vector.broadcast %cst_225 : f32 to vector<16x512xf32>
    %496 = arith.mulf %494, %495 : vector<16x512xf32>
    %cst_226 = arith.constant 5.000000e-01 : f32
    %497 = vector.broadcast %cst_226 : f32 to vector<16x512xf32>
    %498 = arith.addf %496, %497 : vector<16x512xf32>
    %499 = math.floor %498 : vector<16x512xf32>
    %cst_227 = arith.constant 1.5703125 : f32
    %500 = vector.broadcast %cst_227 : f32 to vector<16x512xf32>
    %501 = arith.mulf %499, %500 : vector<16x512xf32>
    %502 = arith.subf %494, %501 : vector<16x512xf32>
    %cst_228 = arith.constant 4.83751297E-4 : f32
    %503 = vector.broadcast %cst_228 : f32 to vector<16x512xf32>
    %504 = arith.mulf %499, %503 : vector<16x512xf32>
    %505 = arith.subf %502, %504 : vector<16x512xf32>
    %cst_229 = arith.constant 7.549790e-08 : f32
    %506 = vector.broadcast %cst_229 : f32 to vector<16x512xf32>
    %507 = arith.mulf %499, %506 : vector<16x512xf32>
    %508 = arith.subf %505, %507 : vector<16x512xf32>
    %509 = arith.mulf %508, %508 : vector<16x512xf32>
    %510 = arith.mulf %508, %509 : vector<16x512xf32>
    %cst_230 = arith.constant -1.95152956E-4 : f32
    %511 = vector.broadcast %cst_230 : f32 to vector<16x512xf32>
    %512 = arith.mulf %509, %511 : vector<16x512xf32>
    %cst_231 = arith.constant 0.00833216123 : f32
    %513 = vector.broadcast %cst_231 : f32 to vector<16x512xf32>
    %514 = arith.addf %513, %512 : vector<16x512xf32>
    %515 = arith.mulf %509, %514 : vector<16x512xf32>
    %cst_232 = arith.constant -0.166666552 : f32
    %516 = vector.broadcast %cst_232 : f32 to vector<16x512xf32>
    %517 = arith.addf %516, %515 : vector<16x512xf32>
    %518 = arith.mulf %510, %517 : vector<16x512xf32>
    %519 = arith.addf %508, %518 : vector<16x512xf32>
    %cst_233 = arith.constant 2.44331568E-5 : f32
    %520 = vector.broadcast %cst_233 : f32 to vector<16x512xf32>
    %521 = arith.mulf %509, %520 : vector<16x512xf32>
    %cst_234 = arith.constant -0.00138873165 : f32
    %522 = vector.broadcast %cst_234 : f32 to vector<16x512xf32>
    %523 = arith.addf %522, %521 : vector<16x512xf32>
    %524 = arith.mulf %509, %523 : vector<16x512xf32>
    %cst_235 = arith.constant 0.0416666456 : f32
    %525 = vector.broadcast %cst_235 : f32 to vector<16x512xf32>
    %526 = arith.addf %525, %524 : vector<16x512xf32>
    %527 = arith.mulf %509, %526 : vector<16x512xf32>
    %cst_236 = arith.constant -5.000000e-01 : f32
    %528 = vector.broadcast %cst_236 : f32 to vector<16x512xf32>
    %529 = arith.addf %528, %527 : vector<16x512xf32>
    %530 = arith.mulf %509, %529 : vector<16x512xf32>
    %cst_237 = arith.constant 1.000000e+00 : f32
    %531 = vector.broadcast %cst_237 : f32 to vector<16x512xf32>
    %532 = arith.addf %531, %530 : vector<16x512xf32>
    %533 = arith.fptosi %499 : vector<16x512xf32> to vector<16x512xi32>
    %c1_i32_238 = arith.constant 1 : i32
    %534 = vector.broadcast %c1_i32_238 : i32 to vector<16x512xi32>
    %535 = arith.andi %533, %534 : vector<16x512xi32>
    %c1_i32_239 = arith.constant 1 : i32
    %536 = vector.broadcast %c1_i32_239 : i32 to vector<16x512xi32>
    %537 = arith.cmpi eq, %535, %536 : vector<16x512xi32>
    %c2_i32_240 = arith.constant 2 : i32
    %538 = vector.broadcast %c2_i32_240 : i32 to vector<16x512xi32>
    %539 = arith.andi %533, %538 : vector<16x512xi32>
    %c0_i32_241 = arith.constant 0 : i32
    %540 = vector.broadcast %c0_i32_241 : i32 to vector<16x512xi32>
    %541 = arith.cmpi eq, %539, %540 : vector<16x512xi32>
    %cst_242 = arith.constant 1.000000e+00 : f32
    %cst_243 = arith.constant -1.000000e+00 : f32
    %542 = vector.broadcast %cst_242 : f32 to vector<16x512xf32>
    %543 = vector.broadcast %cst_243 : f32 to vector<16x512xf32>
    %544 = arith.select %541, %542, %543 : vector<16x512xi1>, vector<16x512xf32>
    %c1_i32_244 = arith.constant 1 : i32
    %545 = vector.broadcast %c1_i32_244 : i32 to vector<16x512xi32>
    %546 = arith.addi %533, %545 : vector<16x512xi32>
    %c2_i32_245 = arith.constant 2 : i32
    %547 = vector.broadcast %c2_i32_245 : i32 to vector<16x512xi32>
    %548 = arith.andi %546, %547 : vector<16x512xi32>
    %c0_i32_246 = arith.constant 0 : i32
    %549 = vector.broadcast %c0_i32_246 : i32 to vector<16x512xi32>
    %550 = arith.cmpi eq, %548, %549 : vector<16x512xi32>
    %cst_247 = arith.constant 1.000000e+00 : f32
    %cst_248 = arith.constant -1.000000e+00 : f32
    %551 = vector.broadcast %cst_247 : f32 to vector<16x512xf32>
    %552 = vector.broadcast %cst_248 : f32 to vector<16x512xf32>
    %553 = arith.select %550, %551, %552 : vector<16x512xi1>, vector<16x512xf32>
    %554 = arith.select %537, %532, %519 : vector<16x512xi1>, vector<16x512xf32>
    %555 = arith.mulf %554, %544 : vector<16x512xf32>
    %556 = arith.select %537, %519, %532 : vector<16x512xi1>, vector<16x512xf32>
    %557 = arith.mulf %556, %553 : vector<16x512xf32>
    %c4_249 = arith.constant 4 : index
    %c2560_250 = arith.constant 2560 : index
    %558 = vector.load %arg2[%c4_249, %c2560_250] : memref<36x4096xf32, #tpu.memory_space<vmem>>, vector<16x512xf32>
    tpu.vector_store %arg2[%c4_249, %c2560_250], %555 {strides = array<i32>} : memref<36x4096xf32, #tpu.memory_space<vmem>>, vector<16x512xf32>,
    %c20_251 = arith.constant 20 : index
    %c2560_252 = arith.constant 2560 : index
    %559 = vector.load %arg2[%c20_251, %c2560_252] : memref<36x4096xf32, #tpu.memory_space<vmem>>, vector<16x512xf32>
    tpu.vector_store %arg2[%c20_251, %c2560_252], %557 {strides = array<i32>} : memref<36x4096xf32, #tpu.memory_space<vmem>>, vector<16x512xf32>,
    %c0_253 = arith.constant 0 : index
    %c3072 = arith.constant 3072 : index
    %560 = vector.load %arg1[%c0_253, %c3072] : memref<4x4096xf32, #tpu.memory_space<vmem>>, vector<4x512xf32>
    %c0_254 = arith.constant 0 : index
    %c3072_255 = arith.constant 3072 : index
    %561 = vector.load %arg2[%c0_254, %c3072_255] : memref<36x4096xf32, #tpu.memory_space<vmem>>, vector<4x512xf32>
    tpu.vector_store %arg2[%c0_254, %c3072_255], %560 {strides = array<i32>} : memref<36x4096xf32, #tpu.memory_space<vmem>>, vector<4x512xf32>,
    %562 = vector.extract_strided_slice %560 {offsets = [0, 0], sizes = [1, 512], strides = [1, 1]} : vector<4x512xf32> to vector<1x512xf32>
    %563 = vector.shape_cast %562 : vector<1x512xf32> to vector<1x512xf32>
    %564 = vector.broadcast %563 : vector<1x512xf32> to vector<4x512xf32>
    %c0_256 = arith.constant 0 : index
    %c0_257 = arith.constant 0 : index
    %565 = vector.load %arg3[%c0_256, %c0_257] : memref<16x512xf32, #tpu.memory_space<vmem>>, vector<4x512xf32>
    tpu.vector_store %arg3[%c0_256, %c0_257], %564 {strides = array<i32>} : memref<16x512xf32, #tpu.memory_space<vmem>>, vector<4x512xf32>,
    %566 = vector.extract_strided_slice %560 {offsets = [1, 0], sizes = [1, 512], strides = [1, 1]} : vector<4x512xf32> to vector<1x512xf32>
    %567 = vector.shape_cast %566 : vector<1x512xf32> to vector<1x512xf32>
    %568 = vector.broadcast %567 : vector<1x512xf32> to vector<4x512xf32>
    %c4_258 = arith.constant 4 : index
    %c0_259 = arith.constant 0 : index
    %569 = vector.load %arg3[%c4_258, %c0_259] : memref<16x512xf32, #tpu.memory_space<vmem>>, vector<4x512xf32>
    tpu.vector_store %arg3[%c4_258, %c0_259], %568 {strides = array<i32>} : memref<16x512xf32, #tpu.memory_space<vmem>>, vector<4x512xf32>,
    %570 = vector.extract_strided_slice %560 {offsets = [2, 0], sizes = [1, 512], strides = [1, 1]} : vector<4x512xf32> to vector<1x512xf32>
    %571 = vector.shape_cast %570 : vector<1x512xf32> to vector<1x512xf32>
    %572 = vector.broadcast %571 : vector<1x512xf32> to vector<4x512xf32>
    %c8_260 = arith.constant 8 : index
    %c0_261 = arith.constant 0 : index
    %573 = vector.load %arg3[%c8_260, %c0_261] : memref<16x512xf32, #tpu.memory_space<vmem>>, vector<4x512xf32>
    tpu.vector_store %arg3[%c8_260, %c0_261], %572 {strides = array<i32>} : memref<16x512xf32, #tpu.memory_space<vmem>>, vector<4x512xf32>,
    %574 = vector.extract_strided_slice %560 {offsets = [3, 0], sizes = [1, 512], strides = [1, 1]} : vector<4x512xf32> to vector<1x512xf32>
    %575 = vector.shape_cast %574 : vector<1x512xf32> to vector<1x512xf32>
    %576 = vector.broadcast %575 : vector<1x512xf32> to vector<4x512xf32>
    %c12_262 = arith.constant 12 : index
    %c0_263 = arith.constant 0 : index
    %577 = vector.load %arg3[%c12_262, %c0_263] : memref<16x512xf32, #tpu.memory_space<vmem>>, vector<4x512xf32>
    tpu.vector_store %arg3[%c12_262, %c0_263], %576 {strides = array<i32>} : memref<16x512xf32, #tpu.memory_space<vmem>>, vector<4x512xf32>,
    %c0_264 = arith.constant 0 : index
    %c0_265 = arith.constant 0 : index
    %578 = vector.load %arg3[%c0_264, %c0_265] : memref<16x512xf32, #tpu.memory_space<vmem>>, vector<16x512xf32>
    %579 = arith.mulf %578, %49 : vector<16x512xf32>
    %cst_266 = arith.constant 0.636619746 : f32
    %580 = vector.broadcast %cst_266 : f32 to vector<16x512xf32>
    %581 = arith.mulf %579, %580 : vector<16x512xf32>
    %cst_267 = arith.constant 5.000000e-01 : f32
    %582 = vector.broadcast %cst_267 : f32 to vector<16x512xf32>
    %583 = arith.addf %581, %582 : vector<16x512xf32>
    %584 = math.floor %583 : vector<16x512xf32>
    %cst_268 = arith.constant 1.5703125 : f32
    %585 = vector.broadcast %cst_268 : f32 to vector<16x512xf32>
    %586 = arith.mulf %584, %585 : vector<16x512xf32>
    %587 = arith.subf %579, %586 : vector<16x512xf32>
    %cst_269 = arith.constant 4.83751297E-4 : f32
    %588 = vector.broadcast %cst_269 : f32 to vector<16x512xf32>
    %589 = arith.mulf %584, %588 : vector<16x512xf32>
    %590 = arith.subf %587, %589 : vector<16x512xf32>
    %cst_270 = arith.constant 7.549790e-08 : f32
    %591 = vector.broadcast %cst_270 : f32 to vector<16x512xf32>
    %592 = arith.mulf %584, %591 : vector<16x512xf32>
    %593 = arith.subf %590, %592 : vector<16x512xf32>
    %594 = arith.mulf %593, %593 : vector<16x512xf32>
    %595 = arith.mulf %593, %594 : vector<16x512xf32>
    %cst_271 = arith.constant -1.95152956E-4 : f32
    %596 = vector.broadcast %cst_271 : f32 to vector<16x512xf32>
    %597 = arith.mulf %594, %596 : vector<16x512xf32>
    %cst_272 = arith.constant 0.00833216123 : f32
    %598 = vector.broadcast %cst_272 : f32 to vector<16x512xf32>
    %599 = arith.addf %598, %597 : vector<16x512xf32>
    %600 = arith.mulf %594, %599 : vector<16x512xf32>
    %cst_273 = arith.constant -0.166666552 : f32
    %601 = vector.broadcast %cst_273 : f32 to vector<16x512xf32>
    %602 = arith.addf %601, %600 : vector<16x512xf32>
    %603 = arith.mulf %595, %602 : vector<16x512xf32>
    %604 = arith.addf %593, %603 : vector<16x512xf32>
    %cst_274 = arith.constant 2.44331568E-5 : f32
    %605 = vector.broadcast %cst_274 : f32 to vector<16x512xf32>
    %606 = arith.mulf %594, %605 : vector<16x512xf32>
    %cst_275 = arith.constant -0.00138873165 : f32
    %607 = vector.broadcast %cst_275 : f32 to vector<16x512xf32>
    %608 = arith.addf %607, %606 : vector<16x512xf32>
    %609 = arith.mulf %594, %608 : vector<16x512xf32>
    %cst_276 = arith.constant 0.0416666456 : f32
    %610 = vector.broadcast %cst_276 : f32 to vector<16x512xf32>
    %611 = arith.addf %610, %609 : vector<16x512xf32>
    %612 = arith.mulf %594, %611 : vector<16x512xf32>
    %cst_277 = arith.constant -5.000000e-01 : f32
    %613 = vector.broadcast %cst_277 : f32 to vector<16x512xf32>
    %614 = arith.addf %613, %612 : vector<16x512xf32>
    %615 = arith.mulf %594, %614 : vector<16x512xf32>
    %cst_278 = arith.constant 1.000000e+00 : f32
    %616 = vector.broadcast %cst_278 : f32 to vector<16x512xf32>
    %617 = arith.addf %616, %615 : vector<16x512xf32>
    %618 = arith.fptosi %584 : vector<16x512xf32> to vector<16x512xi32>
    %c1_i32_279 = arith.constant 1 : i32
    %619 = vector.broadcast %c1_i32_279 : i32 to vector<16x512xi32>
    %620 = arith.andi %618, %619 : vector<16x512xi32>
    %c1_i32_280 = arith.constant 1 : i32
    %621 = vector.broadcast %c1_i32_280 : i32 to vector<16x512xi32>
    %622 = arith.cmpi eq, %620, %621 : vector<16x512xi32>
    %c2_i32_281 = arith.constant 2 : i32
    %623 = vector.broadcast %c2_i32_281 : i32 to vector<16x512xi32>
    %624 = arith.andi %618, %623 : vector<16x512xi32>
    %c0_i32_282 = arith.constant 0 : i32
    %625 = vector.broadcast %c0_i32_282 : i32 to vector<16x512xi32>
    %626 = arith.cmpi eq, %624, %625 : vector<16x512xi32>
    %cst_283 = arith.constant 1.000000e+00 : f32
    %cst_284 = arith.constant -1.000000e+00 : f32
    %627 = vector.broadcast %cst_283 : f32 to vector<16x512xf32>
    %628 = vector.broadcast %cst_284 : f32 to vector<16x512xf32>
    %629 = arith.select %626, %627, %628 : vector<16x512xi1>, vector<16x512xf32>
    %c1_i32_285 = arith.constant 1 : i32
    %630 = vector.broadcast %c1_i32_285 : i32 to vector<16x512xi32>
    %631 = arith.addi %618, %630 : vector<16x512xi32>
    %c2_i32_286 = arith.constant 2 : i32
    %632 = vector.broadcast %c2_i32_286 : i32 to vector<16x512xi32>
    %633 = arith.andi %631, %632 : vector<16x512xi32>
    %c0_i32_287 = arith.constant 0 : i32
    %634 = vector.broadcast %c0_i32_287 : i32 to vector<16x512xi32>
    %635 = arith.cmpi eq, %633, %634 : vector<16x512xi32>
    %cst_288 = arith.constant 1.000000e+00 : f32
    %cst_289 = arith.constant -1.000000e+00 : f32
    %636 = vector.broadcast %cst_288 : f32 to vector<16x512xf32>
    %637 = vector.broadcast %cst_289 : f32 to vector<16x512xf32>
    %638 = arith.select %635, %636, %637 : vector<16x512xi1>, vector<16x512xf32>
    %639 = arith.select %622, %617, %604 : vector<16x512xi1>, vector<16x512xf32>
    %640 = arith.mulf %639, %629 : vector<16x512xf32>
    %641 = arith.select %622, %604, %617 : vector<16x512xi1>, vector<16x512xf32>
    %642 = arith.mulf %641, %638 : vector<16x512xf32>
    %c4_290 = arith.constant 4 : index
    %c3072_291 = arith.constant 3072 : index
    %643 = vector.load %arg2[%c4_290, %c3072_291] : memref<36x4096xf32, #tpu.memory_space<vmem>>, vector<16x512xf32>
    tpu.vector_store %arg2[%c4_290, %c3072_291], %640 {strides = array<i32>} : memref<36x4096xf32, #tpu.memory_space<vmem>>, vector<16x512xf32>,
    %c20_292 = arith.constant 20 : index
    %c3072_293 = arith.constant 3072 : index
    %644 = vector.load %arg2[%c20_292, %c3072_293] : memref<36x4096xf32, #tpu.memory_space<vmem>>, vector<16x512xf32>
    tpu.vector_store %arg2[%c20_292, %c3072_293], %642 {strides = array<i32>} : memref<36x4096xf32, #tpu.memory_space<vmem>>, vector<16x512xf32>,
    %c0_294 = arith.constant 0 : index
    %c3584 = arith.constant 3584 : index
    %645 = vector.load %arg1[%c0_294, %c3584] : memref<4x4096xf32, #tpu.memory_space<vmem>>, vector<4x512xf32>
    %c0_295 = arith.constant 0 : index
    %c3584_296 = arith.constant 3584 : index
    %646 = vector.load %arg2[%c0_295, %c3584_296] : memref<36x4096xf32, #tpu.memory_space<vmem>>, vector<4x512xf32>
    tpu.vector_store %arg2[%c0_295, %c3584_296], %645 {strides = array<i32>} : memref<36x4096xf32, #tpu.memory_space<vmem>>, vector<4x512xf32>,
    %647 = vector.extract_strided_slice %645 {offsets = [0, 0], sizes = [1, 512], strides = [1, 1]} : vector<4x512xf32> to vector<1x512xf32>
    %648 = vector.shape_cast %647 : vector<1x512xf32> to vector<1x512xf32>
    %649 = vector.broadcast %648 : vector<1x512xf32> to vector<4x512xf32>
    %c0_297 = arith.constant 0 : index
    %c0_298 = arith.constant 0 : index
    %650 = vector.load %arg3[%c0_297, %c0_298] : memref<16x512xf32, #tpu.memory_space<vmem>>, vector<4x512xf32>
    tpu.vector_store %arg3[%c0_297, %c0_298], %649 {strides = array<i32>} : memref<16x512xf32, #tpu.memory_space<vmem>>, vector<4x512xf32>,
    %651 = vector.extract_strided_slice %645 {offsets = [1, 0], sizes = [1, 512], strides = [1, 1]} : vector<4x512xf32> to vector<1x512xf32>
    %652 = vector.shape_cast %651 : vector<1x512xf32> to vector<1x512xf32>
    %653 = vector.broadcast %652 : vector<1x512xf32> to vector<4x512xf32>
    %c4_299 = arith.constant 4 : index
    %c0_300 = arith.constant 0 : index
    %654 = vector.load %arg3[%c4_299, %c0_300] : memref<16x512xf32, #tpu.memory_space<vmem>>, vector<4x512xf32>
    tpu.vector_store %arg3[%c4_299, %c0_300], %653 {strides = array<i32>} : memref<16x512xf32, #tpu.memory_space<vmem>>, vector<4x512xf32>,
    %655 = vector.extract_strided_slice %645 {offsets = [2, 0], sizes = [1, 512], strides = [1, 1]} : vector<4x512xf32> to vector<1x512xf32>
    %656 = vector.shape_cast %655 : vector<1x512xf32> to vector<1x512xf32>
    %657 = vector.broadcast %656 : vector<1x512xf32> to vector<4x512xf32>
    %c8_301 = arith.constant 8 : index
    %c0_302 = arith.constant 0 : index
    %658 = vector.load %arg3[%c8_301, %c0_302] : memref<16x512xf32, #tpu.memory_space<vmem>>, vector<4x512xf32>
    tpu.vector_store %arg3[%c8_301, %c0_302], %657 {strides = array<i32>} : memref<16x512xf32, #tpu.memory_space<vmem>>, vector<4x512xf32>,
    %659 = vector.extract_strided_slice %645 {offsets = [3, 0], sizes = [1, 512], strides = [1, 1]} : vector<4x512xf32> to vector<1x512xf32>
    %660 = vector.shape_cast %659 : vector<1x512xf32> to vector<1x512xf32>
    %661 = vector.broadcast %660 : vector<1x512xf32> to vector<4x512xf32>
    %c12_303 = arith.constant 12 : index
    %c0_304 = arith.constant 0 : index
    %662 = vector.load %arg3[%c12_303, %c0_304] : memref<16x512xf32, #tpu.memory_space<vmem>>, vector<4x512xf32>
    tpu.vector_store %arg3[%c12_303, %c0_304], %661 {strides = array<i32>} : memref<16x512xf32, #tpu.memory_space<vmem>>, vector<4x512xf32>,
    %c0_305 = arith.constant 0 : index
    %c0_306 = arith.constant 0 : index
    %663 = vector.load %arg3[%c0_305, %c0_306] : memref<16x512xf32, #tpu.memory_space<vmem>>, vector<16x512xf32>
    %664 = arith.mulf %663, %49 : vector<16x512xf32>
    %cst_307 = arith.constant 0.636619746 : f32
    %665 = vector.broadcast %cst_307 : f32 to vector<16x512xf32>
    %666 = arith.mulf %664, %665 : vector<16x512xf32>
    %cst_308 = arith.constant 5.000000e-01 : f32
    %667 = vector.broadcast %cst_308 : f32 to vector<16x512xf32>
    %668 = arith.addf %666, %667 : vector<16x512xf32>
    %669 = math.floor %668 : vector<16x512xf32>
    %cst_309 = arith.constant 1.5703125 : f32
    %670 = vector.broadcast %cst_309 : f32 to vector<16x512xf32>
    %671 = arith.mulf %669, %670 : vector<16x512xf32>
    %672 = arith.subf %664, %671 : vector<16x512xf32>
    %cst_310 = arith.constant 4.83751297E-4 : f32
    %673 = vector.broadcast %cst_310 : f32 to vector<16x512xf32>
    %674 = arith.mulf %669, %673 : vector<16x512xf32>
    %675 = arith.subf %672, %674 : vector<16x512xf32>
    %cst_311 = arith.constant 7.549790e-08 : f32
    %676 = vector.broadcast %cst_311 : f32 to vector<16x512xf32>
    %677 = arith.mulf %669, %676 : vector<16x512xf32>
    %678 = arith.subf %675, %677 : vector<16x512xf32>
    %679 = arith.mulf %678, %678 : vector<16x512xf32>
    %680 = arith.mulf %678, %679 : vector<16x512xf32>
    %cst_312 = arith.constant -1.95152956E-4 : f32
    %681 = vector.broadcast %cst_312 : f32 to vector<16x512xf32>
    %682 = arith.mulf %679, %681 : vector<16x512xf32>
    %cst_313 = arith.constant 0.00833216123 : f32
    %683 = vector.broadcast %cst_313 : f32 to vector<16x512xf32>
    %684 = arith.addf %683, %682 : vector<16x512xf32>
    %685 = arith.mulf %679, %684 : vector<16x512xf32>
    %cst_314 = arith.constant -0.166666552 : f32
    %686 = vector.broadcast %cst_314 : f32 to vector<16x512xf32>
    %687 = arith.addf %686, %685 : vector<16x512xf32>
    %688 = arith.mulf %680, %687 : vector<16x512xf32>
    %689 = arith.addf %678, %688 : vector<16x512xf32>
    %cst_315 = arith.constant 2.44331568E-5 : f32
    %690 = vector.broadcast %cst_315 : f32 to vector<16x512xf32>
    %691 = arith.mulf %679, %690 : vector<16x512xf32>
    %cst_316 = arith.constant -0.00138873165 : f32
    %692 = vector.broadcast %cst_316 : f32 to vector<16x512xf32>
    %693 = arith.addf %692, %691 : vector<16x512xf32>
    %694 = arith.mulf %679, %693 : vector<16x512xf32>
    %cst_317 = arith.constant 0.0416666456 : f32
    %695 = vector.broadcast %cst_317 : f32 to vector<16x512xf32>
    %696 = arith.addf %695, %694 : vector<16x512xf32>
    %697 = arith.mulf %679, %696 : vector<16x512xf32>
    %cst_318 = arith.constant -5.000000e-01 : f32
    %698 = vector.broadcast %cst_318 : f32 to vector<16x512xf32>
    %699 = arith.addf %698, %697 : vector<16x512xf32>
    %700 = arith.mulf %679, %699 : vector<16x512xf32>
    %cst_319 = arith.constant 1.000000e+00 : f32
    %701 = vector.broadcast %cst_319 : f32 to vector<16x512xf32>
    %702 = arith.addf %701, %700 : vector<16x512xf32>
    %703 = arith.fptosi %669 : vector<16x512xf32> to vector<16x512xi32>
    %c1_i32_320 = arith.constant 1 : i32
    %704 = vector.broadcast %c1_i32_320 : i32 to vector<16x512xi32>
    %705 = arith.andi %703, %704 : vector<16x512xi32>
    %c1_i32_321 = arith.constant 1 : i32
    %706 = vector.broadcast %c1_i32_321 : i32 to vector<16x512xi32>
    %707 = arith.cmpi eq, %705, %706 : vector<16x512xi32>
    %c2_i32_322 = arith.constant 2 : i32
    %708 = vector.broadcast %c2_i32_322 : i32 to vector<16x512xi32>
    %709 = arith.andi %703, %708 : vector<16x512xi32>
    %c0_i32_323 = arith.constant 0 : i32
    %710 = vector.broadcast %c0_i32_323 : i32 to vector<16x512xi32>
    %711 = arith.cmpi eq, %709, %710 : vector<16x512xi32>
    %cst_324 = arith.constant 1.000000e+00 : f32
    %cst_325 = arith.constant -1.000000e+00 : f32
    %712 = vector.broadcast %cst_324 : f32 to vector<16x512xf32>
    %713 = vector.broadcast %cst_325 : f32 to vector<16x512xf32>
    %714 = arith.select %711, %712, %713 : vector<16x512xi1>, vector<16x512xf32>
    %c1_i32_326 = arith.constant 1 : i32
    %715 = vector.broadcast %c1_i32_326 : i32 to vector<16x512xi32>
    %716 = arith.addi %703, %715 : vector<16x512xi32>
    %c2_i32_327 = arith.constant 2 : i32
    %717 = vector.broadcast %c2_i32_327 : i32 to vector<16x512xi32>
    %718 = arith.andi %716, %717 : vector<16x512xi32>
    %c0_i32_328 = arith.constant 0 : i32
    %719 = vector.broadcast %c0_i32_328 : i32 to vector<16x512xi32>
    %720 = arith.cmpi eq, %718, %719 : vector<16x512xi32>
    %cst_329 = arith.constant 1.000000e+00 : f32
    %cst_330 = arith.constant -1.000000e+00 : f32
    %721 = vector.broadcast %cst_329 : f32 to vector<16x512xf32>
    %722 = vector.broadcast %cst_330 : f32 to vector<16x512xf32>
    %723 = arith.select %720, %721, %722 : vector<16x512xi1>, vector<16x512xf32>
    %724 = arith.select %707, %702, %689 : vector<16x512xi1>, vector<16x512xf32>
    %725 = arith.mulf %724, %714 : vector<16x512xf32>
    %726 = arith.select %707, %689, %702 : vector<16x512xi1>, vector<16x512xf32>
    %727 = arith.mulf %726, %723 : vector<16x512xf32>
    %c4_331 = arith.constant 4 : index
    %c3584_332 = arith.constant 3584 : index
    %728 = vector.load %arg2[%c4_331, %c3584_332] : memref<36x4096xf32, #tpu.memory_space<vmem>>, vector<16x512xf32>
    tpu.vector_store %arg2[%c4_331, %c3584_332], %725 {strides = array<i32>} : memref<36x4096xf32, #tpu.memory_space<vmem>>, vector<16x512xf32>,
    %c20_333 = arith.constant 20 : index
    %c3584_334 = arith.constant 3584 : index
    %729 = vector.load %arg2[%c20_333, %c3584_334] : memref<36x4096xf32, #tpu.memory_space<vmem>>, vector<16x512xf32>
    tpu.vector_store %arg2[%c20_333, %c3584_334], %727 {strides = array<i32>} : memref<36x4096xf32, #tpu.memory_space<vmem>>, vector<16x512xf32>,
    return
  }
  func.func @transform_0(%arg0: i32) -> (i32, i32) {
    %c0_i32 = arith.constant 0 : i32
    %c0_i32_0 = arith.constant 0 : i32
    return %c0_i32, %arg0 : i32, i32
  }
  func.func @transform_1(%arg0: i32) -> (i32, i32) {
    %c0_i32 = arith.constant 0 : i32
    %c0_i32_0 = arith.constant 0 : i32
    return %c0_i32, %arg0 : i32, i32
  }
}

</mosaic_0001>

<llo_original>
// kernel: tpu_custom_call.1
$region0: #{tpu_custom_call.1}
  #allocation0 [shape = 'u32[]', space=smem, size = 0x4, offset = 0x4, fixed_abs, tag = 'smem constant byte address 0x4 - core index']
  #allocation1 [shape = 'u32[72,128]{1,0:T(1,128)}', space=vmem, size = 0x9000, scoped, tag = 'internal scratch']
  #allocation2 [shape = 'f32[16,512]{1,0:T(8,128)}', space=vmem, size = 0x8000, scoped, tag = 'scratch operand']
  %s0 = inlined_call_operand.hbm [shape: f32[4,8192], index: 0, kind: input, shape index: {}]
  %s1 = inlined_call_operand.hbm [shape: f32[36,8192], index: 1, kind: output, shape index: {}]
  %s2 = sld [smem:[#allocation0]]
  $region41: #{tpu_custom_call.1} parent=0
    _
  %s4 = ssub.s32 1, %s2
  %s5 = scalar_select 0, %s4, %s2
  $region1: #{tpu_custom_call.1} parent=0
    #allocation3 [shape = 'u8[131072]{0}', space=vmem, size = 0x20000, scoped, tag = 'input window, operand 0']
    #allocation4 [shape = 's32[2]{0}', space=sflag, size = 0x8, scoped, tag = 'scoped memory for tpu_custom_call.1']
    #allocation5 [shape = 's32[2]{0}', space=sflag, size = 0x8, scoped, tag = 'scoped memory for tpu_custom_call.1']
    #allocation6 [shape = 'u8[1310720]{0}', space=vmem, size = 0x140000, scoped, tag = 'output window, operand 0']
    %6 = vsyncpa [#allocation4], 0
    %s7 = scalar_lea.sflag [#allocation4], 1
    %8 = vsyncpa %s7, 0
    %9 = vsyncpa [#allocation5], 0
    %s10 = scalar_lea.sflag [#allocation5], 1
    %11 = vsyncpa %s10, 0
    loop: start=0, step=1, limit=4
    $region2: #{tpu_custom_call.1} parent=1 // loop_pre_header
      _
    $region3: #{tpu_custom_call.1} parent=1 // loop_header
      %s13 = sphi 0, %s17
      %p14 = scmp.ge.s32.totalorder %s13, 4
      %s23 = sphi 0, %s25
      %s26 = sphi 0, %s23
      %s27 = sphi 0, %s26
      %s43 = sphi 0, %s27
      %s49 = sphi 0, %s51
      %s52 = sphi 0, %s49
      %s53 = sphi 0, %s52
      %s69 = sphi 0, %s53
    $region4: #{tpu_custom_call.1} parent=1 // loop_header_branch
      %16 = sbr.rel (%p14) target = $region8
    $region5: #{tpu_custom_call.1} parent=1 // loop_body
      %s18 = ssub.s32 %s13, 1
      %s19 = ssub.s32 %s13, 2
      %s20 = sadd.s32 %s13, 1
      %s21 = ssub.s32 %s13, %s20
      %p22 = scmp.eq.s32.totalorder %s21, 0
      %s24 = sadd.s32 %s23, 1
      %s25 = scalar_select %p22, %s23, %s24
      %p28 = pneg %p22
      %p29 = scmp.eq.s32.totalorder %s13, 1
      %p30 = por %p28, %p29
      %p31 = scmp.ne.s32.totalorder %s23, %s26
      %p32 = scmp.eq.s32.totalorder %s13, 0
      %p33 = por %p31, %p32
      %p34 = scmp.ne.s32.totalorder %s23, %s26
      %p35 = scmp.eq.s32.totalorder %s18, 1
      %p36 = por %p34, %p35
      %p37 = scmp.ne.s32.totalorder %s26, %s27
      %p38 = scmp.eq.s32.totalorder %s18, 0
      %p39 = por %p37, %p38
      %p40 = scmp.ne.s32.totalorder %s26, %s27
      %p41 = scmp.eq.s32.totalorder %s19, 1
      %p42 = por %p40, %p41
      %p44 = scmp.ne.s32.totalorder %s27, %s43
      %p45 = scmp.eq.s32.totalorder %s19, 0
      %p46 = por %p44, %p45
      %s47 = ssub.s32 %s13, %s20
      %p48 = scmp.eq.s32.totalorder %s47, 0
      %s50 = sadd.s32 %s49, 1
      %s51 = scalar_select %p48, %s49, %s50
      %p54 = pneg %p48
      %p55 = scmp.eq.s32.totalorder %s13, 1
      %p56 = por %p54, %p55
      %p57 = scmp.ne.s32.totalorder %s49, %s52
      %p58 = scmp.eq.s32.totalorder %s13, 0
      %p59 = por %p57, %p58
      %p60 = scmp.ne.s32.totalorder %s49, %s52
      %p61 = scmp.eq.s32.totalorder %s18, 1
      %p62 = por %p60, %p61
      %p63 = scmp.ne.s32.totalorder %s52, %s53
      %p64 = scmp.eq.s32.totalorder %s18, 0
      %p65 = por %p63, %p64
      %p66 = scmp.ne.s32.totalorder %s52, %s53
      %p67 = scmp.eq.s32.totalorder %s19, 1
      %p68 = por %p66, %p67
      %p70 = scmp.ne.s32.totalorder %s53, %s69
      %p71 = scmp.eq.s32.totalorder %s19, 0
      %p72 = por %p70, %p71
      %p73 = scmp.le.s32.totalorder 1, %s13
      %p74 = scmp.lt.s32.totalorder %s13, 3
      %p75 = pnand %p73, %p74
      %p76 = pneg %p75
      // Predicated region
      $region9: #{tpu_custom_call.1} parent=5 // pred_check
        _
      $region10: #{tpu_custom_call.1} parent=5 // pred_check_branch
        %78 = sbr.rel (%p75) target = $region12
      $region11: #{tpu_custom_call.1} parent=5 // pred_region
        %s79 = ssub.s32 %s13, 1
      $region12: #{tpu_custom_call.1} parent=5 // pred_fallthru
        _
      %p80 = scmp.lt.s32.totalorder %s13, 2
      // Predicated region
      $region13: #{tpu_custom_call.1} parent=5 // pred_check
        %p81 = pneg %p80
      $region14: #{tpu_custom_call.1} parent=5 // pred_check_branch
        %83 = sbr.rel (%p81) target = $region16
      $region15: #{tpu_custom_call.1} parent=5 // pred_region
        // Predicated region
        $region17: #{tpu_custom_call.1} parent=15 // pred_check
          %p84 = pneg %p33
        $region18: #{tpu_custom_call.1} parent=15 // pred_check_branch
          %86 = sbr.rel (%p84) target = $region20
        $region19: #{tpu_custom_call.1} parent=15 // pred_region
          %s87 = sand.u32 %s23, 1
          %s88 = scalar_lea.sflag [#allocation4], %s87
          %s89 = sand.u32 %s23, 1
          %s90 = smul.addr %s89, 128
          %s91 = scalar_lea.vmem [#allocation3], %s90
          %s92 = smul.u32 32, %s13
          %94 = vsyncadd %s88, 0
          %s95 = smul.addr %s92, 4
          %s96 = scalar_lea.hbm %s0, %s95
          %s98 = sshll.u32 %s96, 4
          %s99 = int_to_ptr.hbm [resolvable:$true] %s98
          %s100 = sshll.u32 %s91, 4
          %s101 = int_to_ptr.vmem [resolvable:$true] %s100
          %103 = dma.hbm_to_vmem [thread:$0]  %s99, 2048, %s101, %s88
        $region20: #{tpu_custom_call.1} parent=15 // pred_fallthru
          _
      $region16: #{tpu_custom_call.1} parent=5 // pred_fallthru
        _
      %p104 = scmp.le.s32.totalorder 1, %s13
      %p105 = scmp.lt.s32.totalorder %s13, 3
      %p106 = pnand %p104, %p105
      %p107 = pneg %p106
      // Predicated region
      $region21: #{tpu_custom_call.1} parent=5 // pred_check
        _
      $region22: #{tpu_custom_call.1} parent=5 // pred_check_branch
        %109 = sbr.rel (%p106) target = $region24
      $region23: #{tpu_custom_call.1} parent=5 // pred_region
        %s110 = ssub.s32 %s13, 1
        %s111 = sand.u32 %s26, 1
        %s112 = scalar_lea.sflag [#allocation4], %s111
        %s113 = sand.u32 %s26, 1
        %s114 = smul.addr %s113, 128
        %s115 = scalar_lea.vmem [#allocation3], %s114
        // Predicated region
        $region25: #{tpu_custom_call.1} parent=23 // pred_check
          %p116 = pneg %p39
        $region26: #{tpu_custom_call.1} parent=23 // pred_check_branch
          %118 = sbr.rel (%p116) target = $region28
        $region27: #{tpu_custom_call.1} parent=23 // pred_region
          %120 = dma.done %s112, 2048
        $region28: #{tpu_custom_call.1} parent=23 // pred_fallthru
          _
        %s121 = sand.u32 %s26, 1
        %s122 = scalar_lea.sflag [#allocation4], %s121
        %s123 = sand.u32 %s26, 1
        %s124 = smul.addr %s123, 128
        %s125 = scalar_lea.vmem [#allocation3], %s124
        %p126 = pneg %p39
        %p127 = pneg %p36
        %p128 = pneg %p65
        %p129 = pneg %p62
        %s130 = sand.u32 %s52, 1
        %s131 = scalar_lea.sflag [#allocation5], %s130
        %s132 = sand.u32 %s52, 1
        %s133 = smul.addr %s132, 1280
        %s134 = scalar_lea.vmem [#allocation6], %s133
        %s135 = smul.u32 32, %s18
        %s136 = smul.u32 32, %s18
        %v137 = vlaneseq
        %v138 = vshrl.u32 %v137, 7
        %v139 = vadd.s32 %v138, 8
        %vm140 = vcmp.eq.s32.totalorder %v138, 1
        %vm141 = vcmp.eq.s32.totalorder %v139, 1
        %v142 = vsel %vm140, 4.0, 1.0
        %v143 = vsel %vm141, 4.0, 1.0
        %vm144 = vcmp.eq.s32.totalorder %v138, 2
        %vm145 = vcmp.eq.s32.totalorder %v139, 2
        %v146 = vsel %vm144, 16.0, %v142
        %v147 = vsel %vm145, 16.0, %v143
        %vm148 = vcmp.eq.s32.totalorder %v138, 3
        %vm149 = vcmp.eq.s32.totalorder %v139, 3
        %v150 = vsel %vm148, 64.0, %v146
        %v151 = vsel %vm149, 64.0, %v147
        %vm152 = vcmp.eq.s32.totalorder %v138, 5
        %vm153 = vcmp.eq.s32.totalorder %v139, 5
        %v154 = vsel %vm152, 4.0, %v150
        %v155 = vsel %vm153, 4.0, %v151
        %vm156 = vcmp.eq.s32.totalorder %v138, 6
        %vm157 = vcmp.eq.s32.totalorder %v139, 6
        %v158 = vsel %vm156, 16.0, %v154
        %v159 = vsel %vm157, 16.0, %v155
        %vm160 = vcmp.eq.s32.totalorder %v138, 7
        %vm161 = vcmp.eq.s32.totalorder %v139, 7
        %v162 = vsel %vm160, 64.0, %v158
        %v163 = vsel %vm161, 64.0, %v159
        %vm164 = vcmp.eq.s32.totalorder %v138, 9
        %vm165 = vcmp.eq.s32.totalorder %v139, 9
        %v166 = vsel %vm164, 4.0, %v162
        %v167 = vsel %vm165, 4.0, %v163
        %vm168 = vcmp.eq.s32.totalorder %v138, 10
        %vm169 = vcmp.eq.s32.totalorder %v139, 10
        %v170 = vsel %vm168, 16.0, %v166
        %v171 = vsel %vm169, 16.0, %v167
        %vm172 = vcmp.eq.s32.totalorder %v138, 11
        %vm173 = vcmp.eq.s32.totalorder %v139, 11
        %v174 = vsel %vm172, 64.0, %v170
        %v175 = vsel %vm173, 64.0, %v171
        %vm176 = vcmp.eq.s32.totalorder %v138, 13
        %vm177 = vcmp.eq.s32.totalorder %v139, 13
        %v178 = vsel %vm176, 4.0, %v174
        %v179 = vsel %vm177, 4.0, %v175
        %vm180 = vcmp.eq.s32.totalorder %v138, 14
        %vm181 = vcmp.eq.s32.totalorder %v139, 14
        %v182 = vsel %vm180, 16.0, %v178
        %v183 = vsel %vm181, 16.0, %v179
        %vm184 = vcmp.eq.s32.totalorder %v138, 15
        %vm185 = vcmp.eq.s32.totalorder %v139, 15
        %v186 = vsel %vm184, 64.0, %v182
        %v187 = vsel %vm185, 64.0, %v183
        %v188 = vld [vmem:[%s115] sm:$0xff]
        %v189 = vld [vmem:[%s115 + $0x8] sm:$0xff]
        %192 = vst [vmem:[#allocation1] ss:$2 sm:$0xff] %v188
        %s193 = scalar_lea.vmem [#allocation1], 16
        %194 = vst [vmem:[%s193] ss:$2 sm:$0xff] %v189
        %v195 = vld.sshfl [vmem:[#allocation1] sm:$0xff pattern:$0x75316420]
        %v196 = vld.sshfl [vmem:[#allocation1 + $0x8] sm:$0xff pattern:$0x75316420]
        %v197 = vld.sshfl [vmem:[#allocation1 + $0x10] sm:$0xff pattern:$0x75316420]
        %v198 = vld.sshfl [vmem:[#allocation1 + $0x18] sm:$0xff pattern:$0x75316420]
        %203 = vst [vmem:[%s134] sm:$0xf] %v195
        %204 = vst [vmem:[%s134 + $0x8] sm:$0xf] %v196
        %205 = vst [vmem:[%s134 + $0x10] sm:$0xf] %v197
        %206 = vst [vmem:[%s134 + $0x18] sm:$0xf] %v198
        %v207 = vperm.slane %v188, 0
        %v208 = vperm.slane %v188, 4
        %v209 = vperm.slane %v189, 0
        %v210 = vperm.slane %v189, 4
        %v215 = vperm.slane %v207, 0
        %v216 = vperm.slane %v208, 0
        %v217 = vperm.slane %v209, 0
        %v218 = vperm.slane %v210, 0
        %219 = vst [vmem:[#allocation2] sm:$0xf] %v215
        %220 = vst [vmem:[#allocation2 + $0x8] sm:$0xf] %v216
        %221 = vst [vmem:[#allocation2 + $0x10] sm:$0xf] %v217
        %222 = vst [vmem:[#allocation2 + $0x18] sm:$0xf] %v218
        %v223 = vperm.slane %v188, 1
        %v224 = vperm.slane %v188, 5
        %v225 = vperm.slane %v189, 1
        %v226 = vperm.slane %v189, 5
        %v231 = vperm.slane %v223, 1
        %v232 = vperm.slane %v224, 1
        %v233 = vperm.slane %v225, 1
        %v234 = vperm.slane %v226, 1
        %235 = vst [vmem:[#allocation2] sm:$0xf0] %v231
        %236 = vst [vmem:[#allocation2 + $0x8] sm:$0xf0] %v232
        %237 = vst [vmem:[#allocation2 + $0x10] sm:$0xf0] %v233
        %238 = vst [vmem:[#allocation2 + $0x18] sm:$0xf0] %v234
        %v239 = vperm.slane %v188, 2
        %v240 = vperm.slane %v188, 6
        %v241 = vperm.slane %v189, 2
        %v242 = vperm.slane %v189, 6
        %v247 = vperm.slane %v239, 2
        %v248 = vperm.slane %v240, 2
        %v249 = vperm.slane %v241, 2
        %v250 = vperm.slane %v242, 2
        %251 = vst [vmem:[#allocation2 + $0x20] sm:$0xf] %v247
        %252 = vst [vmem:[#allocation2 + $0x28] sm:$0xf] %v248
        %253 = vst [vmem:[#allocation2 + $0x30] sm:$0xf] %v249
        %254 = vst [vmem:[#allocation2 + $0x38] sm:$0xf] %v250
        %v255 = vperm.slane %v188, 3
        %v256 = vperm.slane %v188, 7
        %v257 = vperm.slane %v189, 3
        %v258 = vperm.slane %v189, 7
        %v263 = vperm.slane %v255, 3
        %v264 = vperm.slane %v256, 3
        %v265 = vperm.slane %v257, 3
        %v266 = vperm.slane %v258, 3
        %267 = vst [vmem:[#allocation2 + $0x20] sm:$0xf0] %v263
        %268 = vst [vmem:[#allocation2 + $0x28] sm:$0xf0] %v264
        %269 = vst [vmem:[#allocation2 + $0x30] sm:$0xf0] %v265
        %270 = vst [vmem:[#allocation2 + $0x38] sm:$0xf0] %v266
        %v271 = vld [vmem:[#allocation2] sm:$0xff]
        %v272 = vld [vmem:[#allocation2 + $0x8] sm:$0xff]
        %v273 = vld [vmem:[#allocation2 + $0x10] sm:$0xff]
        %v274 = vld [vmem:[#allocation2 + $0x18] sm:$0xff]
        %v275 = vld [vmem:[#allocation2 + $0x20] sm:$0xff]
        %v276 = vld [vmem:[#allocation2 + $0x28] sm:$0xff]
        %v277 = vld [vmem:[#allocation2 + $0x30] sm:$0xff]
        %v278 = vld [vmem:[#allocation2 + $0x38] sm:$0xff]
        %v279 = vmul.f32 %v271, %v186
        %v280 = vmul.f32 %v272, %v186
        %v281 = vmul.f32 %v273, %v186
        %v282 = vmul.f32 %v274, %v186
        %v283 = vmul.f32 %v275, %v187
        %v284 = vmul.f32 %v276, %v187
        %v285 = vmul.f32 %v277, %v187
        %v286 = vmul.f32 %v278, %v187
        %v287 = vmul.f32 %v279, 0.63661975
        %v288 = vmul.f32 %v280, 0.63661975
        %v289 = vmul.f32 %v281, 0.63661975
        %v290 = vmul.f32 %v282, 0.63661975
        %v291 = vmul.f32 %v283, 0.63661975
        %v292 = vmul.f32 %v284, 0.63661975
        %v293 = vmul.f32 %v285, 0.63661975
        %v294 = vmul.f32 %v286, 0.63661975
        %v295 = vadd.f32 %v287, 0.5
        %v296 = vadd.f32 %v288, 0.5
        %v297 = vadd.f32 %v289, 0.5
        %v298 = vadd.f32 %v290, 0.5
        %v299 = vadd.f32 %v291, 0.5
        %v300 = vadd.f32 %v292, 0.5
        %v301 = vadd.f32 %v293, 0.5
        %v302 = vadd.f32 %v294, 0.5
        %v303 = vfloor.f32 %v295
        %v304 = vfloor.f32 %v296
        %v305 = vfloor.f32 %v297
        %v306 = vfloor.f32 %v298
        %v307 = vfloor.f32 %v299
        %v308 = vfloor.f32 %v300
        %v309 = vfloor.f32 %v301
        %v310 = vfloor.f32 %v302
        %v311 = vmul.f32 %v303, 1.5703125
        %v312 = vmul.f32 %v304, 1.5703125
        %v313 = vmul.f32 %v305, 1.5703125
        %v314 = vmul.f32 %v306, 1.5703125
        %v315 = vmul.f32 %v307, 1.5703125
        %v316 = vmul.f32 %v308, 1.5703125
        %v317 = vmul.f32 %v309, 1.5703125
        %v318 = vmul.f32 %v310, 1.5703125
        %v319 = vsub.f32 %v279, %v311
        %v320 = vsub.f32 %v280, %v312
        %v321 = vsub.f32 %v281, %v313
        %v322 = vsub.f32 %v282, %v314
        %v323 = vsub.f32 %v283, %v315
        %v324 = vsub.f32 %v284, %v316
        %v325 = vsub.f32 %v285, %v317
        %v326 = vsub.f32 %v286, %v318
        %v327 = vmul.f32 %v303, 0.0004837513
        %v328 = vmul.f32 %v304, 0.0004837513
        %v329 = vmul.f32 %v305, 0.0004837513
        %v330 = vmul.f32 %v306, 0.0004837513
        %v331 = vmul.f32 %v307, 0.0004837513
        %v332 = vmul.f32 %v308, 0.0004837513
        %v333 = vmul.f32 %v309, 0.0004837513
        %v334 = vmul.f32 %v310, 0.0004837513
        %v335 = vsub.f32 %v319, %v327
        %v336 = vsub.f32 %v320, %v328
        %v337 = vsub.f32 %v321, %v329
        %v338 = vsub.f32 %v322, %v330
        %v339 = vsub.f32 %v323, %v331
        %v340 = vsub.f32 %v324, %v332
        %v341 = vsub.f32 %v325, %v333
        %v342 = vsub.f32 %v326, %v334
        %v343 = vmul.f32 %v303, 7.54979e-08
        %v344 = vmul.f32 %v304, 7.54979e-08
        %v345 = vmul.f32 %v305, 7.54979e-08
        %v346 = vmul.f32 %v306, 7.54979e-08
        %v347 = vmul.f32 %v307, 7.54979e-08
        %v348 = vmul.f32 %v308, 7.54979e-08
        %v349 = vmul.f32 %v309, 7.54979e-08
        %v350 = vmul.f32 %v310, 7.54979e-08
        %v351 = vsub.f32 %v335, %v343
        %v352 = vsub.f32 %v336, %v344
        %v353 = vsub.f32 %v337, %v345
        %v354 = vsub.f32 %v338, %v346
        %v355 = vsub.f32 %v339, %v347
        %v356 = vsub.f32 %v340, %v348
        %v357 = vsub.f32 %v341, %v349
        %v358 = vsub.f32 %v342, %v350
        %v359 = vmul.f32 %v351, %v351
        %v360 = vmul.f32 %v352, %v352
        %v361 = vmul.f32 %v353, %v353
        %v362 = vmul.f32 %v354, %v354
        %v363 = vmul.f32 %v355, %v355
        %v364 = vmul.f32 %v356, %v356
        %v365 = vmul.f32 %v357, %v357
        %v366 = vmul.f32 %v358, %v358
        %v367 = vmul.f32 %v351, %v359
        %v368 = vmul.f32 %v352, %v360
        %v369 = vmul.f32 %v353, %v361
        %v370 = vmul.f32 %v354, %v362
        %v371 = vmul.f32 %v355, %v363
        %v372 = vmul.f32 %v356, %v364
        %v373 = vmul.f32 %v357, %v365
        %v374 = vmul.f32 %v358, %v366
        %v375 = vmul.f32 %v359, -0.00019515296
        %v376 = vmul.f32 %v360, -0.00019515296
        %v377 = vmul.f32 %v361, -0.00019515296
        %v378 = vmul.f32 %v362, -0.00019515296
        %v379 = vmul.f32 %v363, -0.00019515296
        %v380 = vmul.f32 %v364, -0.00019515296
        %v381 = vmul.f32 %v365, -0.00019515296
        %v382 = vmul.f32 %v366, -0.00019515296
        %v383 = vadd.f32 %v375, 0.008332161
        %v384 = vadd.f32 %v376, 0.008332161
        %v385 = vadd.f32 %v377, 0.008332161
        %v386 = vadd.f32 %v378, 0.008332161
        %v387 = vadd.f32 %v379, 0.008332161
        %v388 = vadd.f32 %v380, 0.008332161
        %v389 = vadd.f32 %v381, 0.008332161
        %v390 = vadd.f32 %v382, 0.008332161
        %v391 = vmul.f32 %v359, %v383
        %v392 = vmul.f32 %v360, %v384
        %v393 = vmul.f32 %v361, %v385
        %v394 = vmul.f32 %v362, %v386
        %v395 = vmul.f32 %v363, %v387
        %v396 = vmul.f32 %v364, %v388
        %v397 = vmul.f32 %v365, %v389
        %v398 = vmul.f32 %v366, %v390
        %v399 = vadd.f32 %v391, -0.16666655
        %v400 = vadd.f32 %v392, -0.16666655
        %v401 = vadd.f32 %v393, -0.16666655
        %v402 = vadd.f32 %v394, -0.16666655
        %v403 = vadd.f32 %v395, -0.16666655
        %v404 = vadd.f32 %v396, -0.16666655
        %v405 = vadd.f32 %v397, -0.16666655
        %v406 = vadd.f32 %v398, -0.16666655
        %v407 = vmul.f32 %v367, %v399
        %v408 = vmul.f32 %v368, %v400
        %v409 = vmul.f32 %v369, %v401
        %v410 = vmul.f32 %v370, %v402
        %v411 = vmul.f32 %v371, %v403
        %v412 = vmul.f32 %v372, %v404
        %v413 = vmul.f32 %v373, %v405
        %v414 = vmul.f32 %v374, %v406
        %v415 = vadd.f32 %v351, %v407
        %v416 = vadd.f32 %v352, %v408
        %v417 = vadd.f32 %v353, %v409
        %v418 = vadd.f32 %v354, %v410
        %v419 = vadd.f32 %v355, %v411
        %v420 = vadd.f32 %v356, %v412
        %v421 = vadd.f32 %v357, %v413
        %v422 = vadd.f32 %v358, %v414
        %v423 = vmul.f32 %v359, 2.4433157e-05
        %v424 = vmul.f32 %v360, 2.4433157e-05
        %v425 = vmul.f32 %v361, 2.4433157e-05
        %v426 = vmul.f32 %v362, 2.4433157e-05
        %v427 = vmul.f32 %v363, 2.4433157e-05
        %v428 = vmul.f32 %v364, 2.4433157e-05
        %v429 = vmul.f32 %v365, 2.4433157e-05
        %v430 = vmul.f32 %v366, 2.4433157e-05
        %v431 = vadd.f32 %v423, -0.0013887316
        %v432 = vadd.f32 %v424, -0.0013887316
        %v433 = vadd.f32 %v425, -0.0013887316
        %v434 = vadd.f32 %v426, -0.0013887316
        %v435 = vadd.f32 %v427, -0.0013887316
        %v436 = vadd.f32 %v428, -0.0013887316
        %v437 = vadd.f32 %v429, -0.0013887316
        %v438 = vadd.f32 %v430, -0.0013887316
        %v439 = vmul.f32 %v359, %v431
        %v440 = vmul.f32 %v360, %v432
        %v441 = vmul.f32 %v361, %v433
        %v442 = vmul.f32 %v362, %v434
        %v443 = vmul.f32 %v363, %v435
        %v444 = vmul.f32 %v364, %v436
        %v445 = vmul.f32 %v365, %v437
        %v446 = vmul.f32 %v366, %v438
        %v447 = vadd.f32 %v439, 0.041666646
        %v448 = vadd.f32 %v440, 0.041666646
        %v449 = vadd.f32 %v441, 0.041666646
        %v450 = vadd.f32 %v442, 0.041666646
        %v451 = vadd.f32 %v443, 0.041666646
        %v452 = vadd.f32 %v444, 0.041666646
        %v453 = vadd.f32 %v445, 0.041666646
        %v454 = vadd.f32 %v446, 0.041666646
        %v455 = vmul.f32 %v359, %v447
        %v456 = vmul.f32 %v360, %v448
        %v457 = vmul.f32 %v361, %v449
        %v458 = vmul.f32 %v362, %v450
        %v459 = vmul.f32 %v363, %v451
        %v460 = vmul.f32 %v364, %v452
        %v461 = vmul.f32 %v365, %v453
        %v462 = vmul.f32 %v366, %v454
        %v463 = vadd.f32 %v455, -0.5
        %v464 = vadd.f32 %v456, -0.5
        %v465 = vadd.f32 %v457, -0.5
        %v466 = vadd.f32 %v458, -0.5
        %v467 = vadd.f32 %v459, -0.5
        %v468 = vadd.f32 %v460, -0.5
        %v469 = vadd.f32 %v461, -0.5
        %v470 = vadd.f32 %v462, -0.5
        %v471 = vmul.f32 %v359, %v463
        %v472 = vmul.f32 %v360, %v464
        %v473 = vmul.f32 %v361, %v465
        %v474 = vmul.f32 %v362, %v466
        %v475 = vmul.f32 %v363, %v467
        %v476 = vmul.f32 %v364, %v468
        %v477 = vmul.f32 %v365, %v469
        %v478 = vmul.f32 %v366, %v470
        %v479 = vadd.f32 %v471, 1.0
        %v480 = vadd.f32 %v472, 1.0
        %v481 = vadd.f32 %v473, 1.0
        %v482 = vadd.f32 %v474, 1.0
        %v483 = vadd.f32 %v475, 1.0
        %v484 = vadd.f32 %v476, 1.0
        %v485 = vadd.f32 %v477, 1.0
        %v486 = vadd.f32 %v478, 1.0
        %v487 = vcvt.f32.s32.to.zero.pseudo %v303
        %v488 = vcvt.f32.s32.to.zero.pseudo %v304
        %v489 = vcvt.f32.s32.to.zero.pseudo %v305
        %v490 = vcvt.f32.s32.to.zero.pseudo %v306
        %v491 = vcvt.f32.s32.to.zero.pseudo %v307
        %v492 = vcvt.f32.s32.to.zero.pseudo %v308
        %v493 = vcvt.f32.s32.to.zero.pseudo %v309
        %v494 = vcvt.f32.s32.to.zero.pseudo %v310
        %v495 = vand.u32 %v487, 1
        %v496 = vand.u32 %v488, 1
        %v497 = vand.u32 %v489, 1
        %v498 = vand.u32 %v490, 1
        %v499 = vand.u32 %v491, 1
        %v500 = vand.u32 %v492, 1
        %v501 = vand.u32 %v493, 1
        %v502 = vand.u32 %v494, 1
        %vm503 = vcmp.eq.s32.totalorder %v495, 1
        %vm504 = vcmp.eq.s32.totalorder %v496, 1
        %vm505 = vcmp.eq.s32.totalorder %v497, 1
        %vm506 = vcmp.eq.s32.totalorder %v498, 1
        %vm507 = vcmp.eq.s32.totalorder %v499, 1
        %vm508 = vcmp.eq.s32.totalorder %v500, 1
        %vm509 = vcmp.eq.s32.totalorder %v501, 1
        %vm510 = vcmp.eq.s32.totalorder %v502, 1
        %v511 = vand.u32 %v487, 2
        %v512 = vand.u32 %v488, 2
        %v513 = vand.u32 %v489, 2
        %v514 = vand.u32 %v490, 2
        %v515 = vand.u32 %v491, 2
        %v516 = vand.u32 %v492, 2
        %v517 = vand.u32 %v493, 2
        %v518 = vand.u32 %v494, 2
        %vm519 = vcmp.eq.s32.totalorder %v511, 0
        %vm520 = vcmp.eq.s32.totalorder %v512, 0
        %vm521 = vcmp.eq.s32.totalorder %v513, 0
        %vm522 = vcmp.eq.s32.totalorder %v514, 0
        %vm523 = vcmp.eq.s32.totalorder %v515, 0
        %vm524 = vcmp.eq.s32.totalorder %v516, 0
        %vm525 = vcmp.eq.s32.totalorder %v517, 0
        %vm526 = vcmp.eq.s32.totalorder %v518, 0
        %v527 = vsel %vm519, 1.0, -1.0
        %v528 = vsel %vm520, 1.0, -1.0
        %v529 = vsel %vm521, 1.0, -1.0
        %v530 = vsel %vm522, 1.0, -1.0
        %v531 = vsel %vm523, 1.0, -1.0
        %v532 = vsel %vm524, 1.0, -1.0
        %v533 = vsel %vm525, 1.0, -1.0
        %v534 = vsel %vm526, 1.0, -1.0
        %v535 = vadd.s32 %v487, 1
        %v536 = vadd.s32 %v488, 1
        %v537 = vadd.s32 %v489, 1
        %v538 = vadd.s32 %v490, 1
        %v539 = vadd.s32 %v491, 1
        %v540 = vadd.s32 %v492, 1
        %v541 = vadd.s32 %v493, 1
        %v542 = vadd.s32 %v494, 1
        %v543 = vand.u32 %v535, 2
        %v544 = vand.u32 %v536, 2
        %v545 = vand.u32 %v537, 2
        %v546 = vand.u32 %v538, 2
        %v547 = vand.u32 %v539, 2
        %v548 = vand.u32 %v540, 2
        %v549 = vand.u32 %v541, 2
        %v550 = vand.u32 %v542, 2
        %vm551 = vcmp.eq.s32.totalorder %v543, 0
        %vm552 = vcmp.eq.s32.totalorder %v544, 0
        %vm553 = vcmp.eq.s32.totalorder %v545, 0
        %vm554 = vcmp.eq.s32.totalorder %v546, 0
        %vm555 = vcmp.eq.s32.totalorder %v547, 0
        %vm556 = vcmp.eq.s32.totalorder %v548, 0
        %vm557 = vcmp.eq.s32.totalorder %v549, 0
        %vm558 = vcmp.eq.s32.totalorder %v550, 0
        %v559 = vsel %vm551, 1.0, -1.0
        %v560 = vsel %vm552, 1.0, -1.0
        %v561 = vsel %vm553, 1.0, -1.0
        %v562 = vsel %vm554, 1.0, -1.0
        %v563 = vsel %vm555, 1.0, -1.0
        %v564 = vsel %vm556, 1.0, -1.0
        %v565 = vsel %vm557, 1.0, -1.0
        %v566 = vsel %vm558, 1.0, -1.0
        %v567 = vsel %vm503, %v479, %v415
        %v568 = vsel %vm504, %v480, %v416
        %v569 = vsel %vm505, %v481, %v417
        %v570 = vsel %vm506, %v482, %v418
        %v571 = vsel %vm507, %v483, %v419
        %v572 = vsel %vm508, %v484, %v420
        %v573 = vsel %vm509, %v485, %v421
        %v574 = vsel %vm510, %v486, %v422
        %v575 = vmul.f32 %v567, %v527
        %v576 = vmul.f32 %v568, %v528
        %v577 = vmul.f32 %v569, %v529
        %v578 = vmul.f32 %v570, %v530
        %v579 = vmul.f32 %v571, %v531
        %v580 = vmul.f32 %v572, %v532
        %v581 = vmul.f32 %v573, %v533
        %v582 = vmul.f32 %v574, %v534
        %v583 = vsel %vm503, %v415, %v479
        %v584 = vsel %vm504, %v416, %v480
        %v585 = vsel %vm505, %v417, %v481
        %v586 = vsel %vm506, %v418, %v482
        %v587 = vsel %vm507, %v419, %v483
        %v588 = vsel %vm508, %v420, %v484
        %v589 = vsel %vm509, %v421, %v485
        %v590 = vsel %vm510, %v422, %v486
        %v591 = vmul.f32 %v583, %v559
        %v592 = vmul.f32 %v584, %v560
        %v593 = vmul.f32 %v585, %v561
        %v594 = vmul.f32 %v586, %v562
        %v595 = vmul.f32 %v587, %v563
        %v596 = vmul.f32 %v588, %v564
        %v597 = vmul.f32 %v589, %v565
        %v598 = vmul.f32 %v590, %v566
        %vm607 = vcmask 1043456
        %v608 = vrot.slane %v575, 4
        %v609 = vrot.slane %v576, 4
        %v610 = vrot.slane %v577, 4
        %v611 = vrot.slane %v578, 4
        %v612 = vrot.slane %v579, 4
        %v613 = vsel %vm607, %v608, %v612
        %v614 = vrot.slane %v580, 4
        %v615 = vsel %vm607, %v609, %v614
        %v616 = vrot.slane %v581, 4
        %v617 = vsel %vm607, %v610, %v616
        %v618 = vrot.slane %v582, 4
        %v619 = vsel %vm607, %v611, %v618
        %632 = vst [vmem:[%s134] sm:$0xf0] %v608
        %633 = vst [vmem:[%s134 + $0x8] sm:$0xf0] %v609
        %634 = vst [vmem:[%s134 + $0x10] sm:$0xf0] %v610
        %635 = vst [vmem:[%s134 + $0x18] sm:$0xf0] %v611
        %636 = vst [vmem:[%s134 + $0x100] sm:$0xff] %v613
        %637 = vst [vmem:[%s134 + $0x108] sm:$0xff] %v615
        %638 = vst [vmem:[%s134 + $0x110] sm:$0xff] %v617
        %639 = vst [vmem:[%s134 + $0x118] sm:$0xff] %v619
        %640 = vst [vmem:[%s134 + $0x200] sm:$0xf] %v612
        %641 = vst [vmem:[%s134 + $0x208] sm:$0xf] %v614
        %642 = vst [vmem:[%s134 + $0x210] sm:$0xf] %v616
        %643 = vst [vmem:[%s134 + $0x218] sm:$0xf] %v618
        %v652 = vrot.slane %v591, 4
        %v653 = vrot.slane %v592, 4
        %v654 = vrot.slane %v593, 4
        %v655 = vrot.slane %v594, 4
        %v656 = vrot.slane %v595, 4
        %v657 = vsel %vm607, %v652, %v656
        %v658 = vrot.slane %v596, 4
        %v659 = vsel %vm607, %v653, %v658
        %v660 = vrot.slane %v597, 4
        %v661 = vsel %vm607, %v654, %v660
        %v662 = vrot.slane %v598, 4
        %v663 = vsel %vm607, %v655, %v662
        %676 = vst [vmem:[%s134 + $0x200] sm:$0xf0] %v652
        %677 = vst [vmem:[%s134 + $0x208] sm:$0xf0] %v653
        %678 = vst [vmem:[%s134 + $0x210] sm:$0xf0] %v654
        %679 = vst [vmem:[%s134 + $0x218] sm:$0xf0] %v655
        %680 = vst [vmem:[%s134 + $0x300] sm:$0xff] %v657
        %681 = vst [vmem:[%s134 + $0x308] sm:$0xff] %v659
        %682 = vst [vmem:[%s134 + $0x310] sm:$0xff] %v661
        %683 = vst [vmem:[%s134 + $0x318] sm:$0xff] %v663
        %684 = vst [vmem:[%s134 + $0x400] sm:$0xf] %v656
        %685 = vst [vmem:[%s134 + $0x408] sm:$0xf] %v658
        %686 = vst [vmem:[%s134 + $0x410] sm:$0xf] %v660
        %687 = vst [vmem:[%s134 + $0x418] sm:$0xf] %v662
        %v688 = vld [vmem:[%s115 + $0x10] sm:$0xff]
        %v689 = vld [vmem:[%s115 + $0x18] sm:$0xff]
        %692 = vst [vmem:[#allocation1] ss:$2 sm:$0xff] %v688
        %s693 = scalar_lea.vmem [#allocation1], 16
        %694 = vst [vmem:[%s693] ss:$2 sm:$0xff] %v689
        %v695 = vld.sshfl [vmem:[#allocation1] sm:$0xff pattern:$0x75316420]
        %v696 = vld.sshfl [vmem:[#allocation1 + $0x8] sm:$0xff pattern:$0x75316420]
        %v697 = vld.sshfl [vmem:[#allocation1 + $0x10] sm:$0xff pattern:$0x75316420]
        %v698 = vld.sshfl [vmem:[#allocation1 + $0x18] sm:$0xff pattern:$0x75316420]
        %703 = vst [vmem:[%s134 + $0x20] sm:$0xf] %v695
        %704 = vst [vmem:[%s134 + $0x28] sm:$0xf] %v696
        %705 = vst [vmem:[%s134 + $0x30] sm:$0xf] %v697
        %706 = vst [vmem:[%s134 + $0x38] sm:$0xf] %v698
        %v707 = vperm.slane %v688, 0
        %v708 = vperm.slane %v688, 4
        %v709 = vperm.slane %v689, 0
        %v710 = vperm.slane %v689, 4
        %v715 = vperm.slane %v707, 0
        %v716 = vperm.slane %v708, 0
        %v717 = vperm.slane %v709, 0
        %v718 = vperm.slane %v710, 0
        %719 = vst [vmem:[#allocation2] sm:$0xf] %v715
        %720 = vst [vmem:[#allocation2 + $0x8] sm:$0xf] %v716
        %721 = vst [vmem:[#allocation2 + $0x10] sm:$0xf] %v717
        %722 = vst [vmem:[#allocation2 + $0x18] sm:$0xf] %v718
        %v723 = vperm.slane %v688, 1
        %v724 = vperm.slane %v688, 5
        %v725 = vperm.slane %v689, 1
        %v726 = vperm.slane %v689, 5
        %v731 = vperm.slane %v723, 1
        %v732 = vperm.slane %v724, 1
        %v733 = vperm.slane %v725, 1
        %v734 = vperm.slane %v726, 1
        %735 = vst [vmem:[#allocation2] sm:$0xf0] %v731
        %736 = vst [vmem:[#allocation2 + $0x8] sm:$0xf0] %v732
        %737 = vst [vmem:[#allocation2 + $0x10] sm:$0xf0] %v733
        %738 = vst [vmem:[#allocation2 + $0x18] sm:$0xf0] %v734
        %v739 = vperm.slane %v688, 2
        %v740 = vperm.slane %v688, 6
        %v741 = vperm.slane %v689, 2
        %v742 = vperm.slane %v689, 6
        %v747 = vperm.slane %v739, 2
        %v748 = vperm.slane %v740, 2
        %v749 = vperm.slane %v741, 2
        %v750 = vperm.slane %v742, 2
        %751 = vst [vmem:[#allocation2 + $0x20] sm:$0xf] %v747
        %752 = vst [vmem:[#allocation2 + $0x28] sm:$0xf] %v748
        %753 = vst [vmem:[#allocation2 + $0x30] sm:$0xf] %v749
        %754 = vst [vmem:[#allocation2 + $0x38] sm:$0xf] %v750
        %v755 = vperm.slane %v688, 3
        %v756 = vperm.slane %v688, 7
        %v757 = vperm.slane %v689, 3
        %v758 = vperm.slane %v689, 7
        %v763 = vperm.slane %v755, 3
        %v764 = vperm.slane %v756, 3
        %v765 = vperm.slane %v757, 3
        %v766 = vperm.slane %v758, 3
        %767 = vst [vmem:[#allocation2 + $0x20] sm:$0xf0] %v763
        %768 = vst [vmem:[#allocation2 + $0x28] sm:$0xf0] %v764
        %769 = vst [vmem:[#allocation2 + $0x30] sm:$0xf0] %v765
        %770 = vst [vmem:[#allocation2 + $0x38] sm:$0xf0] %v766
        %v771 = vld [vmem:[#allocation2] sm:$0xff]
        %v772 = vld [vmem:[#allocation2 + $0x8] sm:$0xff]
        %v773 = vld [vmem:[#allocation2 + $0x10] sm:$0xff]
        %v774 = vld [vmem:[#allocation2 + $0x18] sm:$0xff]
        %v775 = vld [vmem:[#allocation2 + $0x20] sm:$0xff]
        %v776 = vld [vmem:[#allocation2 + $0x28] sm:$0xff]
        %v777 = vld [vmem:[#allocation2 + $0x30] sm:$0xff]
        %v778 = vld [vmem:[#allocation2 + $0x38] sm:$0xff]
        %v779 = vmul.f32 %v771, %v186
        %v780 = vmul.f32 %v772, %v186
        %v781 = vmul.f32 %v773, %v186
        %v782 = vmul.f32 %v774, %v186
        %v783 = vmul.f32 %v775, %v187
        %v784 = vmul.f32 %v776, %v187
        %v785 = vmul.f32 %v777, %v187
        %v786 = vmul.f32 %v778, %v187
        %v787 = vmul.f32 %v779, 0.63661975
        %v788 = vmul.f32 %v780, 0.63661975
        %v789 = vmul.f32 %v781, 0.63661975
        %v790 = vmul.f32 %v782, 0.63661975
        %v791 = vmul.f32 %v783, 0.63661975
        %v792 = vmul.f32 %v784, 0.63661975
        %v793 = vmul.f32 %v785, 0.63661975
        %v794 = vmul.f32 %v786, 0.63661975
        %v795 = vadd.f32 %v787, 0.5
        %v796 = vadd.f32 %v788, 0.5
        %v797 = vadd.f32 %v789, 0.5
        %v798 = vadd.f32 %v790, 0.5
        %v799 = vadd.f32 %v791, 0.5
        %v800 = vadd.f32 %v792, 0.5
        %v801 = vadd.f32 %v793, 0.5
        %v802 = vadd.f32 %v794, 0.5
        %v803 = vfloor.f32 %v795
        %v804 = vfloor.f32 %v796
        %v805 = vfloor.f32 %v797
        %v806 = vfloor.f32 %v798
        %v807 = vfloor.f32 %v799
        %v808 = vfloor.f32 %v800
        %v809 = vfloor.f32 %v801
        %v810 = vfloor.f32 %v802
        %v811 = vmul.f32 %v803, 1.5703125
        %v812 = vmul.f32 %v804, 1.5703125
        %v813 = vmul.f32 %v805, 1.5703125
        %v814 = vmul.f32 %v806, 1.5703125
        %v815 = vmul.f32 %v807, 1.5703125
        %v816 = vmul.f32 %v808, 1.5703125
        %v817 = vmul.f32 %v809, 1.5703125
        %v818 = vmul.f32 %v810, 1.5703125
        %v819 = vsub.f32 %v779, %v811
        %v820 = vsub.f32 %v780, %v812
        %v821 = vsub.f32 %v781, %v813
        %v822 = vsub.f32 %v782, %v814
        %v823 = vsub.f32 %v783, %v815
        %v824 = vsub.f32 %v784, %v816
        %v825 = vsub.f32 %v785, %v817
        %v826 = vsub.f32 %v786, %v818
        %v827 = vmul.f32 %v803, 0.0004837513
        %v828 = vmul.f32 %v804, 0.0004837513
        %v829 = vmul.f32 %v805, 0.0004837513
        %v830 = vmul.f32 %v806, 0.0004837513
        %v831 = vmul.f32 %v807, 0.0004837513
        %v832 = vmul.f32 %v808, 0.0004837513
        %v833 = vmul.f32 %v809, 0.0004837513
        %v834 = vmul.f32 %v810, 0.0004837513
        %v835 = vsub.f32 %v819, %v827
        %v836 = vsub.f32 %v820, %v828
        %v837 = vsub.f32 %v821, %v829
        %v838 = vsub.f32 %v822, %v830
        %v839 = vsub.f32 %v823, %v831
        %v840 = vsub.f32 %v824, %v832
        %v841 = vsub.f32 %v825, %v833
        %v842 = vsub.f32 %v826, %v834
        %v843 = vmul.f32 %v803, 7.54979e-08
        %v844 = vmul.f32 %v804, 7.54979e-08
        %v845 = vmul.f32 %v805, 7.54979e-08
        %v846 = vmul.f32 %v806, 7.54979e-08
        %v847 = vmul.f32 %v807, 7.54979e-08
        %v848 = vmul.f32 %v808, 7.54979e-08
        %v849 = vmul.f32 %v809, 7.54979e-08
        %v850 = vmul.f32 %v810, 7.54979e-08
        %v851 = vsub.f32 %v835, %v843
        %v852 = vsub.f32 %v836, %v844
        %v853 = vsub.f32 %v837, %v845
        %v854 = vsub.f32 %v838, %v846
        %v855 = vsub.f32 %v839, %v847
        %v856 = vsub.f32 %v840, %v848
        %v857 = vsub.f32 %v841, %v849
        %v858 = vsub.f32 %v842, %v850
        %v859 = vmul.f32 %v851, %v851
        %v860 = vmul.f32 %v852, %v852
        %v861 = vmul.f32 %v853, %v853
        %v862 = vmul.f32 %v854, %v854
        %v863 = vmul.f32 %v855, %v855
        %v864 = vmul.f32 %v856, %v856
        %v865 = vmul.f32 %v857, %v857
        %v866 = vmul.f32 %v858, %v858
        %v867 = vmul.f32 %v851, %v859
        %v868 = vmul.f32 %v852, %v860
        %v869 = vmul.f32 %v853, %v861
        %v870 = vmul.f32 %v854, %v862
        %v871 = vmul.f32 %v855, %v863
        %v872 = vmul.f32 %v856, %v864
        %v873 = vmul.f32 %v857, %v865
        %v874 = vmul.f32 %v858, %v866
        %v875 = vmul.f32 %v859, -0.00019515296
        %v876 = vmul.f32 %v860, -0.00019515296
        %v877 = vmul.f32 %v861, -0.00019515296
        %v878 = vmul.f32 %v862, -0.00019515296
        %v879 = vmul.f32 %v863, -0.00019515296
        %v880 = vmul.f32 %v864, -0.00019515296
        %v881 = vmul.f32 %v865, -0.00019515296
        %v882 = vmul.f32 %v866, -0.00019515296
        %v883 = vadd.f32 %v875, 0.008332161
        %v884 = vadd.f32 %v876, 0.008332161
        %v885 = vadd.f32 %v877, 0.008332161
        %v886 = vadd.f32 %v878, 0.008332161
        %v887 = vadd.f32 %v879, 0.008332161
        %v888 = vadd.f32 %v880, 0.008332161
        %v889 = vadd.f32 %v881, 0.008332161
        %v890 = vadd.f32 %v882, 0.008332161
        %v891 = vmul.f32 %v859, %v883
        %v892 = vmul.f32 %v860, %v884
        %v893 = vmul.f32 %v861, %v885
        %v894 = vmul.f32 %v862, %v886
        %v895 = vmul.f32 %v863, %v887
        %v896 = vmul.f32 %v864, %v888
        %v897 = vmul.f32 %v865, %v889
        %v898 = vmul.f32 %v866, %v890
        %v899 = vadd.f32 %v891, -0.16666655
        %v900 = vadd.f32 %v892, -0.16666655
        %v901 = vadd.f32 %v893, -0.16666655
        %v902 = vadd.f32 %v894, -0.16666655
        %v903 = vadd.f32 %v895, -0.16666655
        %v904 = vadd.f32 %v896, -0.16666655
        %v905 = vadd.f32 %v897, -0.16666655
        %v906 = vadd.f32 %v898, -0.16666655
        %v907 = vmul.f32 %v867, %v899
        %v908 = vmul.f32 %v868, %v900
        %v909 = vmul.f32 %v869, %v901
        %v910 = vmul.f32 %v870, %v902
        %v911 = vmul.f32 %v871, %v903
        %v912 = vmul.f32 %v872, %v904
        %v913 = vmul.f32 %v873, %v905
        %v914 = vmul.f32 %v874, %v906
        %v915 = vadd.f32 %v851, %v907
        %v916 = vadd.f32 %v852, %v908
        %v917 = vadd.f32 %v853, %v909
        %v918 = vadd.f32 %v854, %v910
        %v919 = vadd.f32 %v855, %v911
        %v920 = vadd.f32 %v856, %v912
        %v921 = vadd.f32 %v857, %v913
        %v922 = vadd.f32 %v858, %v914
        %v923 = vmul.f32 %v859, 2.4433157e-05
        %v924 = vmul.f32 %v860, 2.4433157e-05
        %v925 = vmul.f32 %v861, 2.4433157e-05
        %v926 = vmul.f32 %v862, 2.4433157e-05
        %v927 = vmul.f32 %v863, 2.4433157e-05
        %v928 = vmul.f32 %v864, 2.4433157e-05
        %v929 = vmul.f32 %v865, 2.4433157e-05
        %v930 = vmul.f32 %v866, 2.4433157e-05
        %v931 = vadd.f32 %v923, -0.0013887316
        %v932 = vadd.f32 %v924, -0.0013887316
        %v933 = vadd.f32 %v925, -0.0013887316
        %v934 = vadd.f32 %v926, -0.0013887316
        %v935 = vadd.f32 %v927, -0.0013887316
        %v936 = vadd.f32 %v928, -0.0013887316
        %v937 = vadd.f32 %v929, -0.0013887316
        %v938 = vadd.f32 %v930, -0.0013887316
        %v939 = vmul.f32 %v859, %v931
        %v940 = vmul.f32 %v860, %v932
        %v941 = vmul.f32 %v861, %v933
        %v942 = vmul.f32 %v862, %v934
        %v943 = vmul.f32 %v863, %v935
        %v944 = vmul.f32 %v864, %v936
        %v945 = vmul.f32 %v865, %v937
        %v946 = vmul.f32 %v866, %v938
        %v947 = vadd.f32 %v939, 0.041666646
        %v948 = vadd.f32 %v940, 0.041666646
        %v949 = vadd.f32 %v941, 0.041666646
        %v950 = vadd.f32 %v942, 0.041666646
        %v951 = vadd.f32 %v943, 0.041666646
        %v952 = vadd.f32 %v944, 0.041666646
        %v953 = vadd.f32 %v945, 0.041666646
        %v954 = vadd.f32 %v946, 0.041666646
        %v955 = vmul.f32 %v859, %v947
        %v956 = vmul.f32 %v860, %v948
        %v957 = vmul.f32 %v861, %v949
        %v958 = vmul.f32 %v862, %v950
        %v959 = vmul.f32 %v863, %v951
        %v960 = vmul.f32 %v864, %v952
        %v961 = vmul.f32 %v865, %v953
        %v962 = vmul.f32 %v866, %v954
        %v963 = vadd.f32 %v955, -0.5
        %v964 = vadd.f32 %v956, -0.5
        %v965 = vadd.f32 %v957, -0.5
        %v966 = vadd.f32 %v958, -0.5
        %v967 = vadd.f32 %v959, -0.5
        %v968 = vadd.f32 %v960, -0.5
        %v969 = vadd.f32 %v961, -0.5
        %v970 = vadd.f32 %v962, -0.5
        %v971 = vmul.f32 %v859, %v963
        %v972 = vmul.f32 %v860, %v964
        %v973 = vmul.f32 %v861, %v965
        %v974 = vmul.f32 %v862, %v966
        %v975 = vmul.f32 %v863, %v967
        %v976 = vmul.f32 %v864, %v968
        %v977 = vmul.f32 %v865, %v969
        %v978 = vmul.f32 %v866, %v970
        %v979 = vadd.f32 %v971, 1.0
        %v980 = vadd.f32 %v972, 1.0
        %v981 = vadd.f32 %v973, 1.0
        %v982 = vadd.f32 %v974, 1.0
        %v983 = vadd.f32 %v975, 1.0
        %v984 = vadd.f32 %v976, 1.0
        %v985 = vadd.f32 %v977, 1.0
        %v986 = vadd.f32 %v978, 1.0
        %v987 = vcvt.f32.s32.to.zero.pseudo %v803
        %v988 = vcvt.f32.s32.to.zero.pseudo %v804
        %v989 = vcvt.f32.s32.to.zero.pseudo %v805
        %v990 = vcvt.f32.s32.to.zero.pseudo %v806
        %v991 = vcvt.f32.s32.to.zero.pseudo %v807
        %v992 = vcvt.f32.s32.to.zero.pseudo %v808
        %v993 = vcvt.f32.s32.to.zero.pseudo %v809
        %v994 = vcvt.f32.s32.to.zero.pseudo %v810
        %v995 = vand.u32 %v987, 1
        %v996 = vand.u32 %v988, 1
        %v997 = vand.u32 %v989, 1
        %v998 = vand.u32 %v990, 1
        %v999 = vand.u32 %v991, 1
        %v1000 = vand.u32 %v992, 1
        %v1001 = vand.u32 %v993, 1
        %v1002 = vand.u32 %v994, 1
        %vm1003 = vcmp.eq.s32.totalorder %v995, 1
        %vm1004 = vcmp.eq.s32.totalorder %v996, 1
        %vm1005 = vcmp.eq.s32.totalorder %v997, 1
        %vm1006 = vcmp.eq.s32.totalorder %v998, 1
        %vm1007 = vcmp.eq.s32.totalorder %v999, 1
        %vm1008 = vcmp.eq.s32.totalorder %v1000, 1
        %vm1009 = vcmp.eq.s32.totalorder %v1001, 1
        %vm1010 = vcmp.eq.s32.totalorder %v1002, 1
        %v1011 = vand.u32 %v987, 2
        %v1012 = vand.u32 %v988, 2
        %v1013 = vand.u32 %v989, 2
        %v1014 = vand.u32 %v990, 2
        %v1015 = vand.u32 %v991, 2
        %v1016 = vand.u32 %v992, 2
        %v1017 = vand.u32 %v993, 2
        %v1018 = vand.u32 %v994, 2
        %vm1019 = vcmp.eq.s32.totalorder %v1011, 0
        %vm1020 = vcmp.eq.s32.totalorder %v1012, 0
        %vm1021 = vcmp.eq.s32.totalorder %v1013, 0
        %vm1022 = vcmp.eq.s32.totalorder %v1014, 0
        %vm1023 = vcmp.eq.s32.totalorder %v1015, 0
        %vm1024 = vcmp.eq.s32.totalorder %v1016, 0
        %vm1025 = vcmp.eq.s32.totalorder %v1017, 0
        %vm1026 = vcmp.eq.s32.totalorder %v1018, 0
        %v1027 = vsel %vm1019, 1.0, -1.0
        %v1028 = vsel %vm1020, 1.0, -1.0
        %v1029 = vsel %vm1021, 1.0, -1.0
        %v1030 = vsel %vm1022, 1.0, -1.0
        %v1031 = vsel %vm1023, 1.0, -1.0
        %v1032 = vsel %vm1024, 1.0, -1.0
        %v1033 = vsel %vm1025, 1.0, -1.0
        %v1034 = vsel %vm1026, 1.0, -1.0
        %v1035 = vadd.s32 %v987, 1
        %v1036 = vadd.s32 %v988, 1
        %v1037 = vadd.s32 %v989, 1
        %v1038 = vadd.s32 %v990, 1
        %v1039 = vadd.s32 %v991, 1
        %v1040 = vadd.s32 %v992, 1
        %v1041 = vadd.s32 %v993, 1
        %v1042 = vadd.s32 %v994, 1
        %v1043 = vand.u32 %v1035, 2
        %v1044 = vand.u32 %v1036, 2
        %v1045 = vand.u32 %v1037, 2
        %v1046 = vand.u32 %v1038, 2
        %v1047 = vand.u32 %v1039, 2
        %v1048 = vand.u32 %v1040, 2
        %v1049 = vand.u32 %v1041, 2
        %v1050 = vand.u32 %v1042, 2
        %vm1051 = vcmp.eq.s32.totalorder %v1043, 0
        %vm1052 = vcmp.eq.s32.totalorder %v1044, 0
        %vm1053 = vcmp.eq.s32.totalorder %v1045, 0
        %vm1054 = vcmp.eq.s32.totalorder %v1046, 0
        %vm1055 = vcmp.eq.s32.totalorder %v1047, 0
        %vm1056 = vcmp.eq.s32.totalorder %v1048, 0
        %vm1057 = vcmp.eq.s32.totalorder %v1049, 0
        %vm1058 = vcmp.eq.s32.totalorder %v1050, 0
        %v1059 = vsel %vm1051, 1.0, -1.0
        %v1060 = vsel %vm1052, 1.0, -1.0
        %v1061 = vsel %vm1053, 1.0, -1.0
        %v1062 = vsel %vm1054, 1.0, -1.0
        %v1063 = vsel %vm1055, 1.0, -1.0
        %v1064 = vsel %vm1056, 1.0, -1.0
        %v1065 = vsel %vm1057, 1.0, -1.0
        %v1066 = vsel %vm1058, 1.0, -1.0
        %v1067 = vsel %vm1003, %v979, %v915
        %v1068 = vsel %vm1004, %v980, %v916
        %v1069 = vsel %vm1005, %v981, %v917
        %v1070 = vsel %vm1006, %v982, %v918
        %v1071 = vsel %vm1007, %v983, %v919
        %v1072 = vsel %vm1008, %v984, %v920
        %v1073 = vsel %vm1009, %v985, %v921
        %v1074 = vsel %vm1010, %v986, %v922
        %v1075 = vmul.f32 %v1067, %v1027
        %v1076 = vmul.f32 %v1068, %v1028
        %v1077 = vmul.f32 %v1069, %v1029
        %v1078 = vmul.f32 %v1070, %v1030
        %v1079 = vmul.f32 %v1071, %v1031
        %v1080 = vmul.f32 %v1072, %v1032
        %v1081 = vmul.f32 %v1073, %v1033
        %v1082 = vmul.f32 %v1074, %v1034
        %v1083 = vsel %vm1003, %v915, %v979
        %v1084 = vsel %vm1004, %v916, %v980
        %v1085 = vsel %vm1005, %v917, %v981
        %v1086 = vsel %vm1006, %v918, %v982
        %v1087 = vsel %vm1007, %v919, %v983
        %v1088 = vsel %vm1008, %v920, %v984
        %v1089 = vsel %vm1009, %v921, %v985
        %v1090 = vsel %vm1010, %v922, %v986
        %v1091 = vmul.f32 %v1083, %v1059
        %v1092 = vmul.f32 %v1084, %v1060
        %v1093 = vmul.f32 %v1085, %v1061
        %v1094 = vmul.f32 %v1086, %v1062
        %v1095 = vmul.f32 %v1087, %v1063
        %v1096 = vmul.f32 %v1088, %v1064
        %v1097 = vmul.f32 %v1089, %v1065
        %v1098 = vmul.f32 %v1090, %v1066
        %v1107 = vrot.slane %v1075, 4
        %v1108 = vrot.slane %v1076, 4
        %v1109 = vrot.slane %v1077, 4
        %v1110 = vrot.slane %v1078, 4
        %v1111 = vrot.slane %v1079, 4
        %v1112 = vsel %vm607, %v1107, %v1111
        %v1113 = vrot.slane %v1080, 4
        %v1114 = vsel %vm607, %v1108, %v1113
        %v1115 = vrot.slane %v1081, 4
        %v1116 = vsel %vm607, %v1109, %v1115
        %v1117 = vrot.slane %v1082, 4
        %v1118 = vsel %vm607, %v1110, %v1117
        %1131 = vst [vmem:[%s134 + $0x20] sm:$0xf0] %v1107
        %1132 = vst [vmem:[%s134 + $0x28] sm:$0xf0] %v1108
        %1133 = vst [vmem:[%s134 + $0x30] sm:$0xf0] %v1109
        %1134 = vst [vmem:[%s134 + $0x38] sm:$0xf0] %v1110
        %1135 = vst [vmem:[%s134 + $0x120] sm:$0xff] %v1112
        %1136 = vst [vmem:[%s134 + $0x128] sm:$0xff] %v1114
        %1137 = vst [vmem:[%s134 + $0x130] sm:$0xff] %v1116
        %1138 = vst [vmem:[%s134 + $0x138] sm:$0xff] %v1118
        %1139 = vst [vmem:[%s134 + $0x220] sm:$0xf] %v1111
        %1140 = vst [vmem:[%s134 + $0x228] sm:$0xf] %v1113
        %1141 = vst [vmem:[%s134 + $0x230] sm:$0xf] %v1115
        %1142 = vst [vmem:[%s134 + $0x238] sm:$0xf] %v1117
        %v1151 = vrot.slane %v1091, 4
        %v1152 = vrot.slane %v1092, 4
        %v1153 = vrot.slane %v1093, 4
        %v1154 = vrot.slane %v1094, 4
        %v1155 = vrot.slane %v1095, 4
        %v1156 = vsel %vm607, %v1151, %v1155
        %v1157 = vrot.slane %v1096, 4
        %v1158 = vsel %vm607, %v1152, %v1157
        %v1159 = vrot.slane %v1097, 4
        %v1160 = vsel %vm607, %v1153, %v1159
        %v1161 = vrot.slane %v1098, 4
        %v1162 = vsel %vm607, %v1154, %v1161
        %1175 = vst [vmem:[%s134 + $0x220] sm:$0xf0] %v1151
        %1176 = vst [vmem:[%s134 + $0x228] sm:$0xf0] %v1152
        %1177 = vst [vmem:[%s134 + $0x230] sm:$0xf0] %v1153
        %1178 = vst [vmem:[%s134 + $0x238] sm:$0xf0] %v1154
        %1179 = vst [vmem:[%s134 + $0x320] sm:$0xff] %v1156
        %1180 = vst [vmem:[%s134 + $0x328] sm:$0xff] %v1158
        %1181 = vst [vmem:[%s134 + $0x330] sm:$0xff] %v1160
        %1182 = vst [vmem:[%s134 + $0x338] sm:$0xff] %v1162
        %1183 = vst [vmem:[%s134 + $0x420] sm:$0xf] %v1155
        %1184 = vst [vmem:[%s134 + $0x428] sm:$0xf] %v1157
        %1185 = vst [vmem:[%s134 + $0x430] sm:$0xf] %v1159
        %1186 = vst [vmem:[%s134 + $0x438] sm:$0xf] %v1161
        %v1187 = vld [vmem:[%s115 + $0x20] sm:$0xff]
        %v1188 = vld [vmem:[%s115 + $0x28] sm:$0xff]
        %1191 = vst [vmem:[#allocation1] ss:$2 sm:$0xff] %v1187
        %s1192 = scalar_lea.vmem [#allocation1], 16
        %1193 = vst [vmem:[%s1192] ss:$2 sm:$0xff] %v1188
        %v1194 = vld.sshfl [vmem:[#allocation1] sm:$0xff pattern:$0x75316420]
        %v1195 = vld.sshfl [vmem:[#allocation1 + $0x8] sm:$0xff pattern:$0x75316420]
        %v1196 = vld.sshfl [vmem:[#allocation1 + $0x10] sm:$0xff pattern:$0x75316420]
        %v1197 = vld.sshfl [vmem:[#allocation1 + $0x18] sm:$0xff pattern:$0x75316420]
        %1202 = vst [vmem:[%s134 + $0x40] sm:$0xf] %v1194
        %1203 = vst [vmem:[%s134 + $0x48] sm:$0xf] %v1195
        %1204 = vst [vmem:[%s134 + $0x50] sm:$0xf] %v1196
        %1205 = vst [vmem:[%s134 + $0x58] sm:$0xf] %v1197
        %v1206 = vperm.slane %v1187, 0
        %v1207 = vperm.slane %v1187, 4
        %v1208 = vperm.slane %v1188, 0
        %v1209 = vperm.slane %v1188, 4
        %v1214 = vperm.slane %v1206, 0
        %v1215 = vperm.slane %v1207, 0
        %v1216 = vperm.slane %v1208, 0
        %v1217 = vperm.slane %v1209, 0
        %1218 = vst [vmem:[#allocation2] sm:$0xf] %v1214
        %1219 = vst [vmem:[#allocation2 + $0x8] sm:$0xf] %v1215
        %1220 = vst [vmem:[#allocation2 + $0x10] sm:$0xf] %v1216
        %1221 = vst [vmem:[#allocation2 + $0x18] sm:$0xf] %v1217
        %v1222 = vperm.slane %v1187, 1
        %v1223 = vperm.slane %v1187, 5
        %v1224 = vperm.slane %v1188, 1
        %v1225 = vperm.slane %v1188, 5
        %v1230 = vperm.slane %v1222, 1
        %v1231 = vperm.slane %v1223, 1
        %v1232 = vperm.slane %v1224, 1
        %v1233 = vperm.slane %v1225, 1
        %1234 = vst [vmem:[#allocation2] sm:$0xf0] %v1230
        %1235 = vst [vmem:[#allocation2 + $0x8] sm:$0xf0] %v1231
        %1236 = vst [vmem:[#allocation2 + $0x10] sm:$0xf0] %v1232
        %1237 = vst [vmem:[#allocation2 + $0x18] sm:$0xf0] %v1233
        %v1238 = vperm.slane %v1187, 2
        %v1239 = vperm.slane %v1187, 6
        %v1240 = vperm.slane %v1188, 2
        %v1241 = vperm.slane %v1188, 6
        %v1246 = vperm.slane %v1238, 2
        %v1247 = vperm.slane %v1239, 2
        %v1248 = vperm.slane %v1240, 2
        %v1249 = vperm.slane %v1241, 2
        %1250 = vst [vmem:[#allocation2 + $0x20] sm:$0xf] %v1246
        %1251 = vst [vmem:[#allocation2 + $0x28] sm:$0xf] %v1247
        %1252 = vst [vmem:[#allocation2 + $0x30] sm:$0xf] %v1248
        %1253 = vst [vmem:[#allocation2 + $0x38] sm:$0xf] %v1249
        %v1254 = vperm.slane %v1187, 3
        %v1255 = vperm.slane %v1187, 7
        %v1256 = vperm.slane %v1188, 3
        %v1257 = vperm.slane %v1188, 7
        %v1262 = vperm.slane %v1254, 3
        %v1263 = vperm.slane %v1255, 3
        %v1264 = vperm.slane %v1256, 3
        %v1265 = vperm.slane %v1257, 3
        %1266 = vst [vmem:[#allocation2 + $0x20] sm:$0xf0] %v1262
        %1267 = vst [vmem:[#allocation2 + $0x28] sm:$0xf0] %v1263
        %1268 = vst [vmem:[#allocation2 + $0x30] sm:$0xf0] %v1264
        %1269 = vst [vmem:[#allocation2 + $0x38] sm:$0xf0] %v1265
        %v1270 = vld [vmem:[#allocation2] sm:$0xff]
        %v1271 = vld [vmem:[#allocation2 + $0x8] sm:$0xff]
        %v1272 = vld [vmem:[#allocation2 + $0x10] sm:$0xff]
        %v1273 = vld [vmem:[#allocation2 + $0x18] sm:$0xff]
        %v1274 = vld [vmem:[#allocation2 + $0x20] sm:$0xff]
        %v1275 = vld [vmem:[#allocation2 + $0x28] sm:$0xff]
        %v1276 = vld [vmem:[#allocation2 + $0x30] sm:$0xff]
        %v1277 = vld [vmem:[#allocation2 + $0x38] sm:$0xff]
        %v1278 = vmul.f32 %v1270, %v186
        %v1279 = vmul.f32 %v1271, %v186
        %v1280 = vmul.f32 %v1272, %v186
        %v1281 = vmul.f32 %v1273, %v186
        %v1282 = vmul.f32 %v1274, %v187
        %v1283 = vmul.f32 %v1275, %v187
        %v1284 = vmul.f32 %v1276, %v187
        %v1285 = vmul.f32 %v1277, %v187
        %v1286 = vmul.f32 %v1278, 0.63661975
        %v1287 = vmul.f32 %v1279, 0.63661975
        %v1288 = vmul.f32 %v1280, 0.63661975
        %v1289 = vmul.f32 %v1281, 0.63661975
        %v1290 = vmul.f32 %v1282, 0.63661975
        %v1291 = vmul.f32 %v1283, 0.63661975
        %v1292 = vmul.f32 %v1284, 0.63661975
        %v1293 = vmul.f32 %v1285, 0.63661975
        %v1294 = vadd.f32 %v1286, 0.5
        %v1295 = vadd.f32 %v1287, 0.5
        %v1296 = vadd.f32 %v1288, 0.5
        %v1297 = vadd.f32 %v1289, 0.5
        %v1298 = vadd.f32 %v1290, 0.5
        %v1299 = vadd.f32 %v1291, 0.5
        %v1300 = vadd.f32 %v1292, 0.5
        %v1301 = vadd.f32 %v1293, 0.5
        %v1302 = vfloor.f32 %v1294
        %v1303 = vfloor.f32 %v1295
        %v1304 = vfloor.f32 %v1296
        %v1305 = vfloor.f32 %v1297
        %v1306 = vfloor.f32 %v1298
        %v1307 = vfloor.f32 %v1299
        %v1308 = vfloor.f32 %v1300
        %v1309 = vfloor.f32 %v1301
        %v1310 = vmul.f32 %v1302, 1.5703125
        %v1311 = vmul.f32 %v1303, 1.5703125
        %v1312 = vmul.f32 %v1304, 1.5703125
        %v1313 = vmul.f32 %v1305, 1.5703125
        %v1314 = vmul.f32 %v1306, 1.5703125
        %v1315 = vmul.f32 %v1307, 1.5703125
        %v1316 = vmul.f32 %v1308, 1.5703125
        %v1317 = vmul.f32 %v1309, 1.5703125
        %v1318 = vsub.f32 %v1278, %v1310
        %v1319 = vsub.f32 %v1279, %v1311
        %v1320 = vsub.f32 %v1280, %v1312
        %v1321 = vsub.f32 %v1281, %v1313
        %v1322 = vsub.f32 %v1282, %v1314
        %v1323 = vsub.f32 %v1283, %v1315
        %v1324 = vsub.f32 %v1284, %v1316
        %v1325 = vsub.f32 %v1285, %v1317
        %v1326 = vmul.f32 %v1302, 0.0004837513
        %v1327 = vmul.f32 %v1303, 0.0004837513
        %v1328 = vmul.f32 %v1304, 0.0004837513
        %v1329 = vmul.f32 %v1305, 0.0004837513
        %v1330 = vmul.f32 %v1306, 0.0004837513
        %v1331 = vmul.f32 %v1307, 0.0004837513
        %v1332 = vmul.f32 %v1308, 0.0004837513
        %v1333 = vmul.f32 %v1309, 0.0004837513
        %v1334 = vsub.f32 %v1318, %v1326
        %v1335 = vsub.f32 %v1319, %v1327
        %v1336 = vsub.f32 %v1320, %v1328
        %v1337 = vsub.f32 %v1321, %v1329
        %v1338 = vsub.f32 %v1322, %v1330
        %v1339 = vsub.f32 %v1323, %v1331
        %v1340 = vsub.f32 %v1324, %v1332
        %v1341 = vsub.f32 %v1325, %v1333
        %v1342 = vmul.f32 %v1302, 7.54979e-08
        %v1343 = vmul.f32 %v1303, 7.54979e-08
        %v1344 = vmul.f32 %v1304, 7.54979e-08
        %v1345 = vmul.f32 %v1305, 7.54979e-08
        %v1346 = vmul.f32 %v1306, 7.54979e-08
        %v1347 = vmul.f32 %v1307, 7.54979e-08
        %v1348 = vmul.f32 %v1308, 7.54979e-08
        %v1349 = vmul.f32 %v1309, 7.54979e-08
        %v1350 = vsub.f32 %v1334, %v1342
        %v1351 = vsub.f32 %v1335, %v1343
        %v1352 = vsub.f32 %v1336, %v1344
        %v1353 = vsub.f32 %v1337, %v1345
        %v1354 = vsub.f32 %v1338, %v1346
        %v1355 = vsub.f32 %v1339, %v1347
        %v1356 = vsub.f32 %v1340, %v1348
        %v1357 = vsub.f32 %v1341, %v1349
        %v1358 = vmul.f32 %v1350, %v1350
        %v1359 = vmul.f32 %v1351, %v1351
        %v1360 = vmul.f32 %v1352, %v1352
        %v1361 = vmul.f32 %v1353, %v1353
        %v1362 = vmul.f32 %v1354, %v1354
        %v1363 = vmul.f32 %v1355, %v1355
        %v1364 = vmul.f32 %v1356, %v1356
        %v1365 = vmul.f32 %v1357, %v1357
        %v1366 = vmul.f32 %v1350, %v1358
        %v1367 = vmul.f32 %v1351, %v1359
        %v1368 = vmul.f32 %v1352, %v1360
        %v1369 = vmul.f32 %v1353, %v1361
        %v1370 = vmul.f32 %v1354, %v1362
        %v1371 = vmul.f32 %v1355, %v1363
        %v1372 = vmul.f32 %v1356, %v1364
        %v1373 = vmul.f32 %v1357, %v1365
        %v1374 = vmul.f32 %v1358, -0.00019515296
        %v1375 = vmul.f32 %v1359, -0.00019515296
        %v1376 = vmul.f32 %v1360, -0.00019515296
        %v1377 = vmul.f32 %v1361, -0.00019515296
        %v1378 = vmul.f32 %v1362, -0.00019515296
        %v1379 = vmul.f32 %v1363, -0.00019515296
        %v1380 = vmul.f32 %v1364, -0.00019515296
        %v1381 = vmul.f32 %v1365, -0.00019515296
        %v1382 = vadd.f32 %v1374, 0.008332161
        %v1383 = vadd.f32 %v1375, 0.008332161
        %v1384 = vadd.f32 %v1376, 0.008332161
        %v1385 = vadd.f32 %v1377, 0.008332161
        %v1386 = vadd.f32 %v1378, 0.008332161
        %v1387 = vadd.f32 %v1379, 0.008332161
        %v1388 = vadd.f32 %v1380, 0.008332161
        %v1389 = vadd.f32 %v1381, 0.008332161
        %v1390 = vmul.f32 %v1358, %v1382
        %v1391 = vmul.f32 %v1359, %v1383
        %v1392 = vmul.f32 %v1360, %v1384
        %v1393 = vmul.f32 %v1361, %v1385
        %v1394 = vmul.f32 %v1362, %v1386
        %v1395 = vmul.f32 %v1363, %v1387
        %v1396 = vmul.f32 %v1364, %v1388
        %v1397 = vmul.f32 %v1365, %v1389
        %v1398 = vadd.f32 %v1390, -0.16666655
        %v1399 = vadd.f32 %v1391, -0.16666655
        %v1400 = vadd.f32 %v1392, -0.16666655
        %v1401 = vadd.f32 %v1393, -0.16666655
        %v1402 = vadd.f32 %v1394, -0.16666655
        %v1403 = vadd.f32 %v1395, -0.16666655
        %v1404 = vadd.f32 %v1396, -0.16666655
        %v1405 = vadd.f32 %v1397, -0.16666655
        %v1406 = vmul.f32 %v1366, %v1398
        %v1407 = vmul.f32 %v1367, %v1399
        %v1408 = vmul.f32 %v1368, %v1400
        %v1409 = vmul.f32 %v1369, %v1401
        %v1410 = vmul.f32 %v1370, %v1402
        %v1411 = vmul.f32 %v1371, %v1403
        %v1412 = vmul.f32 %v1372, %v1404
        %v1413 = vmul.f32 %v1373, %v1405
        %v1414 = vadd.f32 %v1350, %v1406
        %v1415 = vadd.f32 %v1351, %v1407
        %v1416 = vadd.f32 %v1352, %v1408
        %v1417 = vadd.f32 %v1353, %v1409
        %v1418 = vadd.f32 %v1354, %v1410
        %v1419 = vadd.f32 %v1355, %v1411
        %v1420 = vadd.f32 %v1356, %v1412
        %v1421 = vadd.f32 %v1357, %v1413
        %v1422 = vmul.f32 %v1358, 2.4433157e-05
        %v1423 = vmul.f32 %v1359, 2.4433157e-05
        %v1424 = vmul.f32 %v1360, 2.4433157e-05
        %v1425 = vmul.f32 %v1361, 2.4433157e-05
        %v1426 = vmul.f32 %v1362, 2.4433157e-05
        %v1427 = vmul.f32 %v1363, 2.4433157e-05
        %v1428 = vmul.f32 %v1364, 2.4433157e-05
        %v1429 = vmul.f32 %v1365, 2.4433157e-05
        %v1430 = vadd.f32 %v1422, -0.0013887316
        %v1431 = vadd.f32 %v1423, -0.0013887316
        %v1432 = vadd.f32 %v1424, -0.0013887316
        %v1433 = vadd.f32 %v1425, -0.0013887316
        %v1434 = vadd.f32 %v1426, -0.0013887316
        %v1435 = vadd.f32 %v1427, -0.0013887316
        %v1436 = vadd.f32 %v1428, -0.0013887316
        %v1437 = vadd.f32 %v1429, -0.0013887316
        %v1438 = vmul.f32 %v1358, %v1430
        %v1439 = vmul.f32 %v1359, %v1431
        %v1440 = vmul.f32 %v1360, %v1432
        %v1441 = vmul.f32 %v1361, %v1433
        %v1442 = vmul.f32 %v1362, %v1434
        %v1443 = vmul.f32 %v1363, %v1435
        %v1444 = vmul.f32 %v1364, %v1436
        %v1445 = vmul.f32 %v1365, %v1437
        %v1446 = vadd.f32 %v1438, 0.041666646
        %v1447 = vadd.f32 %v1439, 0.041666646
        %v1448 = vadd.f32 %v1440, 0.041666646
        %v1449 = vadd.f32 %v1441, 0.041666646
        %v1450 = vadd.f32 %v1442, 0.041666646
        %v1451 = vadd.f32 %v1443, 0.041666646
        %v1452 = vadd.f32 %v1444, 0.041666646
        %v1453 = vadd.f32 %v1445, 0.041666646
        %v1454 = vmul.f32 %v1358, %v1446
        %v1455 = vmul.f32 %v1359, %v1447
        %v1456 = vmul.f32 %v1360, %v1448
        %v1457 = vmul.f32 %v1361, %v1449
        %v1458 = vmul.f32 %v1362, %v1450
        %v1459 = vmul.f32 %v1363, %v1451
        %v1460 = vmul.f32 %v1364, %v1452
        %v1461 = vmul.f32 %v1365, %v1453
        %v1462 = vadd.f32 %v1454, -0.5
        %v1463 = vadd.f32 %v1455, -0.5
        %v1464 = vadd.f32 %v1456, -0.5
        %v1465 = vadd.f32 %v1457, -0.5
        %v1466 = vadd.f32 %v1458, -0.5
        %v1467 = vadd.f32 %v1459, -0.5
        %v1468 = vadd.f32 %v1460, -0.5
        %v1469 = vadd.f32 %v1461, -0.5
        %v1470 = vmul.f32 %v1358, %v1462
        %v1471 = vmul.f32 %v1359, %v1463
        %v1472 = vmul.f32 %v1360, %v1464
        %v1473 = vmul.f32 %v1361, %v1465
        %v1474 = vmul.f32 %v1362, %v1466
        %v1475 = vmul.f32 %v1363, %v1467
        %v1476 = vmul.f32 %v1364, %v1468
        %v1477 = vmul.f32 %v1365, %v1469
        %v1478 = vadd.f32 %v1470, 1.0
        %v1479 = vadd.f32 %v1471, 1.0
        %v1480 = vadd.f32 %v1472, 1.0
        %v1481 = vadd.f32 %v1473, 1.0
        %v1482 = vadd.f32 %v1474, 1.0
        %v1483 = vadd.f32 %v1475, 1.0
        %v1484 = vadd.f32 %v1476, 1.0
        %v1485 = vadd.f32 %v1477, 1.0
        %v1486 = vcvt.f32.s32.to.zero.pseudo %v1302
        %v1487 = vcvt.f32.s32.to.zero.pseudo %v1303
        %v1488 = vcvt.f32.s32.to.zero.pseudo %v1304
        %v1489 = vcvt.f32.s32.to.zero.pseudo %v1305
        %v1490 = vcvt.f32.s32.to.zero.pseudo %v1306
        %v1491 = vcvt.f32.s32.to.zero.pseudo %v1307
        %v1492 = vcvt.f32.s32.to.zero.pseudo %v1308
        %v1493 = vcvt.f32.s32.to.zero.pseudo %v1309
        %v1494 = vand.u32 %v1486, 1
        %v1495 = vand.u32 %v1487, 1
        %v1496 = vand.u32 %v1488, 1
        %v1497 = vand.u32 %v1489, 1
        %v1498 = vand.u32 %v1490, 1
        %v1499 = vand.u32 %v1491, 1
        %v1500 = vand.u32 %v1492, 1
        %v1501 = vand.u32 %v1493, 1
        %vm1502 = vcmp.eq.s32.totalorder %v1494, 1
        %vm1503 = vcmp.eq.s32.totalorder %v1495, 1
        %vm1504 = vcmp.eq.s32.totalorder %v1496, 1
        %vm1505 = vcmp.eq.s32.totalorder %v1497, 1
        %vm1506 = vcmp.eq.s32.totalorder %v1498, 1
        %vm1507 = vcmp.eq.s32.totalorder %v1499, 1
        %vm1508 = vcmp.eq.s32.totalorder %v1500, 1
        %vm1509 = vcmp.eq.s32.totalorder %v1501, 1
        %v1510 = vand.u32 %v1486, 2
        %v1511 = vand.u32 %v1487, 2
        %v1512 = vand.u32 %v1488, 2
        %v1513 = vand.u32 %v1489, 2
        %v1514 = vand.u32 %v1490, 2
        %v1515 = vand.u32 %v1491, 2
        %v1516 = vand.u32 %v1492, 2
        %v1517 = vand.u32 %v1493, 2
        %vm1518 = vcmp.eq.s32.totalorder %v1510, 0
        %vm1519 = vcmp.eq.s32.totalorder %v1511, 0
        %vm1520 = vcmp.eq.s32.totalorder %v1512, 0
        %vm1521 = vcmp.eq.s32.totalorder %v1513, 0
        %vm1522 = vcmp.eq.s32.totalorder %v1514, 0
        %vm1523 = vcmp.eq.s32.totalorder %v1515, 0
        %vm1524 = vcmp.eq.s32.totalorder %v1516, 0
        %vm1525 = vcmp.eq.s32.totalorder %v1517, 0
        %v1526 = vsel %vm1518, 1.0, -1.0
        %v1527 = vsel %vm1519, 1.0, -1.0
        %v1528 = vsel %vm1520, 1.0, -1.0
        %v1529 = vsel %vm1521, 1.0, -1.0
        %v1530 = vsel %vm1522, 1.0, -1.0
        %v1531 = vsel %vm1523, 1.0, -1.0
        %v1532 = vsel %vm1524, 1.0, -1.0
        %v1533 = vsel %vm1525, 1.0, -1.0
        %v1534 = vadd.s32 %v1486, 1
        %v1535 = vadd.s32 %v1487, 1
        %v1536 = vadd.s32 %v1488, 1
        %v1537 = vadd.s32 %v1489, 1
        %v1538 = vadd.s32 %v1490, 1
        %v1539 = vadd.s32 %v1491, 1
        %v1540 = vadd.s32 %v1492, 1
        %v1541 = vadd.s32 %v1493, 1
        %v1542 = vand.u32 %v1534, 2
        %v1543 = vand.u32 %v1535, 2
        %v1544 = vand.u32 %v1536, 2
        %v1545 = vand.u32 %v1537, 2
        %v1546 = vand.u32 %v1538, 2
        %v1547 = vand.u32 %v1539, 2
        %v1548 = vand.u32 %v1540, 2
        %v1549 = vand.u32 %v1541, 2
        %vm1550 = vcmp.eq.s32.totalorder %v1542, 0
        %vm1551 = vcmp.eq.s32.totalorder %v1543, 0
        %vm1552 = vcmp.eq.s32.totalorder %v1544, 0
        %vm1553 = vcmp.eq.s32.totalorder %v1545, 0
        %vm1554 = vcmp.eq.s32.totalorder %v1546, 0
        %vm1555 = vcmp.eq.s32.totalorder %v1547, 0
        %vm1556 = vcmp.eq.s32.totalorder %v1548, 0
        %vm1557 = vcmp.eq.s32.totalorder %v1549, 0
        %v1558 = vsel %vm1550, 1.0, -1.0
        %v1559 = vsel %vm1551, 1.0, -1.0
        %v1560 = vsel %vm1552, 1.0, -1.0
        %v1561 = vsel %vm1553, 1.0, -1.0
        %v1562 = vsel %vm1554, 1.0, -1.0
        %v1563 = vsel %vm1555, 1.0, -1.0
        %v1564 = vsel %vm1556, 1.0, -1.0
        %v1565 = vsel %vm1557, 1.0, -1.0
        %v1566 = vsel %vm1502, %v1478, %v1414
        %v1567 = vsel %vm1503, %v1479, %v1415
        %v1568 = vsel %vm1504, %v1480, %v1416
        %v1569 = vsel %vm1505, %v1481, %v1417
        %v1570 = vsel %vm1506, %v1482, %v1418
        %v1571 = vsel %vm1507, %v1483, %v1419
        %v1572 = vsel %vm1508, %v1484, %v1420
        %v1573 = vsel %vm1509, %v1485, %v1421
        %v1574 = vmul.f32 %v1566, %v1526
        %v1575 = vmul.f32 %v1567, %v1527
        %v1576 = vmul.f32 %v1568, %v1528
        %v1577 = vmul.f32 %v1569, %v1529
        %v1578 = vmul.f32 %v1570, %v1530
        %v1579 = vmul.f32 %v1571, %v1531
        %v1580 = vmul.f32 %v1572, %v1532
        %v1581 = vmul.f32 %v1573, %v1533
        %v1582 = vsel %vm1502, %v1414, %v1478
        %v1583 = vsel %vm1503, %v1415, %v1479
        %v1584 = vsel %vm1504, %v1416, %v1480
        %v1585 = vsel %vm1505, %v1417, %v1481
        %v1586 = vsel %vm1506, %v1418, %v1482
        %v1587 = vsel %vm1507, %v1419, %v1483
        %v1588 = vsel %vm1508, %v1420, %v1484
        %v1589 = vsel %vm1509, %v1421, %v1485
        %v1590 = vmul.f32 %v1582, %v1558
        %v1591 = vmul.f32 %v1583, %v1559
        %v1592 = vmul.f32 %v1584, %v1560
        %v1593 = vmul.f32 %v1585, %v1561
        %v1594 = vmul.f32 %v1586, %v1562
        %v1595 = vmul.f32 %v1587, %v1563
        %v1596 = vmul.f32 %v1588, %v1564
        %v1597 = vmul.f32 %v1589, %v1565
        %v1606 = vrot.slane %v1574, 4
        %v1607 = vrot.slane %v1575, 4
        %v1608 = vrot.slane %v1576, 4
        %v1609 = vrot.slane %v1577, 4
        %v1610 = vrot.slane %v1578, 4
        %v1611 = vsel %vm607, %v1606, %v1610
        %v1612 = vrot.slane %v1579, 4
        %v1613 = vsel %vm607, %v1607, %v1612
        %v1614 = vrot.slane %v1580, 4
        %v1615 = vsel %vm607, %v1608, %v1614
        %v1616 = vrot.slane %v1581, 4
        %v1617 = vsel %vm607, %v1609, %v1616
        %1630 = vst [vmem:[%s134 + $0x40] sm:$0xf0] %v1606
        %1631 = vst [vmem:[%s134 + $0x48] sm:$0xf0] %v1607
        %1632 = vst [vmem:[%s134 + $0x50] sm:$0xf0] %v1608
        %1633 = vst [vmem:[%s134 + $0x58] sm:$0xf0] %v1609
        %1634 = vst [vmem:[%s134 + $0x140] sm:$0xff] %v1611
        %1635 = vst [vmem:[%s134 + $0x148] sm:$0xff] %v1613
        %1636 = vst [vmem:[%s134 + $0x150] sm:$0xff] %v1615
        %1637 = vst [vmem:[%s134 + $0x158] sm:$0xff] %v1617
        %1638 = vst [vmem:[%s134 + $0x240] sm:$0xf] %v1610
        %1639 = vst [vmem:[%s134 + $0x248] sm:$0xf] %v1612
        %1640 = vst [vmem:[%s134 + $0x250] sm:$0xf] %v1614
        %1641 = vst [vmem:[%s134 + $0x258] sm:$0xf] %v1616
        %v1650 = vrot.slane %v1590, 4
        %v1651 = vrot.slane %v1591, 4
        %v1652 = vrot.slane %v1592, 4
        %v1653 = vrot.slane %v1593, 4
        %v1654 = vrot.slane %v1594, 4
        %v1655 = vsel %vm607, %v1650, %v1654
        %v1656 = vrot.slane %v1595, 4
        %v1657 = vsel %vm607, %v1651, %v1656
        %v1658 = vrot.slane %v1596, 4
        %v1659 = vsel %vm607, %v1652, %v1658
        %v1660 = vrot.slane %v1597, 4
        %v1661 = vsel %vm607, %v1653, %v1660
        %1674 = vst [vmem:[%s134 + $0x240] sm:$0xf0] %v1650
        %1675 = vst [vmem:[%s134 + $0x248] sm:$0xf0] %v1651
        %1676 = vst [vmem:[%s134 + $0x250] sm:$0xf0] %v1652
        %1677 = vst [vmem:[%s134 + $0x258] sm:$0xf0] %v1653
        %1678 = vst [vmem:[%s134 + $0x340] sm:$0xff] %v1655
        %1679 = vst [vmem:[%s134 + $0x348] sm:$0xff] %v1657
        %1680 = vst [vmem:[%s134 + $0x350] sm:$0xff] %v1659
        %1681 = vst [vmem:[%s134 + $0x358] sm:$0xff] %v1661
        %1682 = vst [vmem:[%s134 + $0x440] sm:$0xf] %v1654
        %1683 = vst [vmem:[%s134 + $0x448] sm:$0xf] %v1656
        %1684 = vst [vmem:[%s134 + $0x450] sm:$0xf] %v1658
        %1685 = vst [vmem:[%s134 + $0x458] sm:$0xf] %v1660
        %v1686 = vld [vmem:[%s115 + $0x30] sm:$0xff]
        %v1687 = vld [vmem:[%s115 + $0x38] sm:$0xff]
        %1690 = vst [vmem:[#allocation1] ss:$2 sm:$0xff] %v1686
        %s1691 = scalar_lea.vmem [#allocation1], 16
        %1692 = vst [vmem:[%s1691] ss:$2 sm:$0xff] %v1687
        %v1693 = vld.sshfl [vmem:[#allocation1] sm:$0xff pattern:$0x75316420]
        %v1694 = vld.sshfl [vmem:[#allocation1 + $0x8] sm:$0xff pattern:$0x75316420]
        %v1695 = vld.sshfl [vmem:[#allocation1 + $0x10] sm:$0xff pattern:$0x75316420]
        %v1696 = vld.sshfl [vmem:[#allocation1 + $0x18] sm:$0xff pattern:$0x75316420]
        %1701 = vst [vmem:[%s134 + $0x60] sm:$0xf] %v1693
        %1702 = vst [vmem:[%s134 + $0x68] sm:$0xf] %v1694
        %1703 = vst [vmem:[%s134 + $0x70] sm:$0xf] %v1695
        %1704 = vst [vmem:[%s134 + $0x78] sm:$0xf] %v1696
        %v1705 = vperm.slane %v1686, 0
        %v1706 = vperm.slane %v1686, 4
        %v1707 = vperm.slane %v1687, 0
        %v1708 = vperm.slane %v1687, 4
        %v1713 = vperm.slane %v1705, 0
        %v1714 = vperm.slane %v1706, 0
        %v1715 = vperm.slane %v1707, 0
        %v1716 = vperm.slane %v1708, 0
        %1717 = vst [vmem:[#allocation2] sm:$0xf] %v1713
        %1718 = vst [vmem:[#allocation2 + $0x8] sm:$0xf] %v1714
        %1719 = vst [vmem:[#allocation2 + $0x10] sm:$0xf] %v1715
        %1720 = vst [vmem:[#allocation2 + $0x18] sm:$0xf] %v1716
        %v1721 = vperm.slane %v1686, 1
        %v1722 = vperm.slane %v1686, 5
        %v1723 = vperm.slane %v1687, 1
        %v1724 = vperm.slane %v1687, 5
        %v1729 = vperm.slane %v1721, 1
        %v1730 = vperm.slane %v1722, 1
        %v1731 = vperm.slane %v1723, 1
        %v1732 = vperm.slane %v1724, 1
        %1733 = vst [vmem:[#allocation2] sm:$0xf0] %v1729
        %1734 = vst [vmem:[#allocation2 + $0x8] sm:$0xf0] %v1730
        %1735 = vst [vmem:[#allocation2 + $0x10] sm:$0xf0] %v1731
        %1736 = vst [vmem:[#allocation2 + $0x18] sm:$0xf0] %v1732
        %v1737 = vperm.slane %v1686, 2
        %v1738 = vperm.slane %v1686, 6
        %v1739 = vperm.slane %v1687, 2
        %v1740 = vperm.slane %v1687, 6
        %v1745 = vperm.slane %v1737, 2
        %v1746 = vperm.slane %v1738, 2
        %v1747 = vperm.slane %v1739, 2
        %v1748 = vperm.slane %v1740, 2
        %1749 = vst [vmem:[#allocation2 + $0x20] sm:$0xf] %v1745
        %1750 = vst [vmem:[#allocation2 + $0x28] sm:$0xf] %v1746
        %1751 = vst [vmem:[#allocation2 + $0x30] sm:$0xf] %v1747
        %1752 = vst [vmem:[#allocation2 + $0x38] sm:$0xf] %v1748
        %v1753 = vperm.slane %v1686, 3
        %v1754 = vperm.slane %v1686, 7
        %v1755 = vperm.slane %v1687, 3
        %v1756 = vperm.slane %v1687, 7
        %v1761 = vperm.slane %v1753, 3
        %v1762 = vperm.slane %v1754, 3
        %v1763 = vperm.slane %v1755, 3
        %v1764 = vperm.slane %v1756, 3
        %1765 = vst [vmem:[#allocation2 + $0x20] sm:$0xf0] %v1761
        %1766 = vst [vmem:[#allocation2 + $0x28] sm:$0xf0] %v1762
        %1767 = vst [vmem:[#allocation2 + $0x30] sm:$0xf0] %v1763
        %1768 = vst [vmem:[#allocation2 + $0x38] sm:$0xf0] %v1764
        %v1769 = vld [vmem:[#allocation2] sm:$0xff]
        %v1770 = vld [vmem:[#allocation2 + $0x8] sm:$0xff]
        %v1771 = vld [vmem:[#allocation2 + $0x10] sm:$0xff]
        %v1772 = vld [vmem:[#allocation2 + $0x18] sm:$0xff]
        %v1773 = vld [vmem:[#allocation2 + $0x20] sm:$0xff]
        %v1774 = vld [vmem:[#allocation2 + $0x28] sm:$0xff]
        %v1775 = vld [vmem:[#allocation2 + $0x30] sm:$0xff]
        %v1776 = vld [vmem:[#allocation2 + $0x38] sm:$0xff]
        %v1777 = vmul.f32 %v1769, %v186
        %v1778 = vmul.f32 %v1770, %v186
        %v1779 = vmul.f32 %v1771, %v186
        %v1780 = vmul.f32 %v1772, %v186
        %v1781 = vmul.f32 %v1773, %v187
        %v1782 = vmul.f32 %v1774, %v187
        %v1783 = vmul.f32 %v1775, %v187
        %v1784 = vmul.f32 %v1776, %v187
        %v1785 = vmul.f32 %v1777, 0.63661975
        %v1786 = vmul.f32 %v1778, 0.63661975
        %v1787 = vmul.f32 %v1779, 0.63661975
        %v1788 = vmul.f32 %v1780, 0.63661975
        %v1789 = vmul.f32 %v1781, 0.63661975
        %v1790 = vmul.f32 %v1782, 0.63661975
        %v1791 = vmul.f32 %v1783, 0.63661975
        %v1792 = vmul.f32 %v1784, 0.63661975
        %v1793 = vadd.f32 %v1785, 0.5
        %v1794 = vadd.f32 %v1786, 0.5
        %v1795 = vadd.f32 %v1787, 0.5
        %v1796 = vadd.f32 %v1788, 0.5
        %v1797 = vadd.f32 %v1789, 0.5
        %v1798 = vadd.f32 %v1790, 0.5
        %v1799 = vadd.f32 %v1791, 0.5
        %v1800 = vadd.f32 %v1792, 0.5
        %v1801 = vfloor.f32 %v1793
        %v1802 = vfloor.f32 %v1794
        %v1803 = vfloor.f32 %v1795
        %v1804 = vfloor.f32 %v1796
        %v1805 = vfloor.f32 %v1797
        %v1806 = vfloor.f32 %v1798
        %v1807 = vfloor.f32 %v1799
        %v1808 = vfloor.f32 %v1800
        %v1809 = vmul.f32 %v1801, 1.5703125
        %v1810 = vmul.f32 %v1802, 1.5703125
        %v1811 = vmul.f32 %v1803, 1.5703125
        %v1812 = vmul.f32 %v1804, 1.5703125
        %v1813 = vmul.f32 %v1805, 1.5703125
        %v1814 = vmul.f32 %v1806, 1.5703125
        %v1815 = vmul.f32 %v1807, 1.5703125
        %v1816 = vmul.f32 %v1808, 1.5703125
        %v1817 = vsub.f32 %v1777, %v1809
        %v1818 = vsub.f32 %v1778, %v1810
        %v1819 = vsub.f32 %v1779, %v1811
        %v1820 = vsub.f32 %v1780, %v1812
        %v1821 = vsub.f32 %v1781, %v1813
        %v1822 = vsub.f32 %v1782, %v1814
        %v1823 = vsub.f32 %v1783, %v1815
        %v1824 = vsub.f32 %v1784, %v1816
        %v1825 = vmul.f32 %v1801, 0.0004837513
        %v1826 = vmul.f32 %v1802, 0.0004837513
        %v1827 = vmul.f32 %v1803, 0.0004837513
        %v1828 = vmul.f32 %v1804, 0.0004837513
        %v1829 = vmul.f32 %v1805, 0.0004837513
        %v1830 = vmul.f32 %v1806, 0.0004837513
        %v1831 = vmul.f32 %v1807, 0.0004837513
        %v1832 = vmul.f32 %v1808, 0.0004837513
        %v1833 = vsub.f32 %v1817, %v1825
        %v1834 = vsub.f32 %v1818, %v1826
        %v1835 = vsub.f32 %v1819, %v1827
        %v1836 = vsub.f32 %v1820, %v1828
        %v1837 = vsub.f32 %v1821, %v1829
        %v1838 = vsub.f32 %v1822, %v1830
        %v1839 = vsub.f32 %v1823, %v1831
        %v1840 = vsub.f32 %v1824, %v1832
        %v1841 = vmul.f32 %v1801, 7.54979e-08
        %v1842 = vmul.f32 %v1802, 7.54979e-08
        %v1843 = vmul.f32 %v1803, 7.54979e-08
        %v1844 = vmul.f32 %v1804, 7.54979e-08
        %v1845 = vmul.f32 %v1805, 7.54979e-08
        %v1846 = vmul.f32 %v1806, 7.54979e-08
        %v1847 = vmul.f32 %v1807, 7.54979e-08
        %v1848 = vmul.f32 %v1808, 7.54979e-08
        %v1849 = vsub.f32 %v1833, %v1841
        %v1850 = vsub.f32 %v1834, %v1842
        %v1851 = vsub.f32 %v1835, %v1843
        %v1852 = vsub.f32 %v1836, %v1844
        %v1853 = vsub.f32 %v1837, %v1845
        %v1854 = vsub.f32 %v1838, %v1846
        %v1855 = vsub.f32 %v1839, %v1847
        %v1856 = vsub.f32 %v1840, %v1848
        %v1857 = vmul.f32 %v1849, %v1849
        %v1858 = vmul.f32 %v1850, %v1850
        %v1859 = vmul.f32 %v1851, %v1851
        %v1860 = vmul.f32 %v1852, %v1852
        %v1861 = vmul.f32 %v1853, %v1853
        %v1862 = vmul.f32 %v1854, %v1854
        %v1863 = vmul.f32 %v1855, %v1855
        %v1864 = vmul.f32 %v1856, %v1856
        %v1865 = vmul.f32 %v1849, %v1857
        %v1866 = vmul.f32 %v1850, %v1858
        %v1867 = vmul.f32 %v1851, %v1859
        %v1868 = vmul.f32 %v1852, %v1860
        %v1869 = vmul.f32 %v1853, %v1861
        %v1870 = vmul.f32 %v1854, %v1862
        %v1871 = vmul.f32 %v1855, %v1863
        %v1872 = vmul.f32 %v1856, %v1864
        %v1873 = vmul.f32 %v1857, -0.00019515296
        %v1874 = vmul.f32 %v1858, -0.00019515296
        %v1875 = vmul.f32 %v1859, -0.00019515296
        %v1876 = vmul.f32 %v1860, -0.00019515296
        %v1877 = vmul.f32 %v1861, -0.00019515296
        %v1878 = vmul.f32 %v1862, -0.00019515296
        %v1879 = vmul.f32 %v1863, -0.00019515296
        %v1880 = vmul.f32 %v1864, -0.00019515296
        %v1881 = vadd.f32 %v1873, 0.008332161
        %v1882 = vadd.f32 %v1874, 0.008332161
        %v1883 = vadd.f32 %v1875, 0.008332161
        %v1884 = vadd.f32 %v1876, 0.008332161
        %v1885 = vadd.f32 %v1877, 0.008332161
        %v1886 = vadd.f32 %v1878, 0.008332161
        %v1887 = vadd.f32 %v1879, 0.008332161
        %v1888 = vadd.f32 %v1880, 0.008332161
        %v1889 = vmul.f32 %v1857, %v1881
        %v1890 = vmul.f32 %v1858, %v1882
        %v1891 = vmul.f32 %v1859, %v1883
        %v1892 = vmul.f32 %v1860, %v1884
        %v1893 = vmul.f32 %v1861, %v1885
        %v1894 = vmul.f32 %v1862, %v1886
        %v1895 = vmul.f32 %v1863, %v1887
        %v1896 = vmul.f32 %v1864, %v1888
        %v1897 = vadd.f32 %v1889, -0.16666655
        %v1898 = vadd.f32 %v1890, -0.16666655
        %v1899 = vadd.f32 %v1891, -0.16666655
        %v1900 = vadd.f32 %v1892, -0.16666655
        %v1901 = vadd.f32 %v1893, -0.16666655
        %v1902 = vadd.f32 %v1894, -0.16666655
        %v1903 = vadd.f32 %v1895, -0.16666655
        %v1904 = vadd.f32 %v1896, -0.16666655
        %v1905 = vmul.f32 %v1865, %v1897
        %v1906 = vmul.f32 %v1866, %v1898
        %v1907 = vmul.f32 %v1867, %v1899
        %v1908 = vmul.f32 %v1868, %v1900
        %v1909 = vmul.f32 %v1869, %v1901
        %v1910 = vmul.f32 %v1870, %v1902
        %v1911 = vmul.f32 %v1871, %v1903
        %v1912 = vmul.f32 %v1872, %v1904
        %v1913 = vadd.f32 %v1849, %v1905
        %v1914 = vadd.f32 %v1850, %v1906
        %v1915 = vadd.f32 %v1851, %v1907
        %v1916 = vadd.f32 %v1852, %v1908
        %v1917 = vadd.f32 %v1853, %v1909
        %v1918 = vadd.f32 %v1854, %v1910
        %v1919 = vadd.f32 %v1855, %v1911
        %v1920 = vadd.f32 %v1856, %v1912
        %v1921 = vmul.f32 %v1857, 2.4433157e-05
        %v1922 = vmul.f32 %v1858, 2.4433157e-05
        %v1923 = vmul.f32 %v1859, 2.4433157e-05
        %v1924 = vmul.f32 %v1860, 2.4433157e-05
        %v1925 = vmul.f32 %v1861, 2.4433157e-05
        %v1926 = vmul.f32 %v1862, 2.4433157e-05
        %v1927 = vmul.f32 %v1863, 2.4433157e-05
        %v1928 = vmul.f32 %v1864, 2.4433157e-05
        %v1929 = vadd.f32 %v1921, -0.0013887316
        %v1930 = vadd.f32 %v1922, -0.0013887316
        %v1931 = vadd.f32 %v1923, -0.0013887316
        %v1932 = vadd.f32 %v1924, -0.0013887316
        %v1933 = vadd.f32 %v1925, -0.0013887316
        %v1934 = vadd.f32 %v1926, -0.0013887316
        %v1935 = vadd.f32 %v1927, -0.0013887316
        %v1936 = vadd.f32 %v1928, -0.0013887316
        %v1937 = vmul.f32 %v1857, %v1929
        %v1938 = vmul.f32 %v1858, %v1930
        %v1939 = vmul.f32 %v1859, %v1931
        %v1940 = vmul.f32 %v1860, %v1932
        %v1941 = vmul.f32 %v1861, %v1933
        %v1942 = vmul.f32 %v1862, %v1934
        %v1943 = vmul.f32 %v1863, %v1935
        %v1944 = vmul.f32 %v1864, %v1936
        %v1945 = vadd.f32 %v1937, 0.041666646
        %v1946 = vadd.f32 %v1938, 0.041666646
        %v1947 = vadd.f32 %v1939, 0.041666646
        %v1948 = vadd.f32 %v1940, 0.041666646
        %v1949 = vadd.f32 %v1941, 0.041666646
        %v1950 = vadd.f32 %v1942, 0.041666646
        %v1951 = vadd.f32 %v1943, 0.041666646
        %v1952 = vadd.f32 %v1944, 0.041666646
        %v1953 = vmul.f32 %v1857, %v1945
        %v1954 = vmul.f32 %v1858, %v1946
        %v1955 = vmul.f32 %v1859, %v1947
        %v1956 = vmul.f32 %v1860, %v1948
        %v1957 = vmul.f32 %v1861, %v1949
        %v1958 = vmul.f32 %v1862, %v1950
        %v1959 = vmul.f32 %v1863, %v1951
        %v1960 = vmul.f32 %v1864, %v1952
        %v1961 = vadd.f32 %v1953, -0.5
        %v1962 = vadd.f32 %v1954, -0.5
        %v1963 = vadd.f32 %v1955, -0.5
        %v1964 = vadd.f32 %v1956, -0.5
        %v1965 = vadd.f32 %v1957, -0.5
        %v1966 = vadd.f32 %v1958, -0.5
        %v1967 = vadd.f32 %v1959, -0.5
        %v1968 = vadd.f32 %v1960, -0.5
        %v1969 = vmul.f32 %v1857, %v1961
        %v1970 = vmul.f32 %v1858, %v1962
        %v1971 = vmul.f32 %v1859, %v1963
        %v1972 = vmul.f32 %v1860, %v1964
        %v1973 = vmul.f32 %v1861, %v1965
        %v1974 = vmul.f32 %v1862, %v1966
        %v1975 = vmul.f32 %v1863, %v1967
        %v1976 = vmul.f32 %v1864, %v1968
        %v1977 = vadd.f32 %v1969, 1.0
        %v1978 = vadd.f32 %v1970, 1.0
        %v1979 = vadd.f32 %v1971, 1.0
        %v1980 = vadd.f32 %v1972, 1.0
        %v1981 = vadd.f32 %v1973, 1.0
        %v1982 = vadd.f32 %v1974, 1.0
        %v1983 = vadd.f32 %v1975, 1.0
        %v1984 = vadd.f32 %v1976, 1.0
        %v1985 = vcvt.f32.s32.to.zero.pseudo %v1801
        %v1986 = vcvt.f32.s32.to.zero.pseudo %v1802
        %v1987 = vcvt.f32.s32.to.zero.pseudo %v1803
        %v1988 = vcvt.f32.s32.to.zero.pseudo %v1804
        %v1989 = vcvt.f32.s32.to.zero.pseudo %v1805
        %v1990 = vcvt.f32.s32.to.zero.pseudo %v1806
        %v1991 = vcvt.f32.s32.to.zero.pseudo %v1807
        %v1992 = vcvt.f32.s32.to.zero.pseudo %v1808
        %v1993 = vand.u32 %v1985, 1
        %v1994 = vand.u32 %v1986, 1
        %v1995 = vand.u32 %v1987, 1
        %v1996 = vand.u32 %v1988, 1
        %v1997 = vand.u32 %v1989, 1
        %v1998 = vand.u32 %v1990, 1
        %v1999 = vand.u32 %v1991, 1
        %v2000 = vand.u32 %v1992, 1
        %vm2001 = vcmp.eq.s32.totalorder %v1993, 1
        %vm2002 = vcmp.eq.s32.totalorder %v1994, 1
        %vm2003 = vcmp.eq.s32.totalorder %v1995, 1
        %vm2004 = vcmp.eq.s32.totalorder %v1996, 1
        %vm2005 = vcmp.eq.s32.totalorder %v1997, 1
        %vm2006 = vcmp.eq.s32.totalorder %v1998, 1
        %vm2007 = vcmp.eq.s32.totalorder %v1999, 1
        %vm2008 = vcmp.eq.s32.totalorder %v2000, 1
        %v2009 = vand.u32 %v1985, 2
        %v2010 = vand.u32 %v1986, 2
        %v2011 = vand.u32 %v1987, 2
        %v2012 = vand.u32 %v1988, 2
        %v2013 = vand.u32 %v1989, 2
        %v2014 = vand.u32 %v1990, 2
        %v2015 = vand.u32 %v1991, 2
        %v2016 = vand.u32 %v1992, 2
        %vm2017 = vcmp.eq.s32.totalorder %v2009, 0
        %vm2018 = vcmp.eq.s32.totalorder %v2010, 0
        %vm2019 = vcmp.eq.s32.totalorder %v2011, 0
        %vm2020 = vcmp.eq.s32.totalorder %v2012, 0
        %vm2021 = vcmp.eq.s32.totalorder %v2013, 0
        %vm2022 = vcmp.eq.s32.totalorder %v2014, 0
        %vm2023 = vcmp.eq.s32.totalorder %v2015, 0
        %vm2024 = vcmp.eq.s32.totalorder %v2016, 0
        %v2025 = vsel %vm2017, 1.0, -1.0
        %v2026 = vsel %vm2018, 1.0, -1.0
        %v2027 = vsel %vm2019, 1.0, -1.0
        %v2028 = vsel %vm2020, 1.0, -1.0
        %v2029 = vsel %vm2021, 1.0, -1.0
        %v2030 = vsel %vm2022, 1.0, -1.0
        %v2031 = vsel %vm2023, 1.0, -1.0
        %v2032 = vsel %vm2024, 1.0, -1.0
        %v2033 = vadd.s32 %v1985, 1
        %v2034 = vadd.s32 %v1986, 1
        %v2035 = vadd.s32 %v1987, 1
        %v2036 = vadd.s32 %v1988, 1
        %v2037 = vadd.s32 %v1989, 1
        %v2038 = vadd.s32 %v1990, 1
        %v2039 = vadd.s32 %v1991, 1
        %v2040 = vadd.s32 %v1992, 1
        %v2041 = vand.u32 %v2033, 2
        %v2042 = vand.u32 %v2034, 2
        %v2043 = vand.u32 %v2035, 2
        %v2044 = vand.u32 %v2036, 2
        %v2045 = vand.u32 %v2037, 2
        %v2046 = vand.u32 %v2038, 2
        %v2047 = vand.u32 %v2039, 2
        %v2048 = vand.u32 %v2040, 2
        %vm2049 = vcmp.eq.s32.totalorder %v2041, 0
        %vm2050 = vcmp.eq.s32.totalorder %v2042, 0
        %vm2051 = vcmp.eq.s32.totalorder %v2043, 0
        %vm2052 = vcmp.eq.s32.totalorder %v2044, 0
        %vm2053 = vcmp.eq.s32.totalorder %v2045, 0
        %vm2054 = vcmp.eq.s32.totalorder %v2046, 0
        %vm2055 = vcmp.eq.s32.totalorder %v2047, 0
        %vm2056 = vcmp.eq.s32.totalorder %v2048, 0
        %v2057 = vsel %vm2049, 1.0, -1.0
        %v2058 = vsel %vm2050, 1.0, -1.0
        %v2059 = vsel %vm2051, 1.0, -1.0
        %v2060 = vsel %vm2052, 1.0, -1.0
        %v2061 = vsel %vm2053, 1.0, -1.0
        %v2062 = vsel %vm2054, 1.0, -1.0
        %v2063 = vsel %vm2055, 1.0, -1.0
        %v2064 = vsel %vm2056, 1.0, -1.0
        %v2065 = vsel %vm2001, %v1977, %v1913
        %v2066 = vsel %vm2002, %v1978, %v1914
        %v2067 = vsel %vm2003, %v1979, %v1915
        %v2068 = vsel %vm2004, %v1980, %v1916
        %v2069 = vsel %vm2005, %v1981, %v1917
        %v2070 = vsel %vm2006, %v1982, %v1918
        %v2071 = vsel %vm2007, %v1983, %v1919
        %v2072 = vsel %vm2008, %v1984, %v1920
        %v2073 = vmul.f32 %v2065, %v2025
        %v2074 = vmul.f32 %v2066, %v2026
        %v2075 = vmul.f32 %v2067, %v2027
        %v2076 = vmul.f32 %v2068, %v2028
        %v2077 = vmul.f32 %v2069, %v2029
        %v2078 = vmul.f32 %v2070, %v2030
        %v2079 = vmul.f32 %v2071, %v2031
        %v2080 = vmul.f32 %v2072, %v2032
        %v2081 = vsel %vm2001, %v1913, %v1977
        %v2082 = vsel %vm2002, %v1914, %v1978
        %v2083 = vsel %vm2003, %v1915, %v1979
        %v2084 = vsel %vm2004, %v1916, %v1980
        %v2085 = vsel %vm2005, %v1917, %v1981
        %v2086 = vsel %vm2006, %v1918, %v1982
        %v2087 = vsel %vm2007, %v1919, %v1983
        %v2088 = vsel %vm2008, %v1920, %v1984
        %v2089 = vmul.f32 %v2081, %v2057
        %v2090 = vmul.f32 %v2082, %v2058
        %v2091 = vmul.f32 %v2083, %v2059
        %v2092 = vmul.f32 %v2084, %v2060
        %v2093 = vmul.f32 %v2085, %v2061
        %v2094 = vmul.f32 %v2086, %v2062
        %v2095 = vmul.f32 %v2087, %v2063
        %v2096 = vmul.f32 %v2088, %v2064
        %v2105 = vrot.slane %v2073, 4
        %v2106 = vrot.slane %v2074, 4
        %v2107 = vrot.slane %v2075, 4
        %v2108 = vrot.slane %v2076, 4
        %v2109 = vrot.slane %v2077, 4
        %v2110 = vsel %vm607, %v2105, %v2109
        %v2111 = vrot.slane %v2078, 4
        %v2112 = vsel %vm607, %v2106, %v2111
        %v2113 = vrot.slane %v2079, 4
        %v2114 = vsel %vm607, %v2107, %v2113
        %v2115 = vrot.slane %v2080, 4
        %v2116 = vsel %vm607, %v2108, %v2115
        %2129 = vst [vmem:[%s134 + $0x60] sm:$0xf0] %v2105
        %2130 = vst [vmem:[%s134 + $0x68] sm:$0xf0] %v2106
        %2131 = vst [vmem:[%s134 + $0x70] sm:$0xf0] %v2107
        %2132 = vst [vmem:[%s134 + $0x78] sm:$0xf0] %v2108
        %2133 = vst [vmem:[%s134 + $0x160] sm:$0xff] %v2110
        %2134 = vst [vmem:[%s134 + $0x168] sm:$0xff] %v2112
        %2135 = vst [vmem:[%s134 + $0x170] sm:$0xff] %v2114
        %2136 = vst [vmem:[%s134 + $0x178] sm:$0xff] %v2116
        %2137 = vst [vmem:[%s134 + $0x260] sm:$0xf] %v2109
        %2138 = vst [vmem:[%s134 + $0x268] sm:$0xf] %v2111
        %2139 = vst [vmem:[%s134 + $0x270] sm:$0xf] %v2113
        %2140 = vst [vmem:[%s134 + $0x278] sm:$0xf] %v2115
        %v2149 = vrot.slane %v2089, 4
        %v2150 = vrot.slane %v2090, 4
        %v2151 = vrot.slane %v2091, 4
        %v2152 = vrot.slane %v2092, 4
        %v2153 = vrot.slane %v2093, 4
        %v2154 = vsel %vm607, %v2149, %v2153
        %v2155 = vrot.slane %v2094, 4
        %v2156 = vsel %vm607, %v2150, %v2155
        %v2157 = vrot.slane %v2095, 4
        %v2158 = vsel %vm607, %v2151, %v2157
        %v2159 = vrot.slane %v2096, 4
        %v2160 = vsel %vm607, %v2152, %v2159
        %2173 = vst [vmem:[%s134 + $0x260] sm:$0xf0] %v2149
        %2174 = vst [vmem:[%s134 + $0x268] sm:$0xf0] %v2150
        %2175 = vst [vmem:[%s134 + $0x270] sm:$0xf0] %v2151
        %2176 = vst [vmem:[%s134 + $0x278] sm:$0xf0] %v2152
        %2177 = vst [vmem:[%s134 + $0x360] sm:$0xff] %v2154
        %2178 = vst [vmem:[%s134 + $0x368] sm:$0xff] %v2156
        %2179 = vst [vmem:[%s134 + $0x370] sm:$0xff] %v2158
        %2180 = vst [vmem:[%s134 + $0x378] sm:$0xff] %v2160
        %2181 = vst [vmem:[%s134 + $0x460] sm:$0xf] %v2153
        %2182 = vst [vmem:[%s134 + $0x468] sm:$0xf] %v2155
        %2183 = vst [vmem:[%s134 + $0x470] sm:$0xf] %v2157
        %2184 = vst [vmem:[%s134 + $0x478] sm:$0xf] %v2159
        %v2185 = vld [vmem:[%s115 + $0x40] sm:$0xff]
        %v2186 = vld [vmem:[%s115 + $0x48] sm:$0xff]
        %2189 = vst [vmem:[#allocation1] ss:$2 sm:$0xff] %v2185
        %s2190 = scalar_lea.vmem [#allocation1], 16
        %2191 = vst [vmem:[%s2190] ss:$2 sm:$0xff] %v2186
        %v2192 = vld.sshfl [vmem:[#allocation1] sm:$0xff pattern:$0x75316420]
        %v2193 = vld.sshfl [vmem:[#allocation1 + $0x8] sm:$0xff pattern:$0x75316420]
        %v2194 = vld.sshfl [vmem:[#allocation1 + $0x10] sm:$0xff pattern:$0x75316420]
        %v2195 = vld.sshfl [vmem:[#allocation1 + $0x18] sm:$0xff pattern:$0x75316420]
        %2200 = vst [vmem:[%s134 + $0x80] sm:$0xf] %v2192
        %2201 = vst [vmem:[%s134 + $0x88] sm:$0xf] %v2193
        %2202 = vst [vmem:[%s134 + $0x90] sm:$0xf] %v2194
        %2203 = vst [vmem:[%s134 + $0x98] sm:$0xf] %v2195
        %v2204 = vperm.slane %v2185, 0
        %v2205 = vperm.slane %v2185, 4
        %v2206 = vperm.slane %v2186, 0
        %v2207 = vperm.slane %v2186, 4
        %v2212 = vperm.slane %v2204, 0
        %v2213 = vperm.slane %v2205, 0
        %v2214 = vperm.slane %v2206, 0
        %v2215 = vperm.slane %v2207, 0
        %2216 = vst [vmem:[#allocation2] sm:$0xf] %v2212
        %2217 = vst [vmem:[#allocation2 + $0x8] sm:$0xf] %v2213
        %2218 = vst [vmem:[#allocation2 + $0x10] sm:$0xf] %v2214
        %2219 = vst [vmem:[#allocation2 + $0x18] sm:$0xf] %v2215
        %v2220 = vperm.slane %v2185, 1
        %v2221 = vperm.slane %v2185, 5
        %v2222 = vperm.slane %v2186, 1
        %v2223 = vperm.slane %v2186, 5
        %v2228 = vperm.slane %v2220, 1
        %v2229 = vperm.slane %v2221, 1
        %v2230 = vperm.slane %v2222, 1
        %v2231 = vperm.slane %v2223, 1
        %2232 = vst [vmem:[#allocation2] sm:$0xf0] %v2228
        %2233 = vst [vmem:[#allocation2 + $0x8] sm:$0xf0] %v2229
        %2234 = vst [vmem:[#allocation2 + $0x10] sm:$0xf0] %v2230
        %2235 = vst [vmem:[#allocation2 + $0x18] sm:$0xf0] %v2231
        %v2236 = vperm.slane %v2185, 2
        %v2237 = vperm.slane %v2185, 6
        %v2238 = vperm.slane %v2186, 2
        %v2239 = vperm.slane %v2186, 6
        %v2244 = vperm.slane %v2236, 2
        %v2245 = vperm.slane %v2237, 2
        %v2246 = vperm.slane %v2238, 2
        %v2247 = vperm.slane %v2239, 2
        %2248 = vst [vmem:[#allocation2 + $0x20] sm:$0xf] %v2244
        %2249 = vst [vmem:[#allocation2 + $0x28] sm:$0xf] %v2245
        %2250 = vst [vmem:[#allocation2 + $0x30] sm:$0xf] %v2246
        %2251 = vst [vmem:[#allocation2 + $0x38] sm:$0xf] %v2247
        %v2252 = vperm.slane %v2185, 3
        %v2253 = vperm.slane %v2185, 7
        %v2254 = vperm.slane %v2186, 3
        %v2255 = vperm.slane %v2186, 7
        %v2260 = vperm.slane %v2252, 3
        %v2261 = vperm.slane %v2253, 3
        %v2262 = vperm.slane %v2254, 3
        %v2263 = vperm.slane %v2255, 3
        %2264 = vst [vmem:[#allocation2 + $0x20] sm:$0xf0] %v2260
        %2265 = vst [vmem:[#allocation2 + $0x28] sm:$0xf0] %v2261
        %2266 = vst [vmem:[#allocation2 + $0x30] sm:$0xf0] %v2262
        %2267 = vst [vmem:[#allocation2 + $0x38] sm:$0xf0] %v2263
        %v2268 = vld [vmem:[#allocation2] sm:$0xff]
        %v2269 = vld [vmem:[#allocation2 + $0x8] sm:$0xff]
        %v2270 = vld [vmem:[#allocation2 + $0x10] sm:$0xff]
        %v2271 = vld [vmem:[#allocation2 + $0x18] sm:$0xff]
        %v2272 = vld [vmem:[#allocation2 + $0x20] sm:$0xff]
        %v2273 = vld [vmem:[#allocation2 + $0x28] sm:$0xff]
        %v2274 = vld [vmem:[#allocation2 + $0x30] sm:$0xff]
        %v2275 = vld [vmem:[#allocation2 + $0x38] sm:$0xff]
        %v2276 = vmul.f32 %v2268, %v186
        %v2277 = vmul.f32 %v2269, %v186
        %v2278 = vmul.f32 %v2270, %v186
        %v2279 = vmul.f32 %v2271, %v186
        %v2280 = vmul.f32 %v2272, %v187
        %v2281 = vmul.f32 %v2273, %v187
        %v2282 = vmul.f32 %v2274, %v187
        %v2283 = vmul.f32 %v2275, %v187
        %v2284 = vmul.f32 %v2276, 0.63661975
        %v2285 = vmul.f32 %v2277, 0.63661975
        %v2286 = vmul.f32 %v2278, 0.63661975
        %v2287 = vmul.f32 %v2279, 0.63661975
        %v2288 = vmul.f32 %v2280, 0.63661975
        %v2289 = vmul.f32 %v2281, 0.63661975
        %v2290 = vmul.f32 %v2282, 0.63661975
        %v2291 = vmul.f32 %v2283, 0.63661975
        %v2292 = vadd.f32 %v2284, 0.5
        %v2293 = vadd.f32 %v2285, 0.5
        %v2294 = vadd.f32 %v2286, 0.5
        %v2295 = vadd.f32 %v2287, 0.5
        %v2296 = vadd.f32 %v2288, 0.5
        %v2297 = vadd.f32 %v2289, 0.5
        %v2298 = vadd.f32 %v2290, 0.5
        %v2299 = vadd.f32 %v2291, 0.5
        %v2300 = vfloor.f32 %v2292
        %v2301 = vfloor.f32 %v2293
        %v2302 = vfloor.f32 %v2294
        %v2303 = vfloor.f32 %v2295
        %v2304 = vfloor.f32 %v2296
        %v2305 = vfloor.f32 %v2297
        %v2306 = vfloor.f32 %v2298
        %v2307 = vfloor.f32 %v2299
        %v2308 = vmul.f32 %v2300, 1.5703125
        %v2309 = vmul.f32 %v2301, 1.5703125
        %v2310 = vmul.f32 %v2302, 1.5703125
        %v2311 = vmul.f32 %v2303, 1.5703125
        %v2312 = vmul.f32 %v2304, 1.5703125
        %v2313 = vmul.f32 %v2305, 1.5703125
        %v2314 = vmul.f32 %v2306, 1.5703125
        %v2315 = vmul.f32 %v2307, 1.5703125
        %v2316 = vsub.f32 %v2276, %v2308
        %v2317 = vsub.f32 %v2277, %v2309
        %v2318 = vsub.f32 %v2278, %v2310
        %v2319 = vsub.f32 %v2279, %v2311
        %v2320 = vsub.f32 %v2280, %v2312
        %v2321 = vsub.f32 %v2281, %v2313
        %v2322 = vsub.f32 %v2282, %v2314
        %v2323 = vsub.f32 %v2283, %v2315
        %v2324 = vmul.f32 %v2300, 0.0004837513
        %v2325 = vmul.f32 %v2301, 0.0004837513
        %v2326 = vmul.f32 %v2302, 0.0004837513
        %v2327 = vmul.f32 %v2303, 0.0004837513
        %v2328 = vmul.f32 %v2304, 0.0004837513
        %v2329 = vmul.f32 %v2305, 0.0004837513
        %v2330 = vmul.f32 %v2306, 0.0004837513
        %v2331 = vmul.f32 %v2307, 0.0004837513
        %v2332 = vsub.f32 %v2316, %v2324
        %v2333 = vsub.f32 %v2317, %v2325
        %v2334 = vsub.f32 %v2318, %v2326
        %v2335 = vsub.f32 %v2319, %v2327
        %v2336 = vsub.f32 %v2320, %v2328
        %v2337 = vsub.f32 %v2321, %v2329
        %v2338 = vsub.f32 %v2322, %v2330
        %v2339 = vsub.f32 %v2323, %v2331
        %v2340 = vmul.f32 %v2300, 7.54979e-08
        %v2341 = vmul.f32 %v2301, 7.54979e-08
        %v2342 = vmul.f32 %v2302, 7.54979e-08
        %v2343 = vmul.f32 %v2303, 7.54979e-08
        %v2344 = vmul.f32 %v2304, 7.54979e-08
        %v2345 = vmul.f32 %v2305, 7.54979e-08
        %v2346 = vmul.f32 %v2306, 7.54979e-08
        %v2347 = vmul.f32 %v2307, 7.54979e-08
        %v2348 = vsub.f32 %v2332, %v2340
        %v2349 = vsub.f32 %v2333, %v2341
        %v2350 = vsub.f32 %v2334, %v2342
        %v2351 = vsub.f32 %v2335, %v2343
        %v2352 = vsub.f32 %v2336, %v2344
        %v2353 = vsub.f32 %v2337, %v2345
        %v2354 = vsub.f32 %v2338, %v2346
        %v2355 = vsub.f32 %v2339, %v2347
        %v2356 = vmul.f32 %v2348, %v2348
        %v2357 = vmul.f32 %v2349, %v2349
        %v2358 = vmul.f32 %v2350, %v2350
        %v2359 = vmul.f32 %v2351, %v2351
        %v2360 = vmul.f32 %v2352, %v2352
        %v2361 = vmul.f32 %v2353, %v2353
        %v2362 = vmul.f32 %v2354, %v2354
        %v2363 = vmul.f32 %v2355, %v2355
        %v2364 = vmul.f32 %v2348, %v2356
        %v2365 = vmul.f32 %v2349, %v2357
        %v2366 = vmul.f32 %v2350, %v2358
        %v2367 = vmul.f32 %v2351, %v2359
        %v2368 = vmul.f32 %v2352, %v2360
        %v2369 = vmul.f32 %v2353, %v2361
        %v2370 = vmul.f32 %v2354, %v2362
        %v2371 = vmul.f32 %v2355, %v2363
        %v2372 = vmul.f32 %v2356, -0.00019515296
        %v2373 = vmul.f32 %v2357, -0.00019515296
        %v2374 = vmul.f32 %v2358, -0.00019515296
        %v2375 = vmul.f32 %v2359, -0.00019515296
        %v2376 = vmul.f32 %v2360, -0.00019515296
        %v2377 = vmul.f32 %v2361, -0.00019515296
        %v2378 = vmul.f32 %v2362, -0.00019515296
        %v2379 = vmul.f32 %v2363, -0.00019515296
        %v2380 = vadd.f32 %v2372, 0.008332161
        %v2381 = vadd.f32 %v2373, 0.008332161
        %v2382 = vadd.f32 %v2374, 0.008332161
        %v2383 = vadd.f32 %v2375, 0.008332161
        %v2384 = vadd.f32 %v2376, 0.008332161
        %v2385 = vadd.f32 %v2377, 0.008332161
        %v2386 = vadd.f32 %v2378, 0.008332161
        %v2387 = vadd.f32 %v2379, 0.008332161
        %v2388 = vmul.f32 %v2356, %v2380
        %v2389 = vmul.f32 %v2357, %v2381
        %v2390 = vmul.f32 %v2358, %v2382
        %v2391 = vmul.f32 %v2359, %v2383
        %v2392 = vmul.f32 %v2360, %v2384
        %v2393 = vmul.f32 %v2361, %v2385
        %v2394 = vmul.f32 %v2362, %v2386
        %v2395 = vmul.f32 %v2363, %v2387
        %v2396 = vadd.f32 %v2388, -0.16666655
        %v2397 = vadd.f32 %v2389, -0.16666655
        %v2398 = vadd.f32 %v2390, -0.16666655
        %v2399 = vadd.f32 %v2391, -0.16666655
        %v2400 = vadd.f32 %v2392, -0.16666655
        %v2401 = vadd.f32 %v2393, -0.16666655
        %v2402 = vadd.f32 %v2394, -0.16666655
        %v2403 = vadd.f32 %v2395, -0.16666655
        %v2404 = vmul.f32 %v2364, %v2396
        %v2405 = vmul.f32 %v2365, %v2397
        %v2406 = vmul.f32 %v2366, %v2398
        %v2407 = vmul.f32 %v2367, %v2399
        %v2408 = vmul.f32 %v2368, %v2400
        %v2409 = vmul.f32 %v2369, %v2401
        %v2410 = vmul.f32 %v2370, %v2402
        %v2411 = vmul.f32 %v2371, %v2403
        %v2412 = vadd.f32 %v2348, %v2404
        %v2413 = vadd.f32 %v2349, %v2405
        %v2414 = vadd.f32 %v2350, %v2406
        %v2415 = vadd.f32 %v2351, %v2407
        %v2416 = vadd.f32 %v2352, %v2408
        %v2417 = vadd.f32 %v2353, %v2409
        %v2418 = vadd.f32 %v2354, %v2410
        %v2419 = vadd.f32 %v2355, %v2411
        %v2420 = vmul.f32 %v2356, 2.4433157e-05
        %v2421 = vmul.f32 %v2357, 2.4433157e-05
        %v2422 = vmul.f32 %v2358, 2.4433157e-05
        %v2423 = vmul.f32 %v2359, 2.4433157e-05
        %v2424 = vmul.f32 %v2360, 2.4433157e-05
        %v2425 = vmul.f32 %v2361, 2.4433157e-05
        %v2426 = vmul.f32 %v2362, 2.4433157e-05
        %v2427 = vmul.f32 %v2363, 2.4433157e-05
        %v2428 = vadd.f32 %v2420, -0.0013887316
        %v2429 = vadd.f32 %v2421, -0.0013887316
        %v2430 = vadd.f32 %v2422, -0.0013887316
        %v2431 = vadd.f32 %v2423, -0.0013887316
        %v2432 = vadd.f32 %v2424, -0.0013887316
        %v2433 = vadd.f32 %v2425, -0.0013887316
        %v2434 = vadd.f32 %v2426, -0.0013887316
        %v2435 = vadd.f32 %v2427, -0.0013887316
        %v2436 = vmul.f32 %v2356, %v2428
        %v2437 = vmul.f32 %v2357, %v2429
        %v2438 = vmul.f32 %v2358, %v2430
        %v2439 = vmul.f32 %v2359, %v2431
        %v2440 = vmul.f32 %v2360, %v2432
        %v2441 = vmul.f32 %v2361, %v2433
        %v2442 = vmul.f32 %v2362, %v2434
        %v2443 = vmul.f32 %v2363, %v2435
        %v2444 = vadd.f32 %v2436, 0.041666646
        %v2445 = vadd.f32 %v2437, 0.041666646
        %v2446 = vadd.f32 %v2438, 0.041666646
        %v2447 = vadd.f32 %v2439, 0.041666646
        %v2448 = vadd.f32 %v2440, 0.041666646
        %v2449 = vadd.f32 %v2441, 0.041666646
        %v2450 = vadd.f32 %v2442, 0.041666646
        %v2451 = vadd.f32 %v2443, 0.041666646
        %v2452 = vmul.f32 %v2356, %v2444
        %v2453 = vmul.f32 %v2357, %v2445
        %v2454 = vmul.f32 %v2358, %v2446
        %v2455 = vmul.f32 %v2359, %v2447
        %v2456 = vmul.f32 %v2360, %v2448
        %v2457 = vmul.f32 %v2361, %v2449
        %v2458 = vmul.f32 %v2362, %v2450
        %v2459 = vmul.f32 %v2363, %v2451
        %v2460 = vadd.f32 %v2452, -0.5
        %v2461 = vadd.f32 %v2453, -0.5
        %v2462 = vadd.f32 %v2454, -0.5
        %v2463 = vadd.f32 %v2455, -0.5
        %v2464 = vadd.f32 %v2456, -0.5
        %v2465 = vadd.f32 %v2457, -0.5
        %v2466 = vadd.f32 %v2458, -0.5
        %v2467 = vadd.f32 %v2459, -0.5
        %v2468 = vmul.f32 %v2356, %v2460
        %v2469 = vmul.f32 %v2357, %v2461
        %v2470 = vmul.f32 %v2358, %v2462
        %v2471 = vmul.f32 %v2359, %v2463
        %v2472 = vmul.f32 %v2360, %v2464
        %v2473 = vmul.f32 %v2361, %v2465
        %v2474 = vmul.f32 %v2362, %v2466
        %v2475 = vmul.f32 %v2363, %v2467
        %v2476 = vadd.f32 %v2468, 1.0
        %v2477 = vadd.f32 %v2469, 1.0
        %v2478 = vadd.f32 %v2470, 1.0
        %v2479 = vadd.f32 %v2471, 1.0
        %v2480 = vadd.f32 %v2472, 1.0
        %v2481 = vadd.f32 %v2473, 1.0
        %v2482 = vadd.f32 %v2474, 1.0
        %v2483 = vadd.f32 %v2475, 1.0
        %v2484 = vcvt.f32.s32.to.zero.pseudo %v2300
        %v2485 = vcvt.f32.s32.to.zero.pseudo %v2301
        %v2486 = vcvt.f32.s32.to.zero.pseudo %v2302
        %v2487 = vcvt.f32.s32.to.zero.pseudo %v2303
        %v2488 = vcvt.f32.s32.to.zero.pseudo %v2304
        %v2489 = vcvt.f32.s32.to.zero.pseudo %v2305
        %v2490 = vcvt.f32.s32.to.zero.pseudo %v2306
        %v2491 = vcvt.f32.s32.to.zero.pseudo %v2307
        %v2492 = vand.u32 %v2484, 1
        %v2493 = vand.u32 %v2485, 1
        %v2494 = vand.u32 %v2486, 1
        %v2495 = vand.u32 %v2487, 1
        %v2496 = vand.u32 %v2488, 1
        %v2497 = vand.u32 %v2489, 1
        %v2498 = vand.u32 %v2490, 1
        %v2499 = vand.u32 %v2491, 1
        %vm2500 = vcmp.eq.s32.totalorder %v2492, 1
        %vm2501 = vcmp.eq.s32.totalorder %v2493, 1
        %vm2502 = vcmp.eq.s32.totalorder %v2494, 1
        %vm2503 = vcmp.eq.s32.totalorder %v2495, 1
        %vm2504 = vcmp.eq.s32.totalorder %v2496, 1
        %vm2505 = vcmp.eq.s32.totalorder %v2497, 1
        %vm2506 = vcmp.eq.s32.totalorder %v2498, 1
        %vm2507 = vcmp.eq.s32.totalorder %v2499, 1
        %v2508 = vand.u32 %v2484, 2
        %v2509 = vand.u32 %v2485, 2
        %v2510 = vand.u32 %v2486, 2
        %v2511 = vand.u32 %v2487, 2
        %v2512 = vand.u32 %v2488, 2
        %v2513 = vand.u32 %v2489, 2
        %v2514 = vand.u32 %v2490, 2
        %v2515 = vand.u32 %v2491, 2
        %vm2516 = vcmp.eq.s32.totalorder %v2508, 0
        %vm2517 = vcmp.eq.s32.totalorder %v2509, 0
        %vm2518 = vcmp.eq.s32.totalorder %v2510, 0
        %vm2519 = vcmp.eq.s32.totalorder %v2511, 0
        %vm2520 = vcmp.eq.s32.totalorder %v2512, 0
        %vm2521 = vcmp.eq.s32.totalorder %v2513, 0
        %vm2522 = vcmp.eq.s32.totalorder %v2514, 0
        %vm2523 = vcmp.eq.s32.totalorder %v2515, 0
        %v2524 = vsel %vm2516, 1.0, -1.0
        %v2525 = vsel %vm2517, 1.0, -1.0
        %v2526 = vsel %vm2518, 1.0, -1.0
        %v2527 = vsel %vm2519, 1.0, -1.0
        %v2528 = vsel %vm2520, 1.0, -1.0
        %v2529 = vsel %vm2521, 1.0, -1.0
        %v2530 = vsel %vm2522, 1.0, -1.0
        %v2531 = vsel %vm2523, 1.0, -1.0
        %v2532 = vadd.s32 %v2484, 1
        %v2533 = vadd.s32 %v2485, 1
        %v2534 = vadd.s32 %v2486, 1
        %v2535 = vadd.s32 %v2487, 1
        %v2536 = vadd.s32 %v2488, 1
        %v2537 = vadd.s32 %v2489, 1
        %v2538 = vadd.s32 %v2490, 1
        %v2539 = vadd.s32 %v2491, 1
        %v2540 = vand.u32 %v2532, 2
        %v2541 = vand.u32 %v2533, 2
        %v2542 = vand.u32 %v2534, 2
        %v2543 = vand.u32 %v2535, 2
        %v2544 = vand.u32 %v2536, 2
        %v2545 = vand.u32 %v2537, 2
        %v2546 = vand.u32 %v2538, 2
        %v2547 = vand.u32 %v2539, 2
        %vm2548 = vcmp.eq.s32.totalorder %v2540, 0
        %vm2549 = vcmp.eq.s32.totalorder %v2541, 0
        %vm2550 = vcmp.eq.s32.totalorder %v2542, 0
        %vm2551 = vcmp.eq.s32.totalorder %v2543, 0
        %vm2552 = vcmp.eq.s32.totalorder %v2544, 0
        %vm2553 = vcmp.eq.s32.totalorder %v2545, 0
        %vm2554 = vcmp.eq.s32.totalorder %v2546, 0
        %vm2555 = vcmp.eq.s32.totalorder %v2547, 0
        %v2556 = vsel %vm2548, 1.0, -1.0
        %v2557 = vsel %vm2549, 1.0, -1.0
        %v2558 = vsel %vm2550, 1.0, -1.0
        %v2559 = vsel %vm2551, 1.0, -1.0
        %v2560 = vsel %vm2552, 1.0, -1.0
        %v2561 = vsel %vm2553, 1.0, -1.0
        %v2562 = vsel %vm2554, 1.0, -1.0
        %v2563 = vsel %vm2555, 1.0, -1.0
        %v2564 = vsel %vm2500, %v2476, %v2412
        %v2565 = vsel %vm2501, %v2477, %v2413
        %v2566 = vsel %vm2502, %v2478, %v2414
        %v2567 = vsel %vm2503, %v2479, %v2415
        %v2568 = vsel %vm2504, %v2480, %v2416
        %v2569 = vsel %vm2505, %v2481, %v2417
        %v2570 = vsel %vm2506, %v2482, %v2418
        %v2571 = vsel %vm2507, %v2483, %v2419
        %v2572 = vmul.f32 %v2564, %v2524
        %v2573 = vmul.f32 %v2565, %v2525
        %v2574 = vmul.f32 %v2566, %v2526
        %v2575 = vmul.f32 %v2567, %v2527
        %v2576 = vmul.f32 %v2568, %v2528
        %v2577 = vmul.f32 %v2569, %v2529
        %v2578 = vmul.f32 %v2570, %v2530
        %v2579 = vmul.f32 %v2571, %v2531
        %v2580 = vsel %vm2500, %v2412, %v2476
        %v2581 = vsel %vm2501, %v2413, %v2477
        %v2582 = vsel %vm2502, %v2414, %v2478
        %v2583 = vsel %vm2503, %v2415, %v2479
        %v2584 = vsel %vm2504, %v2416, %v2480
        %v2585 = vsel %vm2505, %v2417, %v2481
        %v2586 = vsel %vm2506, %v2418, %v2482
        %v2587 = vsel %vm2507, %v2419, %v2483
        %v2588 = vmul.f32 %v2580, %v2556
        %v2589 = vmul.f32 %v2581, %v2557
        %v2590 = vmul.f32 %v2582, %v2558
        %v2591 = vmul.f32 %v2583, %v2559
        %v2592 = vmul.f32 %v2584, %v2560
        %v2593 = vmul.f32 %v2585, %v2561
        %v2594 = vmul.f32 %v2586, %v2562
        %v2595 = vmul.f32 %v2587, %v2563
        %v2604 = vrot.slane %v2572, 4
        %v2605 = vrot.slane %v2573, 4
        %v2606 = vrot.slane %v2574, 4
        %v2607 = vrot.slane %v2575, 4
        %v2608 = vrot.slane %v2576, 4
        %v2609 = vsel %vm607, %v2604, %v2608
        %v2610 = vrot.slane %v2577, 4
        %v2611 = vsel %vm607, %v2605, %v2610
        %v2612 = vrot.slane %v2578, 4
        %v2613 = vsel %vm607, %v2606, %v2612
        %v2614 = vrot.slane %v2579, 4
        %v2615 = vsel %vm607, %v2607, %v2614
        %2628 = vst [vmem:[%s134 + $0x80] sm:$0xf0] %v2604
        %2629 = vst [vmem:[%s134 + $0x88] sm:$0xf0] %v2605
        %2630 = vst [vmem:[%s134 + $0x90] sm:$0xf0] %v2606
        %2631 = vst [vmem:[%s134 + $0x98] sm:$0xf0] %v2607
        %2632 = vst [vmem:[%s134 + $0x180] sm:$0xff] %v2609
        %2633 = vst [vmem:[%s134 + $0x188] sm:$0xff] %v2611
        %2634 = vst [vmem:[%s134 + $0x190] sm:$0xff] %v2613
        %2635 = vst [vmem:[%s134 + $0x198] sm:$0xff] %v2615
        %2636 = vst [vmem:[%s134 + $0x280] sm:$0xf] %v2608
        %2637 = vst [vmem:[%s134 + $0x288] sm:$0xf] %v2610
        %2638 = vst [vmem:[%s134 + $0x290] sm:$0xf] %v2612
        %2639 = vst [vmem:[%s134 + $0x298] sm:$0xf] %v2614
        %v2648 = vrot.slane %v2588, 4
        %v2649 = vrot.slane %v2589, 4
        %v2650 = vrot.slane %v2590, 4
        %v2651 = vrot.slane %v2591, 4
        %v2652 = vrot.slane %v2592, 4
        %v2653 = vsel %vm607, %v2648, %v2652
        %v2654 = vrot.slane %v2593, 4
        %v2655 = vsel %vm607, %v2649, %v2654
        %v2656 = vrot.slane %v2594, 4
        %v2657 = vsel %vm607, %v2650, %v2656
        %v2658 = vrot.slane %v2595, 4
        %v2659 = vsel %vm607, %v2651, %v2658
        %2672 = vst [vmem:[%s134 + $0x280] sm:$0xf0] %v2648
        %2673 = vst [vmem:[%s134 + $0x288] sm:$0xf0] %v2649
        %2674 = vst [vmem:[%s134 + $0x290] sm:$0xf0] %v2650
        %2675 = vst [vmem:[%s134 + $0x298] sm:$0xf0] %v2651
        %2676 = vst [vmem:[%s134 + $0x380] sm:$0xff] %v2653
        %2677 = vst [vmem:[%s134 + $0x388] sm:$0xff] %v2655
        %2678 = vst [vmem:[%s134 + $0x390] sm:$0xff] %v2657
        %2679 = vst [vmem:[%s134 + $0x398] sm:$0xff] %v2659
        %2680 = vst [vmem:[%s134 + $0x480] sm:$0xf] %v2652
        %2681 = vst [vmem:[%s134 + $0x488] sm:$0xf] %v2654
        %2682 = vst [vmem:[%s134 + $0x490] sm:$0xf] %v2656
        %2683 = vst [vmem:[%s134 + $0x498] sm:$0xf] %v2658
        %v2684 = vld [vmem:[%s115 + $0x50] sm:$0xff]
        %v2685 = vld [vmem:[%s115 + $0x58] sm:$0xff]
        %2688 = vst [vmem:[#allocation1] ss:$2 sm:$0xff] %v2684
        %s2689 = scalar_lea.vmem [#allocation1], 16
        %2690 = vst [vmem:[%s2689] ss:$2 sm:$0xff] %v2685
        %v2691 = vld.sshfl [vmem:[#allocation1] sm:$0xff pattern:$0x75316420]
        %v2692 = vld.sshfl [vmem:[#allocation1 + $0x8] sm:$0xff pattern:$0x75316420]
        %v2693 = vld.sshfl [vmem:[#allocation1 + $0x10] sm:$0xff pattern:$0x75316420]
        %v2694 = vld.sshfl [vmem:[#allocation1 + $0x18] sm:$0xff pattern:$0x75316420]
        %2699 = vst [vmem:[%s134 + $0xa0] sm:$0xf] %v2691
        %2700 = vst [vmem:[%s134 + $0xa8] sm:$0xf] %v2692
        %2701 = vst [vmem:[%s134 + $0xb0] sm:$0xf] %v2693
        %2702 = vst [vmem:[%s134 + $0xb8] sm:$0xf] %v2694
        %v2703 = vperm.slane %v2684, 0
        %v2704 = vperm.slane %v2684, 4
        %v2705 = vperm.slane %v2685, 0
        %v2706 = vperm.slane %v2685, 4
        %v2711 = vperm.slane %v2703, 0
        %v2712 = vperm.slane %v2704, 0
        %v2713 = vperm.slane %v2705, 0
        %v2714 = vperm.slane %v2706, 0
        %2715 = vst [vmem:[#allocation2] sm:$0xf] %v2711
        %2716 = vst [vmem:[#allocation2 + $0x8] sm:$0xf] %v2712
        %2717 = vst [vmem:[#allocation2 + $0x10] sm:$0xf] %v2713
        %2718 = vst [vmem:[#allocation2 + $0x18] sm:$0xf] %v2714
        %v2719 = vperm.slane %v2684, 1
        %v2720 = vperm.slane %v2684, 5
        %v2721 = vperm.slane %v2685, 1
        %v2722 = vperm.slane %v2685, 5
        %v2727 = vperm.slane %v2719, 1
        %v2728 = vperm.slane %v2720, 1
        %v2729 = vperm.slane %v2721, 1
        %v2730 = vperm.slane %v2722, 1
        %2731 = vst [vmem:[#allocation2] sm:$0xf0] %v2727
        %2732 = vst [vmem:[#allocation2 + $0x8] sm:$0xf0] %v2728
        %2733 = vst [vmem:[#allocation2 + $0x10] sm:$0xf0] %v2729
        %2734 = vst [vmem:[#allocation2 + $0x18] sm:$0xf0] %v2730
        %v2735 = vperm.slane %v2684, 2
        %v2736 = vperm.slane %v2684, 6
        %v2737 = vperm.slane %v2685, 2
        %v2738 = vperm.slane %v2685, 6
        %v2743 = vperm.slane %v2735, 2
        %v2744 = vperm.slane %v2736, 2
        %v2745 = vperm.slane %v2737, 2
        %v2746 = vperm.slane %v2738, 2
        %2747 = vst [vmem:[#allocation2 + $0x20] sm:$0xf] %v2743
        %2748 = vst [vmem:[#allocation2 + $0x28] sm:$0xf] %v2744
        %2749 = vst [vmem:[#allocation2 + $0x30] sm:$0xf] %v2745
        %2750 = vst [vmem:[#allocation2 + $0x38] sm:$0xf] %v2746
        %v2751 = vperm.slane %v2684, 3
        %v2752 = vperm.slane %v2684, 7
        %v2753 = vperm.slane %v2685, 3
        %v2754 = vperm.slane %v2685, 7
        %v2759 = vperm.slane %v2751, 3
        %v2760 = vperm.slane %v2752, 3
        %v2761 = vperm.slane %v2753, 3
        %v2762 = vperm.slane %v2754, 3
        %2763 = vst [vmem:[#allocation2 + $0x20] sm:$0xf0] %v2759
        %2764 = vst [vmem:[#allocation2 + $0x28] sm:$0xf0] %v2760
        %2765 = vst [vmem:[#allocation2 + $0x30] sm:$0xf0] %v2761
        %2766 = vst [vmem:[#allocation2 + $0x38] sm:$0xf0] %v2762
        %v2767 = vld [vmem:[#allocation2] sm:$0xff]
        %v2768 = vld [vmem:[#allocation2 + $0x8] sm:$0xff]
        %v2769 = vld [vmem:[#allocation2 + $0x10] sm:$0xff]
        %v2770 = vld [vmem:[#allocation2 + $0x18] sm:$0xff]
        %v2771 = vld [vmem:[#allocation2 + $0x20] sm:$0xff]
        %v2772 = vld [vmem:[#allocation2 + $0x28] sm:$0xff]
        %v2773 = vld [vmem:[#allocation2 + $0x30] sm:$0xff]
        %v2774 = vld [vmem:[#allocation2 + $0x38] sm:$0xff]
        %v2775 = vmul.f32 %v2767, %v186
        %v2776 = vmul.f32 %v2768, %v186
        %v2777 = vmul.f32 %v2769, %v186
        %v2778 = vmul.f32 %v2770, %v186
        %v2779 = vmul.f32 %v2771, %v187
        %v2780 = vmul.f32 %v2772, %v187
        %v2781 = vmul.f32 %v2773, %v187
        %v2782 = vmul.f32 %v2774, %v187
        %v2783 = vmul.f32 %v2775, 0.63661975
        %v2784 = vmul.f32 %v2776, 0.63661975
        %v2785 = vmul.f32 %v2777, 0.63661975
        %v2786 = vmul.f32 %v2778, 0.63661975
        %v2787 = vmul.f32 %v2779, 0.63661975
        %v2788 = vmul.f32 %v2780, 0.63661975
        %v2789 = vmul.f32 %v2781, 0.63661975
        %v2790 = vmul.f32 %v2782, 0.63661975
        %v2791 = vadd.f32 %v2783, 0.5
        %v2792 = vadd.f32 %v2784, 0.5
        %v2793 = vadd.f32 %v2785, 0.5
        %v2794 = vadd.f32 %v2786, 0.5
        %v2795 = vadd.f32 %v2787, 0.5
        %v2796 = vadd.f32 %v2788, 0.5
        %v2797 = vadd.f32 %v2789, 0.5
        %v2798 = vadd.f32 %v2790, 0.5
        %v2799 = vfloor.f32 %v2791
        %v2800 = vfloor.f32 %v2792
        %v2801 = vfloor.f32 %v2793
        %v2802 = vfloor.f32 %v2794
        %v2803 = vfloor.f32 %v2795
        %v2804 = vfloor.f32 %v2796
        %v2805 = vfloor.f32 %v2797
        %v2806 = vfloor.f32 %v2798
        %v2807 = vmul.f32 %v2799, 1.5703125
        %v2808 = vmul.f32 %v2800, 1.5703125
        %v2809 = vmul.f32 %v2801, 1.5703125
        %v2810 = vmul.f32 %v2802, 1.5703125
        %v2811 = vmul.f32 %v2803, 1.5703125
        %v2812 = vmul.f32 %v2804, 1.5703125
        %v2813 = vmul.f32 %v2805, 1.5703125
        %v2814 = vmul.f32 %v2806, 1.5703125
        %v2815 = vsub.f32 %v2775, %v2807
        %v2816 = vsub.f32 %v2776, %v2808
        %v2817 = vsub.f32 %v2777, %v2809
        %v2818 = vsub.f32 %v2778, %v2810
        %v2819 = vsub.f32 %v2779, %v2811
        %v2820 = vsub.f32 %v2780, %v2812
        %v2821 = vsub.f32 %v2781, %v2813
        %v2822 = vsub.f32 %v2782, %v2814
        %v2823 = vmul.f32 %v2799, 0.0004837513
        %v2824 = vmul.f32 %v2800, 0.0004837513
        %v2825 = vmul.f32 %v2801, 0.0004837513
        %v2826 = vmul.f32 %v2802, 0.0004837513
        %v2827 = vmul.f32 %v2803, 0.0004837513
        %v2828 = vmul.f32 %v2804, 0.0004837513
        %v2829 = vmul.f32 %v2805, 0.0004837513
        %v2830 = vmul.f32 %v2806, 0.0004837513
        %v2831 = vsub.f32 %v2815, %v2823
        %v2832 = vsub.f32 %v2816, %v2824
        %v2833 = vsub.f32 %v2817, %v2825
        %v2834 = vsub.f32 %v2818, %v2826
        %v2835 = vsub.f32 %v2819, %v2827
        %v2836 = vsub.f32 %v2820, %v2828
        %v2837 = vsub.f32 %v2821, %v2829
        %v2838 = vsub.f32 %v2822, %v2830
        %v2839 = vmul.f32 %v2799, 7.54979e-08
        %v2840 = vmul.f32 %v2800, 7.54979e-08
        %v2841 = vmul.f32 %v2801, 7.54979e-08
        %v2842 = vmul.f32 %v2802, 7.54979e-08
        %v2843 = vmul.f32 %v2803, 7.54979e-08
        %v2844 = vmul.f32 %v2804, 7.54979e-08
        %v2845 = vmul.f32 %v2805, 7.54979e-08
        %v2846 = vmul.f32 %v2806, 7.54979e-08
        %v2847 = vsub.f32 %v2831, %v2839
        %v2848 = vsub.f32 %v2832, %v2840
        %v2849 = vsub.f32 %v2833, %v2841
        %v2850 = vsub.f32 %v2834, %v2842
        %v2851 = vsub.f32 %v2835, %v2843
        %v2852 = vsub.f32 %v2836, %v2844
        %v2853 = vsub.f32 %v2837, %v2845
        %v2854 = vsub.f32 %v2838, %v2846
        %v2855 = vmul.f32 %v2847, %v2847
        %v2856 = vmul.f32 %v2848, %v2848
        %v2857 = vmul.f32 %v2849, %v2849
        %v2858 = vmul.f32 %v2850, %v2850
        %v2859 = vmul.f32 %v2851, %v2851
        %v2860 = vmul.f32 %v2852, %v2852
        %v2861 = vmul.f32 %v2853, %v2853
        %v2862 = vmul.f32 %v2854, %v2854
        %v2863 = vmul.f32 %v2847, %v2855
        %v2864 = vmul.f32 %v2848, %v2856
        %v2865 = vmul.f32 %v2849, %v2857
        %v2866 = vmul.f32 %v2850, %v2858
        %v2867 = vmul.f32 %v2851, %v2859
        %v2868 = vmul.f32 %v2852, %v2860
        %v2869 = vmul.f32 %v2853, %v2861
        %v2870 = vmul.f32 %v2854, %v2862
        %v2871 = vmul.f32 %v2855, -0.00019515296
        %v2872 = vmul.f32 %v2856, -0.00019515296
        %v2873 = vmul.f32 %v2857, -0.00019515296
        %v2874 = vmul.f32 %v2858, -0.00019515296
        %v2875 = vmul.f32 %v2859, -0.00019515296
        %v2876 = vmul.f32 %v2860, -0.00019515296
        %v2877 = vmul.f32 %v2861, -0.00019515296
        %v2878 = vmul.f32 %v2862, -0.00019515296
        %v2879 = vadd.f32 %v2871, 0.008332161
        %v2880 = vadd.f32 %v2872, 0.008332161
        %v2881 = vadd.f32 %v2873, 0.008332161
        %v2882 = vadd.f32 %v2874, 0.008332161
        %v2883 = vadd.f32 %v2875, 0.008332161
        %v2884 = vadd.f32 %v2876, 0.008332161
        %v2885 = vadd.f32 %v2877, 0.008332161
        %v2886 = vadd.f32 %v2878, 0.008332161
        %v2887 = vmul.f32 %v2855, %v2879
        %v2888 = vmul.f32 %v2856, %v2880
        %v2889 = vmul.f32 %v2857, %v2881
        %v2890 = vmul.f32 %v2858, %v2882
        %v2891 = vmul.f32 %v2859, %v2883
        %v2892 = vmul.f32 %v2860, %v2884
        %v2893 = vmul.f32 %v2861, %v2885
        %v2894 = vmul.f32 %v2862, %v2886
        %v2895 = vadd.f32 %v2887, -0.16666655
        %v2896 = vadd.f32 %v2888, -0.16666655
        %v2897 = vadd.f32 %v2889, -0.16666655
        %v2898 = vadd.f32 %v2890, -0.16666655
        %v2899 = vadd.f32 %v2891, -0.16666655
        %v2900 = vadd.f32 %v2892, -0.16666655
        %v2901 = vadd.f32 %v2893, -0.16666655
        %v2902 = vadd.f32 %v2894, -0.16666655
        %v2903 = vmul.f32 %v2863, %v2895
        %v2904 = vmul.f32 %v2864, %v2896
        %v2905 = vmul.f32 %v2865, %v2897
        %v2906 = vmul.f32 %v2866, %v2898
        %v2907 = vmul.f32 %v2867, %v2899
        %v2908 = vmul.f32 %v2868, %v2900
        %v2909 = vmul.f32 %v2869, %v2901
        %v2910 = vmul.f32 %v2870, %v2902
        %v2911 = vadd.f32 %v2847, %v2903
        %v2912 = vadd.f32 %v2848, %v2904
        %v2913 = vadd.f32 %v2849, %v2905
        %v2914 = vadd.f32 %v2850, %v2906
        %v2915 = vadd.f32 %v2851, %v2907
        %v2916 = vadd.f32 %v2852, %v2908
        %v2917 = vadd.f32 %v2853, %v2909
        %v2918 = vadd.f32 %v2854, %v2910
        %v2919 = vmul.f32 %v2855, 2.4433157e-05
        %v2920 = vmul.f32 %v2856, 2.4433157e-05
        %v2921 = vmul.f32 %v2857, 2.4433157e-05
        %v2922 = vmul.f32 %v2858, 2.4433157e-05
        %v2923 = vmul.f32 %v2859, 2.4433157e-05
        %v2924 = vmul.f32 %v2860, 2.4433157e-05
        %v2925 = vmul.f32 %v2861, 2.4433157e-05
        %v2926 = vmul.f32 %v2862, 2.4433157e-05
        %v2927 = vadd.f32 %v2919, -0.0013887316
        %v2928 = vadd.f32 %v2920, -0.0013887316
        %v2929 = vadd.f32 %v2921, -0.0013887316
        %v2930 = vadd.f32 %v2922, -0.0013887316
        %v2931 = vadd.f32 %v2923, -0.0013887316
        %v2932 = vadd.f32 %v2924, -0.0013887316
        %v2933 = vadd.f32 %v2925, -0.0013887316
        %v2934 = vadd.f32 %v2926, -0.0013887316
        %v2935 = vmul.f32 %v2855, %v2927
        %v2936 = vmul.f32 %v2856, %v2928
        %v2937 = vmul.f32 %v2857, %v2929
        %v2938 = vmul.f32 %v2858, %v2930
        %v2939 = vmul.f32 %v2859, %v2931
        %v2940 = vmul.f32 %v2860, %v2932
        %v2941 = vmul.f32 %v2861, %v2933
        %v2942 = vmul.f32 %v2862, %v2934
        %v2943 = vadd.f32 %v2935, 0.041666646
        %v2944 = vadd.f32 %v2936, 0.041666646
        %v2945 = vadd.f32 %v2937, 0.041666646
        %v2946 = vadd.f32 %v2938, 0.041666646
        %v2947 = vadd.f32 %v2939, 0.041666646
        %v2948 = vadd.f32 %v2940, 0.041666646
        %v2949 = vadd.f32 %v2941, 0.041666646
        %v2950 = vadd.f32 %v2942, 0.041666646
        %v2951 = vmul.f32 %v2855, %v2943
        %v2952 = vmul.f32 %v2856, %v2944
        %v2953 = vmul.f32 %v2857, %v2945
        %v2954 = vmul.f32 %v2858, %v2946
        %v2955 = vmul.f32 %v2859, %v2947
        %v2956 = vmul.f32 %v2860, %v2948
        %v2957 = vmul.f32 %v2861, %v2949
        %v2958 = vmul.f32 %v2862, %v2950
        %v2959 = vadd.f32 %v2951, -0.5
        %v2960 = vadd.f32 %v2952, -0.5
        %v2961 = vadd.f32 %v2953, -0.5
        %v2962 = vadd.f32 %v2954, -0.5
        %v2963 = vadd.f32 %v2955, -0.5
        %v2964 = vadd.f32 %v2956, -0.5
        %v2965 = vadd.f32 %v2957, -0.5
        %v2966 = vadd.f32 %v2958, -0.5
        %v2967 = vmul.f32 %v2855, %v2959
        %v2968 = vmul.f32 %v2856, %v2960
        %v2969 = vmul.f32 %v2857, %v2961
        %v2970 = vmul.f32 %v2858, %v2962
        %v2971 = vmul.f32 %v2859, %v2963
        %v2972 = vmul.f32 %v2860, %v2964
        %v2973 = vmul.f32 %v2861, %v2965
        %v2974 = vmul.f32 %v2862, %v2966
        %v2975 = vadd.f32 %v2967, 1.0
        %v2976 = vadd.f32 %v2968, 1.0
        %v2977 = vadd.f32 %v2969, 1.0
        %v2978 = vadd.f32 %v2970, 1.0
        %v2979 = vadd.f32 %v2971, 1.0
        %v2980 = vadd.f32 %v2972, 1.0
        %v2981 = vadd.f32 %v2973, 1.0
        %v2982 = vadd.f32 %v2974, 1.0
        %v2983 = vcvt.f32.s32.to.zero.pseudo %v2799
        %v2984 = vcvt.f32.s32.to.zero.pseudo %v2800
        %v2985 = vcvt.f32.s32.to.zero.pseudo %v2801
        %v2986 = vcvt.f32.s32.to.zero.pseudo %v2802
        %v2987 = vcvt.f32.s32.to.zero.pseudo %v2803
        %v2988 = vcvt.f32.s32.to.zero.pseudo %v2804
        %v2989 = vcvt.f32.s32.to.zero.pseudo %v2805
        %v2990 = vcvt.f32.s32.to.zero.pseudo %v2806
        %v2991 = vand.u32 %v2983, 1
        %v2992 = vand.u32 %v2984, 1
        %v2993 = vand.u32 %v2985, 1
        %v2994 = vand.u32 %v2986, 1
        %v2995 = vand.u32 %v2987, 1
        %v2996 = vand.u32 %v2988, 1
        %v2997 = vand.u32 %v2989, 1
        %v2998 = vand.u32 %v2990, 1
        %vm2999 = vcmp.eq.s32.totalorder %v2991, 1
        %vm3000 = vcmp.eq.s32.totalorder %v2992, 1
        %vm3001 = vcmp.eq.s32.totalorder %v2993, 1
        %vm3002 = vcmp.eq.s32.totalorder %v2994, 1
        %vm3003 = vcmp.eq.s32.totalorder %v2995, 1
        %vm3004 = vcmp.eq.s32.totalorder %v2996, 1
        %vm3005 = vcmp.eq.s32.totalorder %v2997, 1
        %vm3006 = vcmp.eq.s32.totalorder %v2998, 1
        %v3007 = vand.u32 %v2983, 2
        %v3008 = vand.u32 %v2984, 2
        %v3009 = vand.u32 %v2985, 2
        %v3010 = vand.u32 %v2986, 2
        %v3011 = vand.u32 %v2987, 2
        %v3012 = vand.u32 %v2988, 2
        %v3013 = vand.u32 %v2989, 2
        %v3014 = vand.u32 %v2990, 2
        %vm3015 = vcmp.eq.s32.totalorder %v3007, 0
        %vm3016 = vcmp.eq.s32.totalorder %v3008, 0
        %vm3017 = vcmp.eq.s32.totalorder %v3009, 0
        %vm3018 = vcmp.eq.s32.totalorder %v3010, 0
        %vm3019 = vcmp.eq.s32.totalorder %v3011, 0
        %vm3020 = vcmp.eq.s32.totalorder %v3012, 0
        %vm3021 = vcmp.eq.s32.totalorder %v3013, 0
        %vm3022 = vcmp.eq.s32.totalorder %v3014, 0
        %v3023 = vsel %vm3015, 1.0, -1.0
        %v3024 = vsel %vm3016, 1.0, -1.0
        %v3025 = vsel %vm3017, 1.0, -1.0
        %v3026 = vsel %vm3018, 1.0, -1.0
        %v3027 = vsel %vm3019, 1.0, -1.0
        %v3028 = vsel %vm3020, 1.0, -1.0
        %v3029 = vsel %vm3021, 1.0, -1.0
        %v3030 = vsel %vm3022, 1.0, -1.0
        %v3031 = vadd.s32 %v2983, 1
        %v3032 = vadd.s32 %v2984, 1
        %v3033 = vadd.s32 %v2985, 1
        %v3034 = vadd.s32 %v2986, 1
        %v3035 = vadd.s32 %v2987, 1
        %v3036 = vadd.s32 %v2988, 1
        %v3037 = vadd.s32 %v2989, 1
        %v3038 = vadd.s32 %v2990, 1
        %v3039 = vand.u32 %v3031, 2
        %v3040 = vand.u32 %v3032, 2
        %v3041 = vand.u32 %v3033, 2
        %v3042 = vand.u32 %v3034, 2
        %v3043 = vand.u32 %v3035, 2
        %v3044 = vand.u32 %v3036, 2
        %v3045 = vand.u32 %v3037, 2
        %v3046 = vand.u32 %v3038, 2
        %vm3047 = vcmp.eq.s32.totalorder %v3039, 0
        %vm3048 = vcmp.eq.s32.totalorder %v3040, 0
        %vm3049 = vcmp.eq.s32.totalorder %v3041, 0
        %vm3050 = vcmp.eq.s32.totalorder %v3042, 0
        %vm3051 = vcmp.eq.s32.totalorder %v3043, 0
        %vm3052 = vcmp.eq.s32.totalorder %v3044, 0
        %vm3053 = vcmp.eq.s32.totalorder %v3045, 0
        %vm3054 = vcmp.eq.s32.totalorder %v3046, 0
        %v3055 = vsel %vm3047, 1.0, -1.0
        %v3056 = vsel %vm3048, 1.0, -1.0
        %v3057 = vsel %vm3049, 1.0, -1.0
        %v3058 = vsel %vm3050, 1.0, -1.0
        %v3059 = vsel %vm3051, 1.0, -1.0
        %v3060 = vsel %vm3052, 1.0, -1.0
        %v3061 = vsel %vm3053, 1.0, -1.0
        %v3062 = vsel %vm3054, 1.0, -1.0
        %v3063 = vsel %vm2999, %v2975, %v2911
        %v3064 = vsel %vm3000, %v2976, %v2912
        %v3065 = vsel %vm3001, %v2977, %v2913
        %v3066 = vsel %vm3002, %v2978, %v2914
        %v3067 = vsel %vm3003, %v2979, %v2915
        %v3068 = vsel %vm3004, %v2980, %v2916
        %v3069 = vsel %vm3005, %v2981, %v2917
        %v3070 = vsel %vm3006, %v2982, %v2918
        %v3071 = vmul.f32 %v3063, %v3023
        %v3072 = vmul.f32 %v3064, %v3024
        %v3073 = vmul.f32 %v3065, %v3025
        %v3074 = vmul.f32 %v3066, %v3026
        %v3075 = vmul.f32 %v3067, %v3027
        %v3076 = vmul.f32 %v3068, %v3028
        %v3077 = vmul.f32 %v3069, %v3029
        %v3078 = vmul.f32 %v3070, %v3030
        %v3079 = vsel %vm2999, %v2911, %v2975
        %v3080 = vsel %vm3000, %v2912, %v2976
        %v3081 = vsel %vm3001, %v2913, %v2977
        %v3082 = vsel %vm3002, %v2914, %v2978
        %v3083 = vsel %vm3003, %v2915, %v2979
        %v3084 = vsel %vm3004, %v2916, %v2980
        %v3085 = vsel %vm3005, %v2917, %v2981
        %v3086 = vsel %vm3006, %v2918, %v2982
        %v3087 = vmul.f32 %v3079, %v3055
        %v3088 = vmul.f32 %v3080, %v3056
        %v3089 = vmul.f32 %v3081, %v3057
        %v3090 = vmul.f32 %v3082, %v3058
        %v3091 = vmul.f32 %v3083, %v3059
        %v3092 = vmul.f32 %v3084, %v3060
        %v3093 = vmul.f32 %v3085, %v3061
        %v3094 = vmul.f32 %v3086, %v3062
        %v3103 = vrot.slane %v3071, 4
        %v3104 = vrot.slane %v3072, 4
        %v3105 = vrot.slane %v3073, 4
        %v3106 = vrot.slane %v3074, 4
        %v3107 = vrot.slane %v3075, 4
        %v3108 = vsel %vm607, %v3103, %v3107
        %v3109 = vrot.slane %v3076, 4
        %v3110 = vsel %vm607, %v3104, %v3109
        %v3111 = vrot.slane %v3077, 4
        %v3112 = vsel %vm607, %v3105, %v3111
        %v3113 = vrot.slane %v3078, 4
        %v3114 = vsel %vm607, %v3106, %v3113
        %3127 = vst [vmem:[%s134 + $0xa0] sm:$0xf0] %v3103
        %3128 = vst [vmem:[%s134 + $0xa8] sm:$0xf0] %v3104
        %3129 = vst [vmem:[%s134 + $0xb0] sm:$0xf0] %v3105
        %3130 = vst [vmem:[%s134 + $0xb8] sm:$0xf0] %v3106
        %3131 = vst [vmem:[%s134 + $0x1a0] sm:$0xff] %v3108
        %3132 = vst [vmem:[%s134 + $0x1a8] sm:$0xff] %v3110
        %3133 = vst [vmem:[%s134 + $0x1b0] sm:$0xff] %v3112
        %3134 = vst [vmem:[%s134 + $0x1b8] sm:$0xff] %v3114
        %3135 = vst [vmem:[%s134 + $0x2a0] sm:$0xf] %v3107
        %3136 = vst [vmem:[%s134 + $0x2a8] sm:$0xf] %v3109
        %3137 = vst [vmem:[%s134 + $0x2b0] sm:$0xf] %v3111
        %3138 = vst [vmem:[%s134 + $0x2b8] sm:$0xf] %v3113
        %v3147 = vrot.slane %v3087, 4
        %v3148 = vrot.slane %v3088, 4
        %v3149 = vrot.slane %v3089, 4
        %v3150 = vrot.slane %v3090, 4
        %v3151 = vrot.slane %v3091, 4
        %v3152 = vsel %vm607, %v3147, %v3151
        %v3153 = vrot.slane %v3092, 4
        %v3154 = vsel %vm607, %v3148, %v3153
        %v3155 = vrot.slane %v3093, 4
        %v3156 = vsel %vm607, %v3149, %v3155
        %v3157 = vrot.slane %v3094, 4
        %v3158 = vsel %vm607, %v3150, %v3157
        %3171 = vst [vmem:[%s134 + $0x2a0] sm:$0xf0] %v3147
        %3172 = vst [vmem:[%s134 + $0x2a8] sm:$0xf0] %v3148
        %3173 = vst [vmem:[%s134 + $0x2b0] sm:$0xf0] %v3149
        %3174 = vst [vmem:[%s134 + $0x2b8] sm:$0xf0] %v3150
        %3175 = vst [vmem:[%s134 + $0x3a0] sm:$0xff] %v3152
        %3176 = vst [vmem:[%s134 + $0x3a8] sm:$0xff] %v3154
        %3177 = vst [vmem:[%s134 + $0x3b0] sm:$0xff] %v3156
        %3178 = vst [vmem:[%s134 + $0x3b8] sm:$0xff] %v3158
        %3179 = vst [vmem:[%s134 + $0x4a0] sm:$0xf] %v3151
        %3180 = vst [vmem:[%s134 + $0x4a8] sm:$0xf] %v3153
        %3181 = vst [vmem:[%s134 + $0x4b0] sm:$0xf] %v3155
        %3182 = vst [vmem:[%s134 + $0x4b8] sm:$0xf] %v3157
        %v3183 = vld [vmem:[%s115 + $0x60] sm:$0xff]
        %v3184 = vld [vmem:[%s115 + $0x68] sm:$0xff]
        %3187 = vst [vmem:[#allocation1] ss:$2 sm:$0xff] %v3183
        %s3188 = scalar_lea.vmem [#allocation1], 16
        %3189 = vst [vmem:[%s3188] ss:$2 sm:$0xff] %v3184
        %v3190 = vld.sshfl [vmem:[#allocation1] sm:$0xff pattern:$0x75316420]
        %v3191 = vld.sshfl [vmem:[#allocation1 + $0x8] sm:$0xff pattern:$0x75316420]
        %v3192 = vld.sshfl [vmem:[#allocation1 + $0x10] sm:$0xff pattern:$0x75316420]
        %v3193 = vld.sshfl [vmem:[#allocation1 + $0x18] sm:$0xff pattern:$0x75316420]
        %3198 = vst [vmem:[%s134 + $0xc0] sm:$0xf] %v3190
        %3199 = vst [vmem:[%s134 + $0xc8] sm:$0xf] %v3191
        %3200 = vst [vmem:[%s134 + $0xd0] sm:$0xf] %v3192
        %3201 = vst [vmem:[%s134 + $0xd8] sm:$0xf] %v3193
        %v3202 = vperm.slane %v3183, 0
        %v3203 = vperm.slane %v3183, 4
        %v3204 = vperm.slane %v3184, 0
        %v3205 = vperm.slane %v3184, 4
        %v3210 = vperm.slane %v3202, 0
        %v3211 = vperm.slane %v3203, 0
        %v3212 = vperm.slane %v3204, 0
        %v3213 = vperm.slane %v3205, 0
        %3214 = vst [vmem:[#allocation2] sm:$0xf] %v3210
        %3215 = vst [vmem:[#allocation2 + $0x8] sm:$0xf] %v3211
        %3216 = vst [vmem:[#allocation2 + $0x10] sm:$0xf] %v3212
        %3217 = vst [vmem:[#allocation2 + $0x18] sm:$0xf] %v3213
        %v3218 = vperm.slane %v3183, 1
        %v3219 = vperm.slane %v3183, 5
        %v3220 = vperm.slane %v3184, 1
        %v3221 = vperm.slane %v3184, 5
        %v3226 = vperm.slane %v3218, 1
        %v3227 = vperm.slane %v3219, 1
        %v3228 = vperm.slane %v3220, 1
        %v3229 = vperm.slane %v3221, 1
        %3230 = vst [vmem:[#allocation2] sm:$0xf0] %v3226
        %3231 = vst [vmem:[#allocation2 + $0x8] sm:$0xf0] %v3227
        %3232 = vst [vmem:[#allocation2 + $0x10] sm:$0xf0] %v3228
        %3233 = vst [vmem:[#allocation2 + $0x18] sm:$0xf0] %v3229
        %v3234 = vperm.slane %v3183, 2
        %v3235 = vperm.slane %v3183, 6
        %v3236 = vperm.slane %v3184, 2
        %v3237 = vperm.slane %v3184, 6
        %v3242 = vperm.slane %v3234, 2
        %v3243 = vperm.slane %v3235, 2
        %v3244 = vperm.slane %v3236, 2
        %v3245 = vperm.slane %v3237, 2
        %3246 = vst [vmem:[#allocation2 + $0x20] sm:$0xf] %v3242
        %3247 = vst [vmem:[#allocation2 + $0x28] sm:$0xf] %v3243
        %3248 = vst [vmem:[#allocation2 + $0x30] sm:$0xf] %v3244
        %3249 = vst [vmem:[#allocation2 + $0x38] sm:$0xf] %v3245
        %v3250 = vperm.slane %v3183, 3
        %v3251 = vperm.slane %v3183, 7
        %v3252 = vperm.slane %v3184, 3
        %v3253 = vperm.slane %v3184, 7
        %v3258 = vperm.slane %v3250, 3
        %v3259 = vperm.slane %v3251, 3
        %v3260 = vperm.slane %v3252, 3
        %v3261 = vperm.slane %v3253, 3
        %3262 = vst [vmem:[#allocation2 + $0x20] sm:$0xf0] %v3258
        %3263 = vst [vmem:[#allocation2 + $0x28] sm:$0xf0] %v3259
        %3264 = vst [vmem:[#allocation2 + $0x30] sm:$0xf0] %v3260
        %3265 = vst [vmem:[#allocation2 + $0x38] sm:$0xf0] %v3261
        %v3266 = vld [vmem:[#allocation2] sm:$0xff]
        %v3267 = vld [vmem:[#allocation2 + $0x8] sm:$0xff]
        %v3268 = vld [vmem:[#allocation2 + $0x10] sm:$0xff]
        %v3269 = vld [vmem:[#allocation2 + $0x18] sm:$0xff]
        %v3270 = vld [vmem:[#allocation2 + $0x20] sm:$0xff]
        %v3271 = vld [vmem:[#allocation2 + $0x28] sm:$0xff]
        %v3272 = vld [vmem:[#allocation2 + $0x30] sm:$0xff]
        %v3273 = vld [vmem:[#allocation2 + $0x38] sm:$0xff]
        %v3274 = vmul.f32 %v3266, %v186
        %v3275 = vmul.f32 %v3267, %v186
        %v3276 = vmul.f32 %v3268, %v186
        %v3277 = vmul.f32 %v3269, %v186
        %v3278 = vmul.f32 %v3270, %v187
        %v3279 = vmul.f32 %v3271, %v187
        %v3280 = vmul.f32 %v3272, %v187
        %v3281 = vmul.f32 %v3273, %v187
        %v3282 = vmul.f32 %v3274, 0.63661975
        %v3283 = vmul.f32 %v3275, 0.63661975
        %v3284 = vmul.f32 %v3276, 0.63661975
        %v3285 = vmul.f32 %v3277, 0.63661975
        %v3286 = vmul.f32 %v3278, 0.63661975
        %v3287 = vmul.f32 %v3279, 0.63661975
        %v3288 = vmul.f32 %v3280, 0.63661975
        %v3289 = vmul.f32 %v3281, 0.63661975
        %v3290 = vadd.f32 %v3282, 0.5
        %v3291 = vadd.f32 %v3283, 0.5
        %v3292 = vadd.f32 %v3284, 0.5
        %v3293 = vadd.f32 %v3285, 0.5
        %v3294 = vadd.f32 %v3286, 0.5
        %v3295 = vadd.f32 %v3287, 0.5
        %v3296 = vadd.f32 %v3288, 0.5
        %v3297 = vadd.f32 %v3289, 0.5
        %v3298 = vfloor.f32 %v3290
        %v3299 = vfloor.f32 %v3291
        %v3300 = vfloor.f32 %v3292
        %v3301 = vfloor.f32 %v3293
        %v3302 = vfloor.f32 %v3294
        %v3303 = vfloor.f32 %v3295
        %v3304 = vfloor.f32 %v3296
        %v3305 = vfloor.f32 %v3297
        %v3306 = vmul.f32 %v3298, 1.5703125
        %v3307 = vmul.f32 %v3299, 1.5703125
        %v3308 = vmul.f32 %v3300, 1.5703125
        %v3309 = vmul.f32 %v3301, 1.5703125
        %v3310 = vmul.f32 %v3302, 1.5703125
        %v3311 = vmul.f32 %v3303, 1.5703125
        %v3312 = vmul.f32 %v3304, 1.5703125
        %v3313 = vmul.f32 %v3305, 1.5703125
        %v3314 = vsub.f32 %v3274, %v3306
        %v3315 = vsub.f32 %v3275, %v3307
        %v3316 = vsub.f32 %v3276, %v3308
        %v3317 = vsub.f32 %v3277, %v3309
        %v3318 = vsub.f32 %v3278, %v3310
        %v3319 = vsub.f32 %v3279, %v3311
        %v3320 = vsub.f32 %v3280, %v3312
        %v3321 = vsub.f32 %v3281, %v3313
        %v3322 = vmul.f32 %v3298, 0.0004837513
        %v3323 = vmul.f32 %v3299, 0.0004837513
        %v3324 = vmul.f32 %v3300, 0.0004837513
        %v3325 = vmul.f32 %v3301, 0.0004837513
        %v3326 = vmul.f32 %v3302, 0.0004837513
        %v3327 = vmul.f32 %v3303, 0.0004837513
        %v3328 = vmul.f32 %v3304, 0.0004837513
        %v3329 = vmul.f32 %v3305, 0.0004837513
        %v3330 = vsub.f32 %v3314, %v3322
        %v3331 = vsub.f32 %v3315, %v3323
        %v3332 = vsub.f32 %v3316, %v3324
        %v3333 = vsub.f32 %v3317, %v3325
        %v3334 = vsub.f32 %v3318, %v3326
        %v3335 = vsub.f32 %v3319, %v3327
        %v3336 = vsub.f32 %v3320, %v3328
        %v3337 = vsub.f32 %v3321, %v3329
        %v3338 = vmul.f32 %v3298, 7.54979e-08
        %v3339 = vmul.f32 %v3299, 7.54979e-08
        %v3340 = vmul.f32 %v3300, 7.54979e-08
        %v3341 = vmul.f32 %v3301, 7.54979e-08
        %v3342 = vmul.f32 %v3302, 7.54979e-08
        %v3343 = vmul.f32 %v3303, 7.54979e-08
        %v3344 = vmul.f32 %v3304, 7.54979e-08
        %v3345 = vmul.f32 %v3305, 7.54979e-08
        %v3346 = vsub.f32 %v3330, %v3338
        %v3347 = vsub.f32 %v3331, %v3339
        %v3348 = vsub.f32 %v3332, %v3340
        %v3349 = vsub.f32 %v3333, %v3341
        %v3350 = vsub.f32 %v3334, %v3342
        %v3351 = vsub.f32 %v3335, %v3343
        %v3352 = vsub.f32 %v3336, %v3344
        %v3353 = vsub.f32 %v3337, %v3345
        %v3354 = vmul.f32 %v3346, %v3346
        %v3355 = vmul.f32 %v3347, %v3347
        %v3356 = vmul.f32 %v3348, %v3348
        %v3357 = vmul.f32 %v3349, %v3349
        %v3358 = vmul.f32 %v3350, %v3350
        %v3359 = vmul.f32 %v3351, %v3351
        %v3360 = vmul.f32 %v3352, %v3352
        %v3361 = vmul.f32 %v3353, %v3353
        %v3362 = vmul.f32 %v3346, %v3354
        %v3363 = vmul.f32 %v3347, %v3355
        %v3364 = vmul.f32 %v3348, %v3356
        %v3365 = vmul.f32 %v3349, %v3357
        %v3366 = vmul.f32 %v3350, %v3358
        %v3367 = vmul.f32 %v3351, %v3359
        %v3368 = vmul.f32 %v3352, %v3360
        %v3369 = vmul.f32 %v3353, %v3361
        %v3370 = vmul.f32 %v3354, -0.00019515296
        %v3371 = vmul.f32 %v3355, -0.00019515296
        %v3372 = vmul.f32 %v3356, -0.00019515296
        %v3373 = vmul.f32 %v3357, -0.00019515296
        %v3374 = vmul.f32 %v3358, -0.00019515296
        %v3375 = vmul.f32 %v3359, -0.00019515296
        %v3376 = vmul.f32 %v3360, -0.00019515296
        %v3377 = vmul.f32 %v3361, -0.00019515296
        %v3378 = vadd.f32 %v3370, 0.008332161
        %v3379 = vadd.f32 %v3371, 0.008332161
        %v3380 = vadd.f32 %v3372, 0.008332161
        %v3381 = vadd.f32 %v3373, 0.008332161
        %v3382 = vadd.f32 %v3374, 0.008332161
        %v3383 = vadd.f32 %v3375, 0.008332161
        %v3384 = vadd.f32 %v3376, 0.008332161
        %v3385 = vadd.f32 %v3377, 0.008332161
        %v3386 = vmul.f32 %v3354, %v3378
        %v3387 = vmul.f32 %v3355, %v3379
        %v3388 = vmul.f32 %v3356, %v3380
        %v3389 = vmul.f32 %v3357, %v3381
        %v3390 = vmul.f32 %v3358, %v3382
        %v3391 = vmul.f32 %v3359, %v3383
        %v3392 = vmul.f32 %v3360, %v3384
        %v3393 = vmul.f32 %v3361, %v3385
        %v3394 = vadd.f32 %v3386, -0.16666655
        %v3395 = vadd.f32 %v3387, -0.16666655
        %v3396 = vadd.f32 %v3388, -0.16666655
        %v3397 = vadd.f32 %v3389, -0.16666655
        %v3398 = vadd.f32 %v3390, -0.16666655
        %v3399 = vadd.f32 %v3391, -0.16666655
        %v3400 = vadd.f32 %v3392, -0.16666655
        %v3401 = vadd.f32 %v3393, -0.16666655
        %v3402 = vmul.f32 %v3362, %v3394
        %v3403 = vmul.f32 %v3363, %v3395
        %v3404 = vmul.f32 %v3364, %v3396
        %v3405 = vmul.f32 %v3365, %v3397
        %v3406 = vmul.f32 %v3366, %v3398
        %v3407 = vmul.f32 %v3367, %v3399
        %v3408 = vmul.f32 %v3368, %v3400
        %v3409 = vmul.f32 %v3369, %v3401
        %v3410 = vadd.f32 %v3346, %v3402
        %v3411 = vadd.f32 %v3347, %v3403
        %v3412 = vadd.f32 %v3348, %v3404
        %v3413 = vadd.f32 %v3349, %v3405
        %v3414 = vadd.f32 %v3350, %v3406
        %v3415 = vadd.f32 %v3351, %v3407
        %v3416 = vadd.f32 %v3352, %v3408
        %v3417 = vadd.f32 %v3353, %v3409
        %v3418 = vmul.f32 %v3354, 2.4433157e-05
        %v3419 = vmul.f32 %v3355, 2.4433157e-05
        %v3420 = vmul.f32 %v3356, 2.4433157e-05
        %v3421 = vmul.f32 %v3357, 2.4433157e-05
        %v3422 = vmul.f32 %v3358, 2.4433157e-05
        %v3423 = vmul.f32 %v3359, 2.4433157e-05
        %v3424 = vmul.f32 %v3360, 2.4433157e-05
        %v3425 = vmul.f32 %v3361, 2.4433157e-05
        %v3426 = vadd.f32 %v3418, -0.0013887316
        %v3427 = vadd.f32 %v3419, -0.0013887316
        %v3428 = vadd.f32 %v3420, -0.0013887316
        %v3429 = vadd.f32 %v3421, -0.0013887316
        %v3430 = vadd.f32 %v3422, -0.0013887316
        %v3431 = vadd.f32 %v3423, -0.0013887316
        %v3432 = vadd.f32 %v3424, -0.0013887316
        %v3433 = vadd.f32 %v3425, -0.0013887316
        %v3434 = vmul.f32 %v3354, %v3426
        %v3435 = vmul.f32 %v3355, %v3427
        %v3436 = vmul.f32 %v3356, %v3428
        %v3437 = vmul.f32 %v3357, %v3429
        %v3438 = vmul.f32 %v3358, %v3430
        %v3439 = vmul.f32 %v3359, %v3431
        %v3440 = vmul.f32 %v3360, %v3432
        %v3441 = vmul.f32 %v3361, %v3433
        %v3442 = vadd.f32 %v3434, 0.041666646
        %v3443 = vadd.f32 %v3435, 0.041666646
        %v3444 = vadd.f32 %v3436, 0.041666646
        %v3445 = vadd.f32 %v3437, 0.041666646
        %v3446 = vadd.f32 %v3438, 0.041666646
        %v3447 = vadd.f32 %v3439, 0.041666646
        %v3448 = vadd.f32 %v3440, 0.041666646
        %v3449 = vadd.f32 %v3441, 0.041666646
        %v3450 = vmul.f32 %v3354, %v3442
        %v3451 = vmul.f32 %v3355, %v3443
        %v3452 = vmul.f32 %v3356, %v3444
        %v3453 = vmul.f32 %v3357, %v3445
        %v3454 = vmul.f32 %v3358, %v3446
        %v3455 = vmul.f32 %v3359, %v3447
        %v3456 = vmul.f32 %v3360, %v3448
        %v3457 = vmul.f32 %v3361, %v3449
        %v3458 = vadd.f32 %v3450, -0.5
        %v3459 = vadd.f32 %v3451, -0.5
        %v3460 = vadd.f32 %v3452, -0.5
        %v3461 = vadd.f32 %v3453, -0.5
        %v3462 = vadd.f32 %v3454, -0.5
        %v3463 = vadd.f32 %v3455, -0.5
        %v3464 = vadd.f32 %v3456, -0.5
        %v3465 = vadd.f32 %v3457, -0.5
        %v3466 = vmul.f32 %v3354, %v3458
        %v3467 = vmul.f32 %v3355, %v3459
        %v3468 = vmul.f32 %v3356, %v3460
        %v3469 = vmul.f32 %v3357, %v3461
        %v3470 = vmul.f32 %v3358, %v3462
        %v3471 = vmul.f32 %v3359, %v3463
        %v3472 = vmul.f32 %v3360, %v3464
        %v3473 = vmul.f32 %v3361, %v3465
        %v3474 = vadd.f32 %v3466, 1.0
        %v3475 = vadd.f32 %v3467, 1.0
        %v3476 = vadd.f32 %v3468, 1.0
        %v3477 = vadd.f32 %v3469, 1.0
        %v3478 = vadd.f32 %v3470, 1.0
        %v3479 = vadd.f32 %v3471, 1.0
        %v3480 = vadd.f32 %v3472, 1.0
        %v3481 = vadd.f32 %v3473, 1.0
        %v3482 = vcvt.f32.s32.to.zero.pseudo %v3298
        %v3483 = vcvt.f32.s32.to.zero.pseudo %v3299
        %v3484 = vcvt.f32.s32.to.zero.pseudo %v3300
        %v3485 = vcvt.f32.s32.to.zero.pseudo %v3301
        %v3486 = vcvt.f32.s32.to.zero.pseudo %v3302
        %v3487 = vcvt.f32.s32.to.zero.pseudo %v3303
        %v3488 = vcvt.f32.s32.to.zero.pseudo %v3304
        %v3489 = vcvt.f32.s32.to.zero.pseudo %v3305
        %v3490 = vand.u32 %v3482, 1
        %v3491 = vand.u32 %v3483, 1
        %v3492 = vand.u32 %v3484, 1
        %v3493 = vand.u32 %v3485, 1
        %v3494 = vand.u32 %v3486, 1
        %v3495 = vand.u32 %v3487, 1
        %v3496 = vand.u32 %v3488, 1
        %v3497 = vand.u32 %v3489, 1
        %vm3498 = vcmp.eq.s32.totalorder %v3490, 1
        %vm3499 = vcmp.eq.s32.totalorder %v3491, 1
        %vm3500 = vcmp.eq.s32.totalorder %v3492, 1
        %vm3501 = vcmp.eq.s32.totalorder %v3493, 1
        %vm3502 = vcmp.eq.s32.totalorder %v3494, 1
        %vm3503 = vcmp.eq.s32.totalorder %v3495, 1
        %vm3504 = vcmp.eq.s32.totalorder %v3496, 1
        %vm3505 = vcmp.eq.s32.totalorder %v3497, 1
        %v3506 = vand.u32 %v3482, 2
        %v3507 = vand.u32 %v3483, 2
        %v3508 = vand.u32 %v3484, 2
        %v3509 = vand.u32 %v3485, 2
        %v3510 = vand.u32 %v3486, 2
        %v3511 = vand.u32 %v3487, 2
        %v3512 = vand.u32 %v3488, 2
        %v3513 = vand.u32 %v3489, 2
        %vm3514 = vcmp.eq.s32.totalorder %v3506, 0
        %vm3515 = vcmp.eq.s32.totalorder %v3507, 0
        %vm3516 = vcmp.eq.s32.totalorder %v3508, 0
        %vm3517 = vcmp.eq.s32.totalorder %v3509, 0
        %vm3518 = vcmp.eq.s32.totalorder %v3510, 0
        %vm3519 = vcmp.eq.s32.totalorder %v3511, 0
        %vm3520 = vcmp.eq.s32.totalorder %v3512, 0
        %vm3521 = vcmp.eq.s32.totalorder %v3513, 0
        %v3522 = vsel %vm3514, 1.0, -1.0
        %v3523 = vsel %vm3515, 1.0, -1.0
        %v3524 = vsel %vm3516, 1.0, -1.0
        %v3525 = vsel %vm3517, 1.0, -1.0
        %v3526 = vsel %vm3518, 1.0, -1.0
        %v3527 = vsel %vm3519, 1.0, -1.0
        %v3528 = vsel %vm3520, 1.0, -1.0
        %v3529 = vsel %vm3521, 1.0, -1.0
        %v3530 = vadd.s32 %v3482, 1
        %v3531 = vadd.s32 %v3483, 1
        %v3532 = vadd.s32 %v3484, 1
        %v3533 = vadd.s32 %v3485, 1
        %v3534 = vadd.s32 %v3486, 1
        %v3535 = vadd.s32 %v3487, 1
        %v3536 = vadd.s32 %v3488, 1
        %v3537 = vadd.s32 %v3489, 1
        %v3538 = vand.u32 %v3530, 2
        %v3539 = vand.u32 %v3531, 2
        %v3540 = vand.u32 %v3532, 2
        %v3541 = vand.u32 %v3533, 2
        %v3542 = vand.u32 %v3534, 2
        %v3543 = vand.u32 %v3535, 2
        %v3544 = vand.u32 %v3536, 2
        %v3545 = vand.u32 %v3537, 2
        %vm3546 = vcmp.eq.s32.totalorder %v3538, 0
        %vm3547 = vcmp.eq.s32.totalorder %v3539, 0
        %vm3548 = vcmp.eq.s32.totalorder %v3540, 0
        %vm3549 = vcmp.eq.s32.totalorder %v3541, 0
        %vm3550 = vcmp.eq.s32.totalorder %v3542, 0
        %vm3551 = vcmp.eq.s32.totalorder %v3543, 0
        %vm3552 = vcmp.eq.s32.totalorder %v3544, 0
        %vm3553 = vcmp.eq.s32.totalorder %v3545, 0
        %v3554 = vsel %vm3546, 1.0, -1.0
        %v3555 = vsel %vm3547, 1.0, -1.0
        %v3556 = vsel %vm3548, 1.0, -1.0
        %v3557 = vsel %vm3549, 1.0, -1.0
        %v3558 = vsel %vm3550, 1.0, -1.0
        %v3559 = vsel %vm3551, 1.0, -1.0
        %v3560 = vsel %vm3552, 1.0, -1.0
        %v3561 = vsel %vm3553, 1.0, -1.0
        %v3562 = vsel %vm3498, %v3474, %v3410
        %v3563 = vsel %vm3499, %v3475, %v3411
        %v3564 = vsel %vm3500, %v3476, %v3412
        %v3565 = vsel %vm3501, %v3477, %v3413
        %v3566 = vsel %vm3502, %v3478, %v3414
        %v3567 = vsel %vm3503, %v3479, %v3415
        %v3568 = vsel %vm3504, %v3480, %v3416
        %v3569 = vsel %vm3505, %v3481, %v3417
        %v3570 = vmul.f32 %v3562, %v3522
        %v3571 = vmul.f32 %v3563, %v3523
        %v3572 = vmul.f32 %v3564, %v3524
        %v3573 = vmul.f32 %v3565, %v3525
        %v3574 = vmul.f32 %v3566, %v3526
        %v3575 = vmul.f32 %v3567, %v3527
        %v3576 = vmul.f32 %v3568, %v3528
        %v3577 = vmul.f32 %v3569, %v3529
        %v3578 = vsel %vm3498, %v3410, %v3474
        %v3579 = vsel %vm3499, %v3411, %v3475
        %v3580 = vsel %vm3500, %v3412, %v3476
        %v3581 = vsel %vm3501, %v3413, %v3477
        %v3582 = vsel %vm3502, %v3414, %v3478
        %v3583 = vsel %vm3503, %v3415, %v3479
        %v3584 = vsel %vm3504, %v3416, %v3480
        %v3585 = vsel %vm3505, %v3417, %v3481
        %v3586 = vmul.f32 %v3578, %v3554
        %v3587 = vmul.f32 %v3579, %v3555
        %v3588 = vmul.f32 %v3580, %v3556
        %v3589 = vmul.f32 %v3581, %v3557
        %v3590 = vmul.f32 %v3582, %v3558
        %v3591 = vmul.f32 %v3583, %v3559
        %v3592 = vmul.f32 %v3584, %v3560
        %v3593 = vmul.f32 %v3585, %v3561
        %v3602 = vrot.slane %v3570, 4
        %v3603 = vrot.slane %v3571, 4
        %v3604 = vrot.slane %v3572, 4
        %v3605 = vrot.slane %v3573, 4
        %v3606 = vrot.slane %v3574, 4
        %v3607 = vsel %vm607, %v3602, %v3606
        %v3608 = vrot.slane %v3575, 4
        %v3609 = vsel %vm607, %v3603, %v3608
        %v3610 = vrot.slane %v3576, 4
        %v3611 = vsel %vm607, %v3604, %v3610
        %v3612 = vrot.slane %v3577, 4
        %v3613 = vsel %vm607, %v3605, %v3612
        %3626 = vst [vmem:[%s134 + $0xc0] sm:$0xf0] %v3602
        %3627 = vst [vmem:[%s134 + $0xc8] sm:$0xf0] %v3603
        %3628 = vst [vmem:[%s134 + $0xd0] sm:$0xf0] %v3604
        %3629 = vst [vmem:[%s134 + $0xd8] sm:$0xf0] %v3605
        %3630 = vst [vmem:[%s134 + $0x1c0] sm:$0xff] %v3607
        %3631 = vst [vmem:[%s134 + $0x1c8] sm:$0xff] %v3609
        %3632 = vst [vmem:[%s134 + $0x1d0] sm:$0xff] %v3611
        %3633 = vst [vmem:[%s134 + $0x1d8] sm:$0xff] %v3613
        %3634 = vst [vmem:[%s134 + $0x2c0] sm:$0xf] %v3606
        %3635 = vst [vmem:[%s134 + $0x2c8] sm:$0xf] %v3608
        %3636 = vst [vmem:[%s134 + $0x2d0] sm:$0xf] %v3610
        %3637 = vst [vmem:[%s134 + $0x2d8] sm:$0xf] %v3612
        %v3646 = vrot.slane %v3586, 4
        %v3647 = vrot.slane %v3587, 4
        %v3648 = vrot.slane %v3588, 4
        %v3649 = vrot.slane %v3589, 4
        %v3650 = vrot.slane %v3590, 4
        %v3651 = vsel %vm607, %v3646, %v3650
        %v3652 = vrot.slane %v3591, 4
        %v3653 = vsel %vm607, %v3647, %v3652
        %v3654 = vrot.slane %v3592, 4
        %v3655 = vsel %vm607, %v3648, %v3654
        %v3656 = vrot.slane %v3593, 4
        %v3657 = vsel %vm607, %v3649, %v3656
        %3670 = vst [vmem:[%s134 + $0x2c0] sm:$0xf0] %v3646
        %3671 = vst [vmem:[%s134 + $0x2c8] sm:$0xf0] %v3647
        %3672 = vst [vmem:[%s134 + $0x2d0] sm:$0xf0] %v3648
        %3673 = vst [vmem:[%s134 + $0x2d8] sm:$0xf0] %v3649
        %3674 = vst [vmem:[%s134 + $0x3c0] sm:$0xff] %v3651
        %3675 = vst [vmem:[%s134 + $0x3c8] sm:$0xff] %v3653
        %3676 = vst [vmem:[%s134 + $0x3d0] sm:$0xff] %v3655
        %3677 = vst [vmem:[%s134 + $0x3d8] sm:$0xff] %v3657
        %3678 = vst [vmem:[%s134 + $0x4c0] sm:$0xf] %v3650
        %3679 = vst [vmem:[%s134 + $0x4c8] sm:$0xf] %v3652
        %3680 = vst [vmem:[%s134 + $0x4d0] sm:$0xf] %v3654
        %3681 = vst [vmem:[%s134 + $0x4d8] sm:$0xf] %v3656
        %v3682 = vld [vmem:[%s115 + $0x70] sm:$0xff]
        %v3683 = vld [vmem:[%s115 + $0x78] sm:$0xff]
        %3686 = vst [vmem:[#allocation1] ss:$2 sm:$0xff] %v3682
        %s3687 = scalar_lea.vmem [#allocation1], 16
        %3688 = vst [vmem:[%s3687] ss:$2 sm:$0xff] %v3683
        %v3689 = vld.sshfl [vmem:[#allocation1] sm:$0xff pattern:$0x75316420]
        %v3690 = vld.sshfl [vmem:[#allocation1 + $0x8] sm:$0xff pattern:$0x75316420]
        %v3691 = vld.sshfl [vmem:[#allocation1 + $0x10] sm:$0xff pattern:$0x75316420]
        %v3692 = vld.sshfl [vmem:[#allocation1 + $0x18] sm:$0xff pattern:$0x75316420]
        %3697 = vst [vmem:[%s134 + $0xe0] sm:$0xf] %v3689
        %3698 = vst [vmem:[%s134 + $0xe8] sm:$0xf] %v3690
        %3699 = vst [vmem:[%s134 + $0xf0] sm:$0xf] %v3691
        %3700 = vst [vmem:[%s134 + $0xf8] sm:$0xf] %v3692
        %v3701 = vperm.slane %v3682, 0
        %v3702 = vperm.slane %v3682, 4
        %v3703 = vperm.slane %v3683, 0
        %v3704 = vperm.slane %v3683, 4
        %v3709 = vperm.slane %v3701, 0
        %v3710 = vperm.slane %v3702, 0
        %v3711 = vperm.slane %v3703, 0
        %v3712 = vperm.slane %v3704, 0
        %3713 = vst [vmem:[#allocation2] sm:$0xf] %v3709
        %3714 = vst [vmem:[#allocation2 + $0x8] sm:$0xf] %v3710
        %3715 = vst [vmem:[#allocation2 + $0x10] sm:$0xf] %v3711
        %3716 = vst [vmem:[#allocation2 + $0x18] sm:$0xf] %v3712
        %v3717 = vperm.slane %v3682, 1
        %v3718 = vperm.slane %v3682, 5
        %v3719 = vperm.slane %v3683, 1
        %v3720 = vperm.slane %v3683, 5
        %v3725 = vperm.slane %v3717, 1
        %v3726 = vperm.slane %v3718, 1
        %v3727 = vperm.slane %v3719, 1
        %v3728 = vperm.slane %v3720, 1
        %3729 = vst [vmem:[#allocation2] sm:$0xf0] %v3725
        %3730 = vst [vmem:[#allocation2 + $0x8] sm:$0xf0] %v3726
        %3731 = vst [vmem:[#allocation2 + $0x10] sm:$0xf0] %v3727
        %3732 = vst [vmem:[#allocation2 + $0x18] sm:$0xf0] %v3728
        %v3733 = vperm.slane %v3682, 2
        %v3734 = vperm.slane %v3682, 6
        %v3735 = vperm.slane %v3683, 2
        %v3736 = vperm.slane %v3683, 6
        %v3741 = vperm.slane %v3733, 2
        %v3742 = vperm.slane %v3734, 2
        %v3743 = vperm.slane %v3735, 2
        %v3744 = vperm.slane %v3736, 2
        %3745 = vst [vmem:[#allocation2 + $0x20] sm:$0xf] %v3741
        %3746 = vst [vmem:[#allocation2 + $0x28] sm:$0xf] %v3742
        %3747 = vst [vmem:[#allocation2 + $0x30] sm:$0xf] %v3743
        %3748 = vst [vmem:[#allocation2 + $0x38] sm:$0xf] %v3744
        %v3749 = vperm.slane %v3682, 3
        %v3750 = vperm.slane %v3682, 7
        %v3751 = vperm.slane %v3683, 3
        %v3752 = vperm.slane %v3683, 7
        %v3757 = vperm.slane %v3749, 3
        %v3758 = vperm.slane %v3750, 3
        %v3759 = vperm.slane %v3751, 3
        %v3760 = vperm.slane %v3752, 3
        %3761 = vst [vmem:[#allocation2 + $0x20] sm:$0xf0] %v3757
        %3762 = vst [vmem:[#allocation2 + $0x28] sm:$0xf0] %v3758
        %3763 = vst [vmem:[#allocation2 + $0x30] sm:$0xf0] %v3759
        %3764 = vst [vmem:[#allocation2 + $0x38] sm:$0xf0] %v3760
        %v3765 = vld [vmem:[#allocation2] sm:$0xff]
        %v3766 = vld [vmem:[#allocation2 + $0x8] sm:$0xff]
        %v3767 = vld [vmem:[#allocation2 + $0x10] sm:$0xff]
        %v3768 = vld [vmem:[#allocation2 + $0x18] sm:$0xff]
        %v3769 = vld [vmem:[#allocation2 + $0x20] sm:$0xff]
        %v3770 = vld [vmem:[#allocation2 + $0x28] sm:$0xff]
        %v3771 = vld [vmem:[#allocation2 + $0x30] sm:$0xff]
        %v3772 = vld [vmem:[#allocation2 + $0x38] sm:$0xff]
        %v3773 = vmul.f32 %v3765, %v186
        %v3774 = vmul.f32 %v3766, %v186
        %v3775 = vmul.f32 %v3767, %v186
        %v3776 = vmul.f32 %v3768, %v186
        %v3777 = vmul.f32 %v3769, %v187
        %v3778 = vmul.f32 %v3770, %v187
        %v3779 = vmul.f32 %v3771, %v187
        %v3780 = vmul.f32 %v3772, %v187
        %v3781 = vmul.f32 %v3773, 0.63661975
        %v3782 = vmul.f32 %v3774, 0.63661975
        %v3783 = vmul.f32 %v3775, 0.63661975
        %v3784 = vmul.f32 %v3776, 0.63661975
        %v3785 = vmul.f32 %v3777, 0.63661975
        %v3786 = vmul.f32 %v3778, 0.63661975
        %v3787 = vmul.f32 %v3779, 0.63661975
        %v3788 = vmul.f32 %v3780, 0.63661975
        %v3789 = vadd.f32 %v3781, 0.5
        %v3790 = vadd.f32 %v3782, 0.5
        %v3791 = vadd.f32 %v3783, 0.5
        %v3792 = vadd.f32 %v3784, 0.5
        %v3793 = vadd.f32 %v3785, 0.5
        %v3794 = vadd.f32 %v3786, 0.5
        %v3795 = vadd.f32 %v3787, 0.5
        %v3796 = vadd.f32 %v3788, 0.5
        %v3797 = vfloor.f32 %v3789
        %v3798 = vfloor.f32 %v3790
        %v3799 = vfloor.f32 %v3791
        %v3800 = vfloor.f32 %v3792
        %v3801 = vfloor.f32 %v3793
        %v3802 = vfloor.f32 %v3794
        %v3803 = vfloor.f32 %v3795
        %v3804 = vfloor.f32 %v3796
        %v3805 = vmul.f32 %v3797, 1.5703125
        %v3806 = vmul.f32 %v3798, 1.5703125
        %v3807 = vmul.f32 %v3799, 1.5703125
        %v3808 = vmul.f32 %v3800, 1.5703125
        %v3809 = vmul.f32 %v3801, 1.5703125
        %v3810 = vmul.f32 %v3802, 1.5703125
        %v3811 = vmul.f32 %v3803, 1.5703125
        %v3812 = vmul.f32 %v3804, 1.5703125
        %v3813 = vsub.f32 %v3773, %v3805
        %v3814 = vsub.f32 %v3774, %v3806
        %v3815 = vsub.f32 %v3775, %v3807
        %v3816 = vsub.f32 %v3776, %v3808
        %v3817 = vsub.f32 %v3777, %v3809
        %v3818 = vsub.f32 %v3778, %v3810
        %v3819 = vsub.f32 %v3779, %v3811
        %v3820 = vsub.f32 %v3780, %v3812
        %v3821 = vmul.f32 %v3797, 0.0004837513
        %v3822 = vmul.f32 %v3798, 0.0004837513
        %v3823 = vmul.f32 %v3799, 0.0004837513
        %v3824 = vmul.f32 %v3800, 0.0004837513
        %v3825 = vmul.f32 %v3801, 0.0004837513
        %v3826 = vmul.f32 %v3802, 0.0004837513
        %v3827 = vmul.f32 %v3803, 0.0004837513
        %v3828 = vmul.f32 %v3804, 0.0004837513
        %v3829 = vsub.f32 %v3813, %v3821
        %v3830 = vsub.f32 %v3814, %v3822
        %v3831 = vsub.f32 %v3815, %v3823
        %v3832 = vsub.f32 %v3816, %v3824
        %v3833 = vsub.f32 %v3817, %v3825
        %v3834 = vsub.f32 %v3818, %v3826
        %v3835 = vsub.f32 %v3819, %v3827
        %v3836 = vsub.f32 %v3820, %v3828
        %v3837 = vmul.f32 %v3797, 7.54979e-08
        %v3838 = vmul.f32 %v3798, 7.54979e-08
        %v3839 = vmul.f32 %v3799, 7.54979e-08
        %v3840 = vmul.f32 %v3800, 7.54979e-08
        %v3841 = vmul.f32 %v3801, 7.54979e-08
        %v3842 = vmul.f32 %v3802, 7.54979e-08
        %v3843 = vmul.f32 %v3803, 7.54979e-08
        %v3844 = vmul.f32 %v3804, 7.54979e-08
        %v3845 = vsub.f32 %v3829, %v3837
        %v3846 = vsub.f32 %v3830, %v3838
        %v3847 = vsub.f32 %v3831, %v3839
        %v3848 = vsub.f32 %v3832, %v3840
        %v3849 = vsub.f32 %v3833, %v3841
        %v3850 = vsub.f32 %v3834, %v3842
        %v3851 = vsub.f32 %v3835, %v3843
        %v3852 = vsub.f32 %v3836, %v3844
        %v3853 = vmul.f32 %v3845, %v3845
        %v3854 = vmul.f32 %v3846, %v3846
        %v3855 = vmul.f32 %v3847, %v3847
        %v3856 = vmul.f32 %v3848, %v3848
        %v3857 = vmul.f32 %v3849, %v3849
        %v3858 = vmul.f32 %v3850, %v3850
        %v3859 = vmul.f32 %v3851, %v3851
        %v3860 = vmul.f32 %v3852, %v3852
        %v3861 = vmul.f32 %v3845, %v3853
        %v3862 = vmul.f32 %v3846, %v3854
        %v3863 = vmul.f32 %v3847, %v3855
        %v3864 = vmul.f32 %v3848, %v3856
        %v3865 = vmul.f32 %v3849, %v3857
        %v3866 = vmul.f32 %v3850, %v3858
        %v3867 = vmul.f32 %v3851, %v3859
        %v3868 = vmul.f32 %v3852, %v3860
        %v3869 = vmul.f32 %v3853, -0.00019515296
        %v3870 = vmul.f32 %v3854, -0.00019515296
        %v3871 = vmul.f32 %v3855, -0.00019515296
        %v3872 = vmul.f32 %v3856, -0.00019515296
        %v3873 = vmul.f32 %v3857, -0.00019515296
        %v3874 = vmul.f32 %v3858, -0.00019515296
        %v3875 = vmul.f32 %v3859, -0.00019515296
        %v3876 = vmul.f32 %v3860, -0.00019515296
        %v3877 = vadd.f32 %v3869, 0.008332161
        %v3878 = vadd.f32 %v3870, 0.008332161
        %v3879 = vadd.f32 %v3871, 0.008332161
        %v3880 = vadd.f32 %v3872, 0.008332161
        %v3881 = vadd.f32 %v3873, 0.008332161
        %v3882 = vadd.f32 %v3874, 0.008332161
        %v3883 = vadd.f32 %v3875, 0.008332161
        %v3884 = vadd.f32 %v3876, 0.008332161
        %v3885 = vmul.f32 %v3853, %v3877
        %v3886 = vmul.f32 %v3854, %v3878
        %v3887 = vmul.f32 %v3855, %v3879
        %v3888 = vmul.f32 %v3856, %v3880
        %v3889 = vmul.f32 %v3857, %v3881
        %v3890 = vmul.f32 %v3858, %v3882
        %v3891 = vmul.f32 %v3859, %v3883
        %v3892 = vmul.f32 %v3860, %v3884
        %v3893 = vadd.f32 %v3885, -0.16666655
        %v3894 = vadd.f32 %v3886, -0.16666655
        %v3895 = vadd.f32 %v3887, -0.16666655
        %v3896 = vadd.f32 %v3888, -0.16666655
        %v3897 = vadd.f32 %v3889, -0.16666655
        %v3898 = vadd.f32 %v3890, -0.16666655
        %v3899 = vadd.f32 %v3891, -0.16666655
        %v3900 = vadd.f32 %v3892, -0.16666655
        %v3901 = vmul.f32 %v3861, %v3893
        %v3902 = vmul.f32 %v3862, %v3894
        %v3903 = vmul.f32 %v3863, %v3895
        %v3904 = vmul.f32 %v3864, %v3896
        %v3905 = vmul.f32 %v3865, %v3897
        %v3906 = vmul.f32 %v3866, %v3898
        %v3907 = vmul.f32 %v3867, %v3899
        %v3908 = vmul.f32 %v3868, %v3900
        %v3909 = vadd.f32 %v3845, %v3901
        %v3910 = vadd.f32 %v3846, %v3902
        %v3911 = vadd.f32 %v3847, %v3903
        %v3912 = vadd.f32 %v3848, %v3904
        %v3913 = vadd.f32 %v3849, %v3905
        %v3914 = vadd.f32 %v3850, %v3906
        %v3915 = vadd.f32 %v3851, %v3907
        %v3916 = vadd.f32 %v3852, %v3908
        %v3917 = vmul.f32 %v3853, 2.4433157e-05
        %v3918 = vmul.f32 %v3854, 2.4433157e-05
        %v3919 = vmul.f32 %v3855, 2.4433157e-05
        %v3920 = vmul.f32 %v3856, 2.4433157e-05
        %v3921 = vmul.f32 %v3857, 2.4433157e-05
        %v3922 = vmul.f32 %v3858, 2.4433157e-05
        %v3923 = vmul.f32 %v3859, 2.4433157e-05
        %v3924 = vmul.f32 %v3860, 2.4433157e-05
        %v3925 = vadd.f32 %v3917, -0.0013887316
        %v3926 = vadd.f32 %v3918, -0.0013887316
        %v3927 = vadd.f32 %v3919, -0.0013887316
        %v3928 = vadd.f32 %v3920, -0.0013887316
        %v3929 = vadd.f32 %v3921, -0.0013887316
        %v3930 = vadd.f32 %v3922, -0.0013887316
        %v3931 = vadd.f32 %v3923, -0.0013887316
        %v3932 = vadd.f32 %v3924, -0.0013887316
        %v3933 = vmul.f32 %v3853, %v3925
        %v3934 = vmul.f32 %v3854, %v3926
        %v3935 = vmul.f32 %v3855, %v3927
        %v3936 = vmul.f32 %v3856, %v3928
        %v3937 = vmul.f32 %v3857, %v3929
        %v3938 = vmul.f32 %v3858, %v3930
        %v3939 = vmul.f32 %v3859, %v3931
        %v3940 = vmul.f32 %v3860, %v3932
        %v3941 = vadd.f32 %v3933, 0.041666646
        %v3942 = vadd.f32 %v3934, 0.041666646
        %v3943 = vadd.f32 %v3935, 0.041666646
        %v3944 = vadd.f32 %v3936, 0.041666646
        %v3945 = vadd.f32 %v3937, 0.041666646
        %v3946 = vadd.f32 %v3938, 0.041666646
        %v3947 = vadd.f32 %v3939, 0.041666646
        %v3948 = vadd.f32 %v3940, 0.041666646
        %v3949 = vmul.f32 %v3853, %v3941
        %v3950 = vmul.f32 %v3854, %v3942
        %v3951 = vmul.f32 %v3855, %v3943
        %v3952 = vmul.f32 %v3856, %v3944
        %v3953 = vmul.f32 %v3857, %v3945
        %v3954 = vmul.f32 %v3858, %v3946
        %v3955 = vmul.f32 %v3859, %v3947
        %v3956 = vmul.f32 %v3860, %v3948
        %v3957 = vadd.f32 %v3949, -0.5
        %v3958 = vadd.f32 %v3950, -0.5
        %v3959 = vadd.f32 %v3951, -0.5
        %v3960 = vadd.f32 %v3952, -0.5
        %v3961 = vadd.f32 %v3953, -0.5
        %v3962 = vadd.f32 %v3954, -0.5
        %v3963 = vadd.f32 %v3955, -0.5
        %v3964 = vadd.f32 %v3956, -0.5
        %v3965 = vmul.f32 %v3853, %v3957
        %v3966 = vmul.f32 %v3854, %v3958
        %v3967 = vmul.f32 %v3855, %v3959
        %v3968 = vmul.f32 %v3856, %v3960
        %v3969 = vmul.f32 %v3857, %v3961
        %v3970 = vmul.f32 %v3858, %v3962
        %v3971 = vmul.f32 %v3859, %v3963
        %v3972 = vmul.f32 %v3860, %v3964
        %v3973 = vadd.f32 %v3965, 1.0
        %v3974 = vadd.f32 %v3966, 1.0
        %v3975 = vadd.f32 %v3967, 1.0
        %v3976 = vadd.f32 %v3968, 1.0
        %v3977 = vadd.f32 %v3969, 1.0
        %v3978 = vadd.f32 %v3970, 1.0
        %v3979 = vadd.f32 %v3971, 1.0
        %v3980 = vadd.f32 %v3972, 1.0
        %v3981 = vcvt.f32.s32.to.zero.pseudo %v3797
        %v3982 = vcvt.f32.s32.to.zero.pseudo %v3798
        %v3983 = vcvt.f32.s32.to.zero.pseudo %v3799
        %v3984 = vcvt.f32.s32.to.zero.pseudo %v3800
        %v3985 = vcvt.f32.s32.to.zero.pseudo %v3801
        %v3986 = vcvt.f32.s32.to.zero.pseudo %v3802
        %v3987 = vcvt.f32.s32.to.zero.pseudo %v3803
        %v3988 = vcvt.f32.s32.to.zero.pseudo %v3804
        %v3989 = vand.u32 %v3981, 1
        %v3990 = vand.u32 %v3982, 1
        %v3991 = vand.u32 %v3983, 1
        %v3992 = vand.u32 %v3984, 1
        %v3993 = vand.u32 %v3985, 1
        %v3994 = vand.u32 %v3986, 1
        %v3995 = vand.u32 %v3987, 1
        %v3996 = vand.u32 %v3988, 1
        %vm3997 = vcmp.eq.s32.totalorder %v3989, 1
        %vm3998 = vcmp.eq.s32.totalorder %v3990, 1
        %vm3999 = vcmp.eq.s32.totalorder %v3991, 1
        %vm4000 = vcmp.eq.s32.totalorder %v3992, 1
        %vm4001 = vcmp.eq.s32.totalorder %v3993, 1
        %vm4002 = vcmp.eq.s32.totalorder %v3994, 1
        %vm4003 = vcmp.eq.s32.totalorder %v3995, 1
        %vm4004 = vcmp.eq.s32.totalorder %v3996, 1
        %v4005 = vand.u32 %v3981, 2
        %v4006 = vand.u32 %v3982, 2
        %v4007 = vand.u32 %v3983, 2
        %v4008 = vand.u32 %v3984, 2
        %v4009 = vand.u32 %v3985, 2
        %v4010 = vand.u32 %v3986, 2
        %v4011 = vand.u32 %v3987, 2
        %v4012 = vand.u32 %v3988, 2
        %vm4013 = vcmp.eq.s32.totalorder %v4005, 0
        %vm4014 = vcmp.eq.s32.totalorder %v4006, 0
        %vm4015 = vcmp.eq.s32.totalorder %v4007, 0
        %vm4016 = vcmp.eq.s32.totalorder %v4008, 0
        %vm4017 = vcmp.eq.s32.totalorder %v4009, 0
        %vm4018 = vcmp.eq.s32.totalorder %v4010, 0
        %vm4019 = vcmp.eq.s32.totalorder %v4011, 0
        %vm4020 = vcmp.eq.s32.totalorder %v4012, 0
        %v4021 = vsel %vm4013, 1.0, -1.0
        %v4022 = vsel %vm4014, 1.0, -1.0
        %v4023 = vsel %vm4015, 1.0, -1.0
        %v4024 = vsel %vm4016, 1.0, -1.0
        %v4025 = vsel %vm4017, 1.0, -1.0
        %v4026 = vsel %vm4018, 1.0, -1.0
        %v4027 = vsel %vm4019, 1.0, -1.0
        %v4028 = vsel %vm4020, 1.0, -1.0
        %v4029 = vadd.s32 %v3981, 1
        %v4030 = vadd.s32 %v3982, 1
        %v4031 = vadd.s32 %v3983, 1
        %v4032 = vadd.s32 %v3984, 1
        %v4033 = vadd.s32 %v3985, 1
        %v4034 = vadd.s32 %v3986, 1
        %v4035 = vadd.s32 %v3987, 1
        %v4036 = vadd.s32 %v3988, 1
        %v4037 = vand.u32 %v4029, 2
        %v4038 = vand.u32 %v4030, 2
        %v4039 = vand.u32 %v4031, 2
        %v4040 = vand.u32 %v4032, 2
        %v4041 = vand.u32 %v4033, 2
        %v4042 = vand.u32 %v4034, 2
        %v4043 = vand.u32 %v4035, 2
        %v4044 = vand.u32 %v4036, 2
        %vm4045 = vcmp.eq.s32.totalorder %v4037, 0
        %vm4046 = vcmp.eq.s32.totalorder %v4038, 0
        %vm4047 = vcmp.eq.s32.totalorder %v4039, 0
        %vm4048 = vcmp.eq.s32.totalorder %v4040, 0
        %vm4049 = vcmp.eq.s32.totalorder %v4041, 0
        %vm4050 = vcmp.eq.s32.totalorder %v4042, 0
        %vm4051 = vcmp.eq.s32.totalorder %v4043, 0
        %vm4052 = vcmp.eq.s32.totalorder %v4044, 0
        %v4053 = vsel %vm4045, 1.0, -1.0
        %v4054 = vsel %vm4046, 1.0, -1.0
        %v4055 = vsel %vm4047, 1.0, -1.0
        %v4056 = vsel %vm4048, 1.0, -1.0
        %v4057 = vsel %vm4049, 1.0, -1.0
        %v4058 = vsel %vm4050, 1.0, -1.0
        %v4059 = vsel %vm4051, 1.0, -1.0
        %v4060 = vsel %vm4052, 1.0, -1.0
        %v4061 = vsel %vm3997, %v3973, %v3909
        %v4062 = vsel %vm3998, %v3974, %v3910
        %v4063 = vsel %vm3999, %v3975, %v3911
        %v4064 = vsel %vm4000, %v3976, %v3912
        %v4065 = vsel %vm4001, %v3977, %v3913
        %v4066 = vsel %vm4002, %v3978, %v3914
        %v4067 = vsel %vm4003, %v3979, %v3915
        %v4068 = vsel %vm4004, %v3980, %v3916
        %v4069 = vmul.f32 %v4061, %v4021
        %v4070 = vmul.f32 %v4062, %v4022
        %v4071 = vmul.f32 %v4063, %v4023
        %v4072 = vmul.f32 %v4064, %v4024
        %v4073 = vmul.f32 %v4065, %v4025
        %v4074 = vmul.f32 %v4066, %v4026
        %v4075 = vmul.f32 %v4067, %v4027
        %v4076 = vmul.f32 %v4068, %v4028
        %v4077 = vsel %vm3997, %v3909, %v3973
        %v4078 = vsel %vm3998, %v3910, %v3974
        %v4079 = vsel %vm3999, %v3911, %v3975
        %v4080 = vsel %vm4000, %v3912, %v3976
        %v4081 = vsel %vm4001, %v3913, %v3977
        %v4082 = vsel %vm4002, %v3914, %v3978
        %v4083 = vsel %vm4003, %v3915, %v3979
        %v4084 = vsel %vm4004, %v3916, %v3980
        %v4085 = vmul.f32 %v4077, %v4053
        %v4086 = vmul.f32 %v4078, %v4054
        %v4087 = vmul.f32 %v4079, %v4055
        %v4088 = vmul.f32 %v4080, %v4056
        %v4089 = vmul.f32 %v4081, %v4057
        %v4090 = vmul.f32 %v4082, %v4058
        %v4091 = vmul.f32 %v4083, %v4059
        %v4092 = vmul.f32 %v4084, %v4060
        %v4101 = vrot.slane %v4069, 4
        %v4102 = vrot.slane %v4070, 4
        %v4103 = vrot.slane %v4071, 4
        %v4104 = vrot.slane %v4072, 4
        %v4105 = vrot.slane %v4073, 4
        %v4106 = vsel %vm607, %v4101, %v4105
        %v4107 = vrot.slane %v4074, 4
        %v4108 = vsel %vm607, %v4102, %v4107
        %v4109 = vrot.slane %v4075, 4
        %v4110 = vsel %vm607, %v4103, %v4109
        %v4111 = vrot.slane %v4076, 4
        %v4112 = vsel %vm607, %v4104, %v4111
        %4125 = vst [vmem:[%s134 + $0xe0] sm:$0xf0] %v4101
        %4126 = vst [vmem:[%s134 + $0xe8] sm:$0xf0] %v4102
        %4127 = vst [vmem:[%s134 + $0xf0] sm:$0xf0] %v4103
        %4128 = vst [vmem:[%s134 + $0xf8] sm:$0xf0] %v4104
        %4129 = vst [vmem:[%s134 + $0x1e0] sm:$0xff] %v4106
        %4130 = vst [vmem:[%s134 + $0x1e8] sm:$0xff] %v4108
        %4131 = vst [vmem:[%s134 + $0x1f0] sm:$0xff] %v4110
        %4132 = vst [vmem:[%s134 + $0x1f8] sm:$0xff] %v4112
        %4133 = vst [vmem:[%s134 + $0x2e0] sm:$0xf] %v4105
        %4134 = vst [vmem:[%s134 + $0x2e8] sm:$0xf] %v4107
        %4135 = vst [vmem:[%s134 + $0x2f0] sm:$0xf] %v4109
        %4136 = vst [vmem:[%s134 + $0x2f8] sm:$0xf] %v4111
        %v4145 = vrot.slane %v4085, 4
        %v4146 = vrot.slane %v4086, 4
        %v4147 = vrot.slane %v4087, 4
        %v4148 = vrot.slane %v4088, 4
        %v4149 = vrot.slane %v4089, 4
        %v4150 = vsel %vm607, %v4145, %v4149
        %v4151 = vrot.slane %v4090, 4
        %v4152 = vsel %vm607, %v4146, %v4151
        %v4153 = vrot.slane %v4091, 4
        %v4154 = vsel %vm607, %v4147, %v4153
        %v4155 = vrot.slane %v4092, 4
        %v4156 = vsel %vm607, %v4148, %v4155
        %4169 = vst [vmem:[%s134 + $0x2e0] sm:$0xf0] %v4145
        %4170 = vst [vmem:[%s134 + $0x2e8] sm:$0xf0] %v4146
        %4171 = vst [vmem:[%s134 + $0x2f0] sm:$0xf0] %v4147
        %4172 = vst [vmem:[%s134 + $0x2f8] sm:$0xf0] %v4148
        %4173 = vst [vmem:[%s134 + $0x3e0] sm:$0xff] %v4150
        %4174 = vst [vmem:[%s134 + $0x3e8] sm:$0xff] %v4152
        %4175 = vst [vmem:[%s134 + $0x3f0] sm:$0xff] %v4154
        %4176 = vst [vmem:[%s134 + $0x3f8] sm:$0xff] %v4156
        %4177 = vst [vmem:[%s134 + $0x4e0] sm:$0xf] %v4149
        %4178 = vst [vmem:[%s134 + $0x4e8] sm:$0xf] %v4151
        %4179 = vst [vmem:[%s134 + $0x4f0] sm:$0xf] %v4153
        %4180 = vst [vmem:[%s134 + $0x4f8] sm:$0xf] %v4155
        %s4181 = sand.u32 %s52, 1
        %s4182 = scalar_lea.sflag [#allocation5], %s4181
        %s4183 = sand.u32 %s52, 1
        %s4184 = smul.addr %s4183, 1280
        %s4185 = scalar_lea.vmem [#allocation6], %s4184
        // Predicated region
        $region29: #{tpu_custom_call.1} parent=23 // pred_check
          %p4186 = pneg %p62
        $region30: #{tpu_custom_call.1} parent=23 // pred_check_branch
          %4188 = sbr.rel (%p4186) target = $region32
        $region31: #{tpu_custom_call.1} parent=23 // pred_region
          %s4189 = smul.u32 32, %s18
          %4191 = vsyncadd %s4182, 0
          %s4192 = smul.addr %s4189, 8
          %s4193 = scalar_lea.hbm %s1, %s4192
          %s4194 = sshll.u32 %s4185, 4
          %s4195 = int_to_ptr.vmem [resolvable:$true] %s4194
          %s4196 = sshll.u32 %s4193, 4
          %s4197 = int_to_ptr.hbm [resolvable:$true] %s4196
          %4202 = dma.vmem_to_hbm [thread:$0]  %s4195, 20480, %s4197, %s4182, 4096, 8192, 256
        $region32: #{tpu_custom_call.1} parent=23 // pred_fallthru
          _
      $region24: #{tpu_custom_call.1} parent=5 // pred_fallthru
        _
      %p4203 = scmp.le.s32.totalorder 2, %s13
      // Predicated region
      $region33: #{tpu_custom_call.1} parent=5 // pred_check
        %p4204 = pneg %p4203
      $region34: #{tpu_custom_call.1} parent=5 // pred_check_branch
        %4206 = sbr.rel (%p4204) target = $region36
      $region35: #{tpu_custom_call.1} parent=5 // pred_region
        %s4207 = ssub.s32 %s13, 2
        // Predicated region
        $region37: #{tpu_custom_call.1} parent=35 // pred_check
          %p4208 = pneg %p68
        $region38: #{tpu_custom_call.1} parent=35 // pred_check_branch
          %4210 = sbr.rel (%p4208) target = $region40
        $region39: #{tpu_custom_call.1} parent=35 // pred_region
          %s4211 = sand.u32 %s53, 1
          %s4212 = scalar_lea.sflag [#allocation5], %s4211
          %s4213 = sand.u32 %s53, 1
          %s4214 = smul.addr %s4213, 1280
          %s4215 = scalar_lea.vmem [#allocation6], %s4214
          %4217 = dma.done %s4212, 20480
        $region40: #{tpu_custom_call.1} parent=35 // pred_fallthru
          _
      $region36: #{tpu_custom_call.1} parent=5 // pred_fallthru
        _
    $region6: #{tpu_custom_call.1} parent=1 // loop_footer
      %s17 = sadd.s32 1, %s13
    $region7: #{tpu_custom_call.1} parent=1 // loop_footer_branch
      %12 = sbr.rel target = $region3
    $region8: #{tpu_custom_call.1} parent=1 // loop_exit
      _
    %4218 = vsyncpa [#allocation4], 1
    %s4219 = scalar_lea.sflag [#allocation4], 1
    %4220 = vsyncpa %s4219, 1
    %4221 = vsyncpa [#allocation5], 1
    %s4222 = scalar_lea.sflag [#allocation5], 1
    %4223 = vsyncpa %s4222, 1

</llo_original>
